<compile_context>
chip_gen: v5e
topology: v5e:2x2
jax: 0.10.0
libtpu: 0.0.40
codegen_flags: <defaults>
</compile_context>

<pallas_src>
import functools

import jax
import jax.numpy as jnp
from jax import lax
from jax.experimental import pallas as pl
from jax.experimental.pallas import tpu as pltpu


def _round_up(n, m):
    return ((n + m - 1) // m) * m


# ----------------------------- Pallas kernel -------------------------------

def _lstm_kernel(x_ref,          # (T*Bp, Dp)   f32  time-major flattened, padded
                 win0_ref,       # (Dp, 4*Hp)   bf16 layer-0 input weights
                 wh0_ref,        # (Hp, 4*Hp)   bf16 layer-0 recurrent weights
                 b0_ref,         # (1, 4*Hp)    f32  layer-0 bias (b_ih + b_hh)
                 w1_ref,         # (2*Hp, 4*Hp) bf16 fused layer-1 [Wih1; Whh1]
                 b1_ref,         # (1, 4*Hp)    f32  layer-1 bias (b_ih + b_hh)
                 wlin_ref,       # (Hp, Op)     f32  final linear weight
                 blin_ref,       # (1, Op)      f32  final linear bias
                 last_h_ref,     # out (Bp, Hp) f32
                 logits_ref,     # out (Bp, Op) f32
                 xp_ref,         # scratch (T*Bp, 4*Hp) f32: precomputed x@Wih0 + b0
                 *, num_steps):
    Bp = last_h_ref.shape[0]
    Hp = wh0_ref.shape[0]
    G = 4 * Hp

    # ---- prologue: layer-0 input projection (+ bias) for ALL timesteps,
    #      one MXU matmul, removed from the serial recurrence.
    xp_ref[...] = (jnp.dot(x_ref[...].astype(jnp.bfloat16), win0_ref[...],
                           preferred_element_type=jnp.float32)
                   + b0_ref[...])

    # Hoisted, loop-invariant values (broadcasts are NOT re-materialized per step).
    wh0 = wh0_ref[...]
    w1 = w1_ref[...]
    b1 = jnp.broadcast_to(b1_ref[...], (Bp, G))

    def gates_to_hc(gates, c):
        # PyTorch gate order (i, f, g, o); each slice is a whole 128-lane group.
        i = jax.nn.sigmoid(gates[:, 0 * Hp:1 * Hp])
        f = jax.nn.sigmoid(gates[:, 1 * Hp:2 * Hp])
        g = jnp.tanh(gates[:, 2 * Hp:3 * Hp])
        o = jax.nn.sigmoid(gates[:, 3 * Hp:4 * Hp])
        c_new = f * c + i * g
        h_new = o * jnp.tanh(c_new)
        return h_new, c_new

    def step(t, carry):
        h0, c0, h1, c1 = carry
        row = pl.multiple_of(t * Bp, Bp)
        # Layer 0: only the recurrent matmul is on the serial path.
        g0 = xp_ref[pl.ds(row, Bp), :] + jnp.dot(
            h0.astype(jnp.bfloat16), wh0, preferred_element_type=jnp.float32)
        h0n, c0n = gates_to_hc(g0, c0)
        # Layer 1: single fused matmul [h0_new, h1] @ [Wih1; Whh1].
        hcat = jnp.concatenate([h0n, h1], axis=-1).astype(jnp.bfloat16)
        g1 = jnp.dot(hcat, w1, preferred_element_type=jnp.float32) + b1
        h1n, c1n = gates_to_hc(g1, c1)
        return (h0n, c0n, h1n, c1n)

    z = jnp.zeros((Bp, Hp), jnp.float32)
    _, _, h1, _ = lax.fori_loop(0, num_steps, step, (z, z, z, z), unroll=True)

    last_h_ref[...] = h1
    logits_ref[...] = (jnp.dot(h1, wlin_ref[...],
                               preferred_element_type=jnp.float32)
                       + blin_ref[...])


# ------------------------------- wrapper ------------------------------------

def _pad_gate_cols(w, H, Hp):
    """(K, 4H) -> (K, 4Hp): gate g's H columns placed at lane offset g*Hp,
    padded gate columns are zero (keeps padded hidden units exactly 0)."""
    K = w.shape[0]
    out = jnp.zeros((K, 4 * Hp), w.dtype)
    for g in range(4):
        out = out.at[:, g * Hp:g * Hp + H].set(w[:, g * H:(g + 1) * H])
    return out


def _pad_rows(w, Kp):
    return jnp.zeros((Kp,) + w.shape[1:], w.dtype).at[:w.shape[0]].set(w)


@jax.jit
def lstms_forward(x_btd, params):
    """x_btd: (B, T, D) float32 (batch_first, like the PyTorch module)."""
    B, T, D = x_btd.shape
    H = params["whh0_t"].shape[0]
    O = params["wlin_t"].shape[1]

    Bp = max(8, _round_up(B, 8))        # sublane granularity
    Hp = _round_up(H, 128)              # lane granularity (gate-block aligned)
    Dp = _round_up(D, 128)
    Op = _round_up(O, 128)

    # ---- weight prep: pad to vreg granularity, align gate blocks to 128-lane
    #      groups, cast MXU operands to bf16 (accumulation stays f32 in-kernel).
    win0 = _pad_rows(_pad_gate_cols(params["wih0_t"], H, Hp), Dp).astype(jnp.bfloat16)
    wh0 = _pad_rows(_pad_gate_cols(params["whh0_t"], H, Hp), Hp).astype(jnp.bfloat16)
    b0 = _pad_gate_cols(params["b0"], H, Hp)                       # (1, 4Hp) f32
    wih1 = _pad_rows(_pad_gate_cols(params["wih1_t"], H, Hp), Hp)
    whh1 = _pad_rows(_pad_gate_cols(params["whh1_t"], H, Hp), Hp)
    w1 = jnp.concatenate([wih1, whh1], axis=0).astype(jnp.bfloat16)  # (2Hp, 4Hp)
    b1 = _pad_gate_cols(params["b1"], H, Hp)                       # (1, 4Hp) f32
    wlin = jnp.zeros((Hp, Op), jnp.float32).at[:H, :O].set(params["wlin_t"])
    blin = jnp.zeros((1, Op), jnp.float32).at[:, :O].set(params["blin"])

    # ---- input: time-major, padded, flattened to (T*Bp, Dp) so the layer-0
    #      projection is one big MXU matmul with no in-kernel reshape.
    x_tbd = jnp.transpose(x_btd, (1, 0, 2))
    x_pad = jnp.zeros((T, Bp, Dp), jnp.float32).at[:, :B, :D].set(x_tbd)
    x_flat = x_pad.reshape(T * Bp, Dp)

    vmem = lambda: pl.BlockSpec(memory_space=pltpu.MemorySpace.VMEM)
    last_h_pad, logits_pad = pl.pallas_call(
        functools.partial(_lstm_kernel, num_steps=T),
        out_shape=(jax.ShapeDtypeStruct((Bp, Hp), jnp.float32),
                   jax.ShapeDtypeStruct((Bp, Op), jnp.float32)),
        in_specs=[vmem() for _ in range(8)],
        out_specs=(vmem(), vmem()),
        scratch_shapes=[pltpu.VMEM((T * Bp, 4 * Hp), jnp.float32)],
    )(x_flat, win0, wh0, b0, w1, b1, wlin, blin)

    return last_h_pad[:B, :H], logits_pad[:B, :O]


# --------------------------- pure-JAX reference ------------------------------

def lstms_reference(x_btd, params):
    H = params["whh0_t"].shape[0]

    def cell(x_in, h, c, wih_t, whh_t, b):
        gates = x_in @ wih_t + h @ whh_t + b
        i = jax.nn.sigmoid(gates[:, 0:H])
        f = jax.nn.sigmoid(gates[:, H:2 * H])
        g = jnp.tanh(gates[:, 2 * H:3 * H])
        o = jax.nn.sigmoid(gates[:, 3 * H:4 * H])
        c_new = f * c + i * g
        return o * jnp.tanh(c_new), c_new

    B, T, D = x_btd.shape
    h0 = jnp.zeros((B, H), jnp.float32)
    c0 = jnp.zeros((B, H), jnp.float32)
    h1 = jnp.zeros((B, H), jnp.float32)
    c1 = jnp.zeros((B, H), jnp.float32)
    for t in range(T):
        h0, c0 = cell(x_btd[:, t, :], h0, c0,
                      params["wih0_t"], params["whh0_t"], params["b0"])
        h1, c1 = cell(h0, h1, c1,
                      params["wih1_t"], params["whh1_t"], params["b1"])
    logits = h1 @ params["wlin_t"] + params["blin"]
    return h1, logits


# --------------------------------- main --------------------------------------

def make_params(key, input_dim, hidden_dim, out_dim):
    """Deterministic PyTorch-style init (uniform +-1/sqrt(H)); weights stored
    pre-transposed, i/h biases pre-summed (mathematically identical)."""
    H = hidden_dim
    bound = 1.0 / jnp.sqrt(jnp.float32(H))
    ks = jax.random.split(key, 10)
    u = lambda k, shape: jax.random.uniform(k, shape, jnp.float32, -bound, bound)
    return {
        "wih0_t": u(ks[0], (input_dim, 4 * H)),
        "whh0_t": u(ks[1], (H, 4 * H)),
        "b0":     u(ks[2], (1, 4 * H)) + u(ks[3], (1, 4 * H)),   # b_ih0 + b_hh0
        "wih1_t": u(ks[4], (H, 4 * H)),
        "whh1_t": u(ks[5], (H, 4 * H)),
        "b1":     u(ks[6], (1, 4 * H)) + u(ks[7], (1, 4 * H)),   # b_ih1 + b_hh1
        "wlin_t": u(ks[8], (H, out_dim)),
        "blin":   u(ks[9], (1, out_dim)),
    }


if __name__ == "__main__":
    B, T, D, H, O = 2, 8, 16, 32, 8        # batch, seq, input_dim, hidden_dim, out_dim
    key = jax.random.PRNGKey(0)
    kx, kp = jax.random.split(key)
    x = jax.random.normal(kx, (B, T, D), jnp.float32)   # batch_first, like PyTorch
    params = make_params(kp, D, H, O)

    last_h, logits = lstms_forward(x, params)
    jax.block_until_ready((last_h, logits))

    ref_h, ref_logits = lstms_reference(x, params)
    assert last_h.shape == (B, H) and logits.shape == (B, O)
    # Tolerance accounts for bf16 MXU operands (state/accumulation stay f32).
    assert jnp.allclose(last_h, ref_h, atol=2e-2, rtol=2e-2)
    assert jnp.allclose(logits, ref_logits, atol=2e-2, rtol=2e-2)

    print("KERNEL_OK")
</pallas_src>

<mosaic_0001>
module attributes {stable_mosaic.version = 11 : i64} {
  func.func @_lstm_kernel(%arg0: memref<64x128xf32, #tpu.memory_space<vmem>>, %arg1: memref<128x512xbf16, #tpu.memory_space<vmem>>, %arg2: memref<128x512xbf16, #tpu.memory_space<vmem>>, %arg3: memref<1x512xf32, #tpu.memory_space<vmem>>, %arg4: memref<256x512xbf16, #tpu.memory_space<vmem>>, %arg5: memref<1x512xf32, #tpu.memory_space<vmem>>, %arg6: memref<128x128xf32, #tpu.memory_space<vmem>>, %arg7: memref<1x128xf32, #tpu.memory_space<vmem>>, %arg8: memref<8x128xf32, #tpu.memory_space<vmem>>, %arg9: memref<8x128xf32, #tpu.memory_space<vmem>>, %arg10: memref<64x512xf32, #tpu.memory_space<vmem>>) attributes {dimension_semantics = [], scalar_prefetch = 0 : i64, scratch_operands = 1 : i64, tpu.core_type = #tpu.core_type<tc>} {
    %c0 = arith.constant 0 : index
    %c0_0 = arith.constant 0 : index
    %0 = vector.load %arg0[%c0, %c0_0] : memref<64x128xf32, #tpu.memory_space<vmem>>, vector<64x128xf32>
    %1 = arith.truncf %0 : vector<64x128xf32> to vector<64x128xbf16>
    %c0_1 = arith.constant 0 : index
    %c0_2 = arith.constant 0 : index
    %2 = vector.load %arg1[%c0_1, %c0_2] : memref<128x512xbf16, #tpu.memory_space<vmem>>, vector<128x512xbf16>
    %cst = arith.constant dense<0.000000e+00> : vector<64x512xf32>
    %3 = tpu.matmul %1, %2, %cst {dimension_numbers = #tpu.dot_dimension_numbers<[1], [0], [0], [1], [0, 0, 1, 1], [], []>} : vector<64x128xbf16>, vector<128x512xbf16>, vector<64x512xf32> -> vector<64x512xf32>
    %c0_3 = arith.constant 0 : index
    %c0_4 = arith.constant 0 : index
    %4 = vector.load %arg3[%c0_3, %c0_4] : memref<1x512xf32, #tpu.memory_space<vmem>>, vector<1x512xf32>
    %5 = vector.broadcast %4 : vector<1x512xf32> to vector<64x512xf32>
    %6 = arith.addf %3, %5 : vector<64x512xf32>
    %c0_5 = arith.constant 0 : index
    %c0_6 = arith.constant 0 : index
    %7 = vector.load %arg10[%c0_5, %c0_6] : memref<64x512xf32, #tpu.memory_space<vmem>>, vector<64x512xf32>
    tpu.vector_store %arg10[%c0_5, %c0_6], %6 {strides = array<i32>} : memref<64x512xf32, #tpu.memory_space<vmem>>, vector<64x512xf32>,
    %c0_7 = arith.constant 0 : index
    %c0_8 = arith.constant 0 : index
    %8 = vector.load %arg2[%c0_7, %c0_8] : memref<128x512xbf16, #tpu.memory_space<vmem>>, vector<128x512xbf16>
    %c0_9 = arith.constant 0 : index
    %c0_10 = arith.constant 0 : index
    %9 = vector.load %arg4[%c0_9, %c0_10] : memref<256x512xbf16, #tpu.memory_space<vmem>>, vector<256x512xbf16>
    %c0_11 = arith.constant 0 : index
    %c0_12 = arith.constant 0 : index
    %10 = vector.load %arg5[%c0_11, %c0_12] : memref<1x512xf32, #tpu.memory_space<vmem>>, vector<1x512xf32>
    %11 = vector.shape_cast %10 : vector<1x512xf32> to vector<1x512xf32>
    %12 = vector.broadcast %11 : vector<1x512xf32> to vector<8x512xf32>
    %cst_13 = arith.constant 0.000000e+00 : f32
    %13 = vector.broadcast %cst_13 : f32 to vector<8x128xf32>
    %c0_i32 = arith.constant 0 : i32
    %c8_i32 = arith.constant 8 : i32
    %14 = arith.muli %c0_i32, %c8_i32 : i32
    %15 = tpu.assume_multiple %14, 8 : i32
    %16 = arith.index_cast %15 : i32 to index
    %c0_14 = arith.constant 0 : index
    %17 = vector.load %arg10[%16, %c0_14] : memref<64x512xf32, #tpu.memory_space<vmem>>, vector<8x512xf32>
    %18 = arith.truncf %13 : vector<8x128xf32> to vector<8x128xbf16>
    %cst_15 = arith.constant dense<0.000000e+00> : vector<8x512xf32>
    %19 = tpu.matmul %18, %8, %cst_15 {dimension_numbers = #tpu.dot_dimension_numbers<[1], [0], [0], [1], [0, 0, 1, 1], [], []>} : vector<8x128xbf16>, vector<128x512xbf16>, vector<8x512xf32> -> vector<8x512xf32>
    %20 = arith.addf %17, %19 : vector<8x512xf32>
    %21 = vector.extract_strided_slice %20 {offsets = [0, 0], sizes = [8, 128], strides = [1, 1]} : vector<8x512xf32> to vector<8x128xf32>
    %22 = arith.negf %21 : vector<8x128xf32>
    %23 = math.exp %22 : vector<8x128xf32>
    %cst_16 = arith.constant 1.000000e+00 : f32
    %24 = vector.broadcast %cst_16 : f32 to vector<8x128xf32>
    %25 = arith.addf %24, %23 : vector<8x128xf32>
    %26 = arith.divf %24, %25 : vector<8x128xf32>
    %27 = vector.extract_strided_slice %20 {offsets = [0, 128], sizes = [8, 128], strides = [1, 1]} : vector<8x512xf32> to vector<8x128xf32>
    %28 = arith.negf %27 : vector<8x128xf32>
    %29 = math.exp %28 : vector<8x128xf32>
    %cst_17 = arith.constant 1.000000e+00 : f32
    %30 = vector.broadcast %cst_17 : f32 to vector<8x128xf32>
    %31 = arith.addf %30, %29 : vector<8x128xf32>
    %32 = arith.divf %30, %31 : vector<8x128xf32>
    %33 = vector.extract_strided_slice %20 {offsets = [0, 256], sizes = [8, 128], strides = [1, 1]} : vector<8x512xf32> to vector<8x128xf32>
    %34 = math.tanh %33 : vector<8x128xf32>
    %35 = vector.extract_strided_slice %20 {offsets = [0, 384], sizes = [8, 128], strides = [1, 1]} : vector<8x512xf32> to vector<8x128xf32>
    %36 = arith.negf %35 : vector<8x128xf32>
    %37 = math.exp %36 : vector<8x128xf32>
    %cst_18 = arith.constant 1.000000e+00 : f32
    %38 = vector.broadcast %cst_18 : f32 to vector<8x128xf32>
    %39 = arith.addf %38, %37 : vector<8x128xf32>
    %40 = arith.divf %38, %39 : vector<8x128xf32>
    %41 = arith.mulf %32, %13 : vector<8x128xf32>
    %42 = arith.mulf %26, %34 : vector<8x128xf32>
    %43 = arith.addf %41, %42 : vector<8x128xf32>
    %44 = math.tanh %43 : vector<8x128xf32>
    %45 = arith.mulf %40, %44 : vector<8x128xf32>
    %46 = tpu.concatenate %45, %13 in 1 : vector<8x128xf32>, vector<8x128xf32> -> vector<8x256xf32>
    %47 = arith.truncf %46 : vector<8x256xf32> to vector<8x256xbf16>
    %cst_19 = arith.constant dense<0.000000e+00> : vector<8x512xf32>
    %48 = tpu.matmul %47, %9, %cst_19 {dimension_numbers = #tpu.dot_dimension_numbers<[1], [0], [0], [1], [0, 0, 1, 1], [], []>} : vector<8x256xbf16>, vector<256x512xbf16>, vector<8x512xf32> -> vector<8x512xf32>
    %49 = arith.addf %48, %12 : vector<8x512xf32>
    %50 = vector.extract_strided_slice %49 {offsets = [0, 0], sizes = [8, 128], strides = [1, 1]} : vector<8x512xf32> to vector<8x128xf32>
    %51 = arith.negf %50 : vector<8x128xf32>
    %52 = math.exp %51 : vector<8x128xf32>
    %cst_20 = arith.constant 1.000000e+00 : f32
    %53 = vector.broadcast %cst_20 : f32 to vector<8x128xf32>
    %54 = arith.addf %53, %52 : vector<8x128xf32>
    %55 = arith.divf %53, %54 : vector<8x128xf32>
    %56 = vector.extract_strided_slice %49 {offsets = [0, 128], sizes = [8, 128], strides = [1, 1]} : vector<8x512xf32> to vector<8x128xf32>
    %57 = arith.negf %56 : vector<8x128xf32>
    %58 = math.exp %57 : vector<8x128xf32>
    %cst_21 = arith.constant 1.000000e+00 : f32
    %59 = vector.broadcast %cst_21 : f32 to vector<8x128xf32>
    %60 = arith.addf %59, %58 : vector<8x128xf32>
    %61 = arith.divf %59, %60 : vector<8x128xf32>
    %62 = vector.extract_strided_slice %49 {offsets = [0, 256], sizes = [8, 128], strides = [1, 1]} : vector<8x512xf32> to vector<8x128xf32>
    %63 = math.tanh %62 : vector<8x128xf32>
    %64 = vector.extract_strided_slice %49 {offsets = [0, 384], sizes = [8, 128], strides = [1, 1]} : vector<8x512xf32> to vector<8x128xf32>
    %65 = arith.negf %64 : vector<8x128xf32>
    %66 = math.exp %65 : vector<8x128xf32>
    %cst_22 = arith.constant 1.000000e+00 : f32
    %67 = vector.broadcast %cst_22 : f32 to vector<8x128xf32>
    %68 = arith.addf %67, %66 : vector<8x128xf32>
    %69 = arith.divf %67, %68 : vector<8x128xf32>
    %70 = arith.mulf %61, %13 : vector<8x128xf32>
    %71 = arith.mulf %55, %63 : vector<8x128xf32>
    %72 = arith.addf %70, %71 : vector<8x128xf32>
    %73 = math.tanh %72 : vector<8x128xf32>
    %74 = arith.mulf %69, %73 : vector<8x128xf32>
    %c1_i32 = arith.constant 1 : i32
    %c8_i32_23 = arith.constant 8 : i32
    %75 = arith.muli %c1_i32, %c8_i32_23 : i32
    %76 = tpu.assume_multiple %75, 8 : i32
    %77 = arith.index_cast %76 : i32 to index
    %c0_24 = arith.constant 0 : index
    %78 = vector.load %arg10[%77, %c0_24] : memref<64x512xf32, #tpu.memory_space<vmem>>, vector<8x512xf32>
    %79 = arith.truncf %45 : vector<8x128xf32> to vector<8x128xbf16>
    %cst_25 = arith.constant dense<0.000000e+00> : vector<8x512xf32>
    %80 = tpu.matmul %79, %8, %cst_25 {dimension_numbers = #tpu.dot_dimension_numbers<[1], [0], [0], [1], [0, 0, 1, 1], [], []>} : vector<8x128xbf16>, vector<128x512xbf16>, vector<8x512xf32> -> vector<8x512xf32>
    %81 = arith.addf %78, %80 : vector<8x512xf32>
    %82 = vector.extract_strided_slice %81 {offsets = [0, 0], sizes = [8, 128], strides = [1, 1]} : vector<8x512xf32> to vector<8x128xf32>
    %83 = arith.negf %82 : vector<8x128xf32>
    %84 = math.exp %83 : vector<8x128xf32>
    %cst_26 = arith.constant 1.000000e+00 : f32
    %85 = vector.broadcast %cst_26 : f32 to vector<8x128xf32>
    %86 = arith.addf %85, %84 : vector<8x128xf32>
    %87 = arith.divf %85, %86 : vector<8x128xf32>
    %88 = vector.extract_strided_slice %81 {offsets = [0, 128], sizes = [8, 128], strides = [1, 1]} : vector<8x512xf32> to vector<8x128xf32>
    %89 = arith.negf %88 : vector<8x128xf32>
    %90 = math.exp %89 : vector<8x128xf32>
    %cst_27 = arith.constant 1.000000e+00 : f32
    %91 = vector.broadcast %cst_27 : f32 to vector<8x128xf32>
    %92 = arith.addf %91, %90 : vector<8x128xf32>
    %93 = arith.divf %91, %92 : vector<8x128xf32>
    %94 = vector.extract_strided_slice %81 {offsets = [0, 256], sizes = [8, 128], strides = [1, 1]} : vector<8x512xf32> to vector<8x128xf32>
    %95 = math.tanh %94 : vector<8x128xf32>
    %96 = vector.extract_strided_slice %81 {offsets = [0, 384], sizes = [8, 128], strides = [1, 1]} : vector<8x512xf32> to vector<8x128xf32>
    %97 = arith.negf %96 : vector<8x128xf32>
    %98 = math.exp %97 : vector<8x128xf32>
    %cst_28 = arith.constant 1.000000e+00 : f32
    %99 = vector.broadcast %cst_28 : f32 to vector<8x128xf32>
    %100 = arith.addf %99, %98 : vector<8x128xf32>
    %101 = arith.divf %99, %100 : vector<8x128xf32>
    %102 = arith.mulf %93, %43 : vector<8x128xf32>
    %103 = arith.mulf %87, %95 : vector<8x128xf32>
    %104 = arith.addf %102, %103 : vector<8x128xf32>
    %105 = math.tanh %104 : vector<8x128xf32>
    %106 = arith.mulf %101, %105 : vector<8x128xf32>
    %107 = tpu.concatenate %106, %74 in 1 : vector<8x128xf32>, vector<8x128xf32> -> vector<8x256xf32>
    %108 = arith.truncf %107 : vector<8x256xf32> to vector<8x256xbf16>
    %cst_29 = arith.constant dense<0.000000e+00> : vector<8x512xf32>
    %109 = tpu.matmul %108, %9, %cst_29 {dimension_numbers = #tpu.dot_dimension_numbers<[1], [0], [0], [1], [0, 0, 1, 1], [], []>} : vector<8x256xbf16>, vector<256x512xbf16>, vector<8x512xf32> -> vector<8x512xf32>
    %110 = arith.addf %109, %12 : vector<8x512xf32>
    %111 = vector.extract_strided_slice %110 {offsets = [0, 0], sizes = [8, 128], strides = [1, 1]} : vector<8x512xf32> to vector<8x128xf32>
    %112 = arith.negf %111 : vector<8x128xf32>
    %113 = math.exp %112 : vector<8x128xf32>
    %cst_30 = arith.constant 1.000000e+00 : f32
    %114 = vector.broadcast %cst_30 : f32 to vector<8x128xf32>
    %115 = arith.addf %114, %113 : vector<8x128xf32>
    %116 = arith.divf %114, %115 : vector<8x128xf32>
    %117 = vector.extract_strided_slice %110 {offsets = [0, 128], sizes = [8, 128], strides = [1, 1]} : vector<8x512xf32> to vector<8x128xf32>
    %118 = arith.negf %117 : vector<8x128xf32>
    %119 = math.exp %118 : vector<8x128xf32>
    %cst_31 = arith.constant 1.000000e+00 : f32
    %120 = vector.broadcast %cst_31 : f32 to vector<8x128xf32>
    %121 = arith.addf %120, %119 : vector<8x128xf32>
    %122 = arith.divf %120, %121 : vector<8x128xf32>
    %123 = vector.extract_strided_slice %110 {offsets = [0, 256], sizes = [8, 128], strides = [1, 1]} : vector<8x512xf32> to vector<8x128xf32>
    %124 = math.tanh %123 : vector<8x128xf32>
    %125 = vector.extract_strided_slice %110 {offsets = [0, 384], sizes = [8, 128], strides = [1, 1]} : vector<8x512xf32> to vector<8x128xf32>
    %126 = arith.negf %125 : vector<8x128xf32>
    %127 = math.exp %126 : vector<8x128xf32>
    %cst_32 = arith.constant 1.000000e+00 : f32
    %128 = vector.broadcast %cst_32 : f32 to vector<8x128xf32>
    %129 = arith.addf %128, %127 : vector<8x128xf32>
    %130 = arith.divf %128, %129 : vector<8x128xf32>
    %131 = arith.mulf %122, %72 : vector<8x128xf32>
    %132 = arith.mulf %116, %124 : vector<8x128xf32>
    %133 = arith.addf %131, %132 : vector<8x128xf32>
    %134 = math.tanh %133 : vector<8x128xf32>
    %135 = arith.mulf %130, %134 : vector<8x128xf32>
    %c2_i32 = arith.constant 2 : i32
    %c8_i32_33 = arith.constant 8 : i32
    %136 = arith.muli %c2_i32, %c8_i32_33 : i32
    %137 = tpu.assume_multiple %136, 8 : i32
    %138 = arith.index_cast %137 : i32 to index
    %c0_34 = arith.constant 0 : index
    %139 = vector.load %arg10[%138, %c0_34] : memref<64x512xf32, #tpu.memory_space<vmem>>, vector<8x512xf32>
    %140 = arith.truncf %106 : vector<8x128xf32> to vector<8x128xbf16>
    %cst_35 = arith.constant dense<0.000000e+00> : vector<8x512xf32>
    %141 = tpu.matmul %140, %8, %cst_35 {dimension_numbers = #tpu.dot_dimension_numbers<[1], [0], [0], [1], [0, 0, 1, 1], [], []>} : vector<8x128xbf16>, vector<128x512xbf16>, vector<8x512xf32> -> vector<8x512xf32>
    %142 = arith.addf %139, %141 : vector<8x512xf32>
    %143 = vector.extract_strided_slice %142 {offsets = [0, 0], sizes = [8, 128], strides = [1, 1]} : vector<8x512xf32> to vector<8x128xf32>
    %144 = arith.negf %143 : vector<8x128xf32>
    %145 = math.exp %144 : vector<8x128xf32>
    %cst_36 = arith.constant 1.000000e+00 : f32
    %146 = vector.broadcast %cst_36 : f32 to vector<8x128xf32>
    %147 = arith.addf %146, %145 : vector<8x128xf32>
    %148 = arith.divf %146, %147 : vector<8x128xf32>
    %149 = vector.extract_strided_slice %142 {offsets = [0, 128], sizes = [8, 128], strides = [1, 1]} : vector<8x512xf32> to vector<8x128xf32>
    %150 = arith.negf %149 : vector<8x128xf32>
    %151 = math.exp %150 : vector<8x128xf32>
    %cst_37 = arith.constant 1.000000e+00 : f32
    %152 = vector.broadcast %cst_37 : f32 to vector<8x128xf32>
    %153 = arith.addf %152, %151 : vector<8x128xf32>
    %154 = arith.divf %152, %153 : vector<8x128xf32>
    %155 = vector.extract_strided_slice %142 {offsets = [0, 256], sizes = [8, 128], strides = [1, 1]} : vector<8x512xf32> to vector<8x128xf32>
    %156 = math.tanh %155 : vector<8x128xf32>
    %157 = vector.extract_strided_slice %142 {offsets = [0, 384], sizes = [8, 128], strides = [1, 1]} : vector<8x512xf32> to vector<8x128xf32>
    %158 = arith.negf %157 : vector<8x128xf32>
    %159 = math.exp %158 : vector<8x128xf32>
    %cst_38 = arith.constant 1.000000e+00 : f32
    %160 = vector.broadcast %cst_38 : f32 to vector<8x128xf32>
    %161 = arith.addf %160, %159 : vector<8x128xf32>
    %162 = arith.divf %160, %161 : vector<8x128xf32>
    %163 = arith.mulf %154, %104 : vector<8x128xf32>
    %164 = arith.mulf %148, %156 : vector<8x128xf32>
    %165 = arith.addf %163, %164 : vector<8x128xf32>
    %166 = math.tanh %165 : vector<8x128xf32>
    %167 = arith.mulf %162, %166 : vector<8x128xf32>
    %168 = tpu.concatenate %167, %135 in 1 : vector<8x128xf32>, vector<8x128xf32> -> vector<8x256xf32>
    %169 = arith.truncf %168 : vector<8x256xf32> to vector<8x256xbf16>
    %cst_39 = arith.constant dense<0.000000e+00> : vector<8x512xf32>
    %170 = tpu.matmul %169, %9, %cst_39 {dimension_numbers = #tpu.dot_dimension_numbers<[1], [0], [0], [1], [0, 0, 1, 1], [], []>} : vector<8x256xbf16>, vector<256x512xbf16>, vector<8x512xf32> -> vector<8x512xf32>
    %171 = arith.addf %170, %12 : vector<8x512xf32>
    %172 = vector.extract_strided_slice %171 {offsets = [0, 0], sizes = [8, 128], strides = [1, 1]} : vector<8x512xf32> to vector<8x128xf32>
    %173 = arith.negf %172 : vector<8x128xf32>
    %174 = math.exp %173 : vector<8x128xf32>
    %cst_40 = arith.constant 1.000000e+00 : f32
    %175 = vector.broadcast %cst_40 : f32 to vector<8x128xf32>
    %176 = arith.addf %175, %174 : vector<8x128xf32>
    %177 = arith.divf %175, %176 : vector<8x128xf32>
    %178 = vector.extract_strided_slice %171 {offsets = [0, 128], sizes = [8, 128], strides = [1, 1]} : vector<8x512xf32> to vector<8x128xf32>
    %179 = arith.negf %178 : vector<8x128xf32>
    %180 = math.exp %179 : vector<8x128xf32>
    %cst_41 = arith.constant 1.000000e+00 : f32
    %181 = vector.broadcast %cst_41 : f32 to vector<8x128xf32>
    %182 = arith.addf %181, %180 : vector<8x128xf32>
    %183 = arith.divf %181, %182 : vector<8x128xf32>
    %184 = vector.extract_strided_slice %171 {offsets = [0, 256], sizes = [8, 128], strides = [1, 1]} : vector<8x512xf32> to vector<8x128xf32>
    %185 = math.tanh %184 : vector<8x128xf32>
    %186 = vector.extract_strided_slice %171 {offsets = [0, 384], sizes = [8, 128], strides = [1, 1]} : vector<8x512xf32> to vector<8x128xf32>
    %187 = arith.negf %186 : vector<8x128xf32>
    %188 = math.exp %187 : vector<8x128xf32>
    %cst_42 = arith.constant 1.000000e+00 : f32
    %189 = vector.broadcast %cst_42 : f32 to vector<8x128xf32>
    %190 = arith.addf %189, %188 : vector<8x128xf32>
    %191 = arith.divf %189, %190 : vector<8x128xf32>
    %192 = arith.mulf %183, %133 : vector<8x128xf32>
    %193 = arith.mulf %177, %185 : vector<8x128xf32>
    %194 = arith.addf %192, %193 : vector<8x128xf32>
    %195 = math.tanh %194 : vector<8x128xf32>
    %196 = arith.mulf %191, %195 : vector<8x128xf32>
    %c3_i32 = arith.constant 3 : i32
    %c8_i32_43 = arith.constant 8 : i32
    %197 = arith.muli %c3_i32, %c8_i32_43 : i32
    %198 = tpu.assume_multiple %197, 8 : i32
    %199 = arith.index_cast %198 : i32 to index
    %c0_44 = arith.constant 0 : index
    %200 = vector.load %arg10[%199, %c0_44] : memref<64x512xf32, #tpu.memory_space<vmem>>, vector<8x512xf32>
    %201 = arith.truncf %167 : vector<8x128xf32> to vector<8x128xbf16>
    %cst_45 = arith.constant dense<0.000000e+00> : vector<8x512xf32>
    %202 = tpu.matmul %201, %8, %cst_45 {dimension_numbers = #tpu.dot_dimension_numbers<[1], [0], [0], [1], [0, 0, 1, 1], [], []>} : vector<8x128xbf16>, vector<128x512xbf16>, vector<8x512xf32> -> vector<8x512xf32>
    %203 = arith.addf %200, %202 : vector<8x512xf32>
    %204 = vector.extract_strided_slice %203 {offsets = [0, 0], sizes = [8, 128], strides = [1, 1]} : vector<8x512xf32> to vector<8x128xf32>
    %205 = arith.negf %204 : vector<8x128xf32>
    %206 = math.exp %205 : vector<8x128xf32>
    %cst_46 = arith.constant 1.000000e+00 : f32
    %207 = vector.broadcast %cst_46 : f32 to vector<8x128xf32>
    %208 = arith.addf %207, %206 : vector<8x128xf32>
    %209 = arith.divf %207, %208 : vector<8x128xf32>
    %210 = vector.extract_strided_slice %203 {offsets = [0, 128], sizes = [8, 128], strides = [1, 1]} : vector<8x512xf32> to vector<8x128xf32>
    %211 = arith.negf %210 : vector<8x128xf32>
    %212 = math.exp %211 : vector<8x128xf32>
    %cst_47 = arith.constant 1.000000e+00 : f32
    %213 = vector.broadcast %cst_47 : f32 to vector<8x128xf32>
    %214 = arith.addf %213, %212 : vector<8x128xf32>
    %215 = arith.divf %213, %214 : vector<8x128xf32>
    %216 = vector.extract_strided_slice %203 {offsets = [0, 256], sizes = [8, 128], strides = [1, 1]} : vector<8x512xf32> to vector<8x128xf32>
    %217 = math.tanh %216 : vector<8x128xf32>
    %218 = vector.extract_strided_slice %203 {offsets = [0, 384], sizes = [8, 128], strides = [1, 1]} : vector<8x512xf32> to vector<8x128xf32>
    %219 = arith.negf %218 : vector<8x128xf32>
    %220 = math.exp %219 : vector<8x128xf32>
    %cst_48 = arith.constant 1.000000e+00 : f32
    %221 = vector.broadcast %cst_48 : f32 to vector<8x128xf32>
    %222 = arith.addf %221, %220 : vector<8x128xf32>
    %223 = arith.divf %221, %222 : vector<8x128xf32>
    %224 = arith.mulf %215, %165 : vector<8x128xf32>
    %225 = arith.mulf %209, %217 : vector<8x128xf32>
    %226 = arith.addf %224, %225 : vector<8x128xf32>
    %227 = math.tanh %226 : vector<8x128xf32>
    %228 = arith.mulf %223, %227 : vector<8x128xf32>
    %229 = tpu.concatenate %228, %196 in 1 : vector<8x128xf32>, vector<8x128xf32> -> vector<8x256xf32>
    %230 = arith.truncf %229 : vector<8x256xf32> to vector<8x256xbf16>
    %cst_49 = arith.constant dense<0.000000e+00> : vector<8x512xf32>
    %231 = tpu.matmul %230, %9, %cst_49 {dimension_numbers = #tpu.dot_dimension_numbers<[1], [0], [0], [1], [0, 0, 1, 1], [], []>} : vector<8x256xbf16>, vector<256x512xbf16>, vector<8x512xf32> -> vector<8x512xf32>
    %232 = arith.addf %231, %12 : vector<8x512xf32>
    %233 = vector.extract_strided_slice %232 {offsets = [0, 0], sizes = [8, 128], strides = [1, 1]} : vector<8x512xf32> to vector<8x128xf32>
    %234 = arith.negf %233 : vector<8x128xf32>
    %235 = math.exp %234 : vector<8x128xf32>
    %cst_50 = arith.constant 1.000000e+00 : f32
    %236 = vector.broadcast %cst_50 : f32 to vector<8x128xf32>
    %237 = arith.addf %236, %235 : vector<8x128xf32>
    %238 = arith.divf %236, %237 : vector<8x128xf32>
    %239 = vector.extract_strided_slice %232 {offsets = [0, 128], sizes = [8, 128], strides = [1, 1]} : vector<8x512xf32> to vector<8x128xf32>
    %240 = arith.negf %239 : vector<8x128xf32>
    %241 = math.exp %240 : vector<8x128xf32>
    %cst_51 = arith.constant 1.000000e+00 : f32
    %242 = vector.broadcast %cst_51 : f32 to vector<8x128xf32>
    %243 = arith.addf %242, %241 : vector<8x128xf32>
    %244 = arith.divf %242, %243 : vector<8x128xf32>
    %245 = vector.extract_strided_slice %232 {offsets = [0, 256], sizes = [8, 128], strides = [1, 1]} : vector<8x512xf32> to vector<8x128xf32>
    %246 = math.tanh %245 : vector<8x128xf32>
    %247 = vector.extract_strided_slice %232 {offsets = [0, 384], sizes = [8, 128], strides = [1, 1]} : vector<8x512xf32> to vector<8x128xf32>
    %248 = arith.negf %247 : vector<8x128xf32>
    %249 = math.exp %248 : vector<8x128xf32>
    %cst_52 = arith.constant 1.000000e+00 : f32
    %250 = vector.broadcast %cst_52 : f32 to vector<8x128xf32>
    %251 = arith.addf %250, %249 : vector<8x128xf32>
    %252 = arith.divf %250, %251 : vector<8x128xf32>
    %253 = arith.mulf %244, %194 : vector<8x128xf32>
    %254 = arith.mulf %238, %246 : vector<8x128xf32>
    %255 = arith.addf %253, %254 : vector<8x128xf32>
    %256 = math.tanh %255 : vector<8x128xf32>
    %257 = arith.mulf %252, %256 : vector<8x128xf32>
    %c4_i32 = arith.constant 4 : i32
    %c8_i32_53 = arith.constant 8 : i32
    %258 = arith.muli %c4_i32, %c8_i32_53 : i32
    %259 = tpu.assume_multiple %258, 8 : i32
    %260 = arith.index_cast %259 : i32 to index
    %c0_54 = arith.constant 0 : index
    %261 = vector.load %arg10[%260, %c0_54] : memref<64x512xf32, #tpu.memory_space<vmem>>, vector<8x512xf32>
    %262 = arith.truncf %228 : vector<8x128xf32> to vector<8x128xbf16>
    %cst_55 = arith.constant dense<0.000000e+00> : vector<8x512xf32>
    %263 = tpu.matmul %262, %8, %cst_55 {dimension_numbers = #tpu.dot_dimension_numbers<[1], [0], [0], [1], [0, 0, 1, 1], [], []>} : vector<8x128xbf16>, vector<128x512xbf16>, vector<8x512xf32> -> vector<8x512xf32>
    %264 = arith.addf %261, %263 : vector<8x512xf32>
    %265 = vector.extract_strided_slice %264 {offsets = [0, 0], sizes = [8, 128], strides = [1, 1]} : vector<8x512xf32> to vector<8x128xf32>
    %266 = arith.negf %265 : vector<8x128xf32>
    %267 = math.exp %266 : vector<8x128xf32>
    %cst_56 = arith.constant 1.000000e+00 : f32
    %268 = vector.broadcast %cst_56 : f32 to vector<8x128xf32>
    %269 = arith.addf %268, %267 : vector<8x128xf32>
    %270 = arith.divf %268, %269 : vector<8x128xf32>
    %271 = vector.extract_strided_slice %264 {offsets = [0, 128], sizes = [8, 128], strides = [1, 1]} : vector<8x512xf32> to vector<8x128xf32>
    %272 = arith.negf %271 : vector<8x128xf32>
    %273 = math.exp %272 : vector<8x128xf32>
    %cst_57 = arith.constant 1.000000e+00 : f32
    %274 = vector.broadcast %cst_57 : f32 to vector<8x128xf32>
    %275 = arith.addf %274, %273 : vector<8x128xf32>
    %276 = arith.divf %274, %275 : vector<8x128xf32>
    %277 = vector.extract_strided_slice %264 {offsets = [0, 256], sizes = [8, 128], strides = [1, 1]} : vector<8x512xf32> to vector<8x128xf32>
    %278 = math.tanh %277 : vector<8x128xf32>
    %279 = vector.extract_strided_slice %264 {offsets = [0, 384], sizes = [8, 128], strides = [1, 1]} : vector<8x512xf32> to vector<8x128xf32>
    %280 = arith.negf %279 : vector<8x128xf32>
    %281 = math.exp %280 : vector<8x128xf32>
    %cst_58 = arith.constant 1.000000e+00 : f32
    %282 = vector.broadcast %cst_58 : f32 to vector<8x128xf32>
    %283 = arith.addf %282, %281 : vector<8x128xf32>
    %284 = arith.divf %282, %283 : vector<8x128xf32>
    %285 = arith.mulf %276, %226 : vector<8x128xf32>
    %286 = arith.mulf %270, %278 : vector<8x128xf32>
    %287 = arith.addf %285, %286 : vector<8x128xf32>
    %288 = math.tanh %287 : vector<8x128xf32>
    %289 = arith.mulf %284, %288 : vector<8x128xf32>
    %290 = tpu.concatenate %289, %257 in 1 : vector<8x128xf32>, vector<8x128xf32> -> vector<8x256xf32>
    %291 = arith.truncf %290 : vector<8x256xf32> to vector<8x256xbf16>
    %cst_59 = arith.constant dense<0.000000e+00> : vector<8x512xf32>
    %292 = tpu.matmul %291, %9, %cst_59 {dimension_numbers = #tpu.dot_dimension_numbers<[1], [0], [0], [1], [0, 0, 1, 1], [], []>} : vector<8x256xbf16>, vector<256x512xbf16>, vector<8x512xf32> -> vector<8x512xf32>
    %293 = arith.addf %292, %12 : vector<8x512xf32>
    %294 = vector.extract_strided_slice %293 {offsets = [0, 0], sizes = [8, 128], strides = [1, 1]} : vector<8x512xf32> to vector<8x128xf32>
    %295 = arith.negf %294 : vector<8x128xf32>
    %296 = math.exp %295 : vector<8x128xf32>
    %cst_60 = arith.constant 1.000000e+00 : f32
    %297 = vector.broadcast %cst_60 : f32 to vector<8x128xf32>
    %298 = arith.addf %297, %296 : vector<8x128xf32>
    %299 = arith.divf %297, %298 : vector<8x128xf32>
    %300 = vector.extract_strided_slice %293 {offsets = [0, 128], sizes = [8, 128], strides = [1, 1]} : vector<8x512xf32> to vector<8x128xf32>
    %301 = arith.negf %300 : vector<8x128xf32>
    %302 = math.exp %301 : vector<8x128xf32>
    %cst_61 = arith.constant 1.000000e+00 : f32
    %303 = vector.broadcast %cst_61 : f32 to vector<8x128xf32>
    %304 = arith.addf %303, %302 : vector<8x128xf32>
    %305 = arith.divf %303, %304 : vector<8x128xf32>
    %306 = vector.extract_strided_slice %293 {offsets = [0, 256], sizes = [8, 128], strides = [1, 1]} : vector<8x512xf32> to vector<8x128xf32>
    %307 = math.tanh %306 : vector<8x128xf32>
    %308 = vector.extract_strided_slice %293 {offsets = [0, 384], sizes = [8, 128], strides = [1, 1]} : vector<8x512xf32> to vector<8x128xf32>
    %309 = arith.negf %308 : vector<8x128xf32>
    %310 = math.exp %309 : vector<8x128xf32>
    %cst_62 = arith.constant 1.000000e+00 : f32
    %311 = vector.broadcast %cst_62 : f32 to vector<8x128xf32>
    %312 = arith.addf %311, %310 : vector<8x128xf32>
    %313 = arith.divf %311, %312 : vector<8x128xf32>
    %314 = arith.mulf %305, %255 : vector<8x128xf32>
    %315 = arith.mulf %299, %307 : vector<8x128xf32>
    %316 = arith.addf %314, %315 : vector<8x128xf32>
    %317 = math.tanh %316 : vector<8x128xf32>
    %318 = arith.mulf %313, %317 : vector<8x128xf32>
    %c5_i32 = arith.constant 5 : i32
    %c8_i32_63 = arith.constant 8 : i32
    %319 = arith.muli %c5_i32, %c8_i32_63 : i32
    %320 = tpu.assume_multiple %319, 8 : i32
    %321 = arith.index_cast %320 : i32 to index
    %c0_64 = arith.constant 0 : index
    %322 = vector.load %arg10[%321, %c0_64] : memref<64x512xf32, #tpu.memory_space<vmem>>, vector<8x512xf32>
    %323 = arith.truncf %289 : vector<8x128xf32> to vector<8x128xbf16>
    %cst_65 = arith.constant dense<0.000000e+00> : vector<8x512xf32>
    %324 = tpu.matmul %323, %8, %cst_65 {dimension_numbers = #tpu.dot_dimension_numbers<[1], [0], [0], [1], [0, 0, 1, 1], [], []>} : vector<8x128xbf16>, vector<128x512xbf16>, vector<8x512xf32> -> vector<8x512xf32>
    %325 = arith.addf %322, %324 : vector<8x512xf32>
    %326 = vector.extract_strided_slice %325 {offsets = [0, 0], sizes = [8, 128], strides = [1, 1]} : vector<8x512xf32> to vector<8x128xf32>
    %327 = arith.negf %326 : vector<8x128xf32>
    %328 = math.exp %327 : vector<8x128xf32>
    %cst_66 = arith.constant 1.000000e+00 : f32
    %329 = vector.broadcast %cst_66 : f32 to vector<8x128xf32>
    %330 = arith.addf %329, %328 : vector<8x128xf32>
    %331 = arith.divf %329, %330 : vector<8x128xf32>
    %332 = vector.extract_strided_slice %325 {offsets = [0, 128], sizes = [8, 128], strides = [1, 1]} : vector<8x512xf32> to vector<8x128xf32>
    %333 = arith.negf %332 : vector<8x128xf32>
    %334 = math.exp %333 : vector<8x128xf32>
    %cst_67 = arith.constant 1.000000e+00 : f32
    %335 = vector.broadcast %cst_67 : f32 to vector<8x128xf32>
    %336 = arith.addf %335, %334 : vector<8x128xf32>
    %337 = arith.divf %335, %336 : vector<8x128xf32>
    %338 = vector.extract_strided_slice %325 {offsets = [0, 256], sizes = [8, 128], strides = [1, 1]} : vector<8x512xf32> to vector<8x128xf32>
    %339 = math.tanh %338 : vector<8x128xf32>
    %340 = vector.extract_strided_slice %325 {offsets = [0, 384], sizes = [8, 128], strides = [1, 1]} : vector<8x512xf32> to vector<8x128xf32>
    %341 = arith.negf %340 : vector<8x128xf32>
    %342 = math.exp %341 : vector<8x128xf32>
    %cst_68 = arith.constant 1.000000e+00 : f32
    %343 = vector.broadcast %cst_68 : f32 to vector<8x128xf32>
    %344 = arith.addf %343, %342 : vector<8x128xf32>
    %345 = arith.divf %343, %344 : vector<8x128xf32>
    %346 = arith.mulf %337, %287 : vector<8x128xf32>
    %347 = arith.mulf %331, %339 : vector<8x128xf32>
    %348 = arith.addf %346, %347 : vector<8x128xf32>
    %349 = math.tanh %348 : vector<8x128xf32>
    %350 = arith.mulf %345, %349 : vector<8x128xf32>
    %351 = tpu.concatenate %350, %318 in 1 : vector<8x128xf32>, vector<8x128xf32> -> vector<8x256xf32>
    %352 = arith.truncf %351 : vector<8x256xf32> to vector<8x256xbf16>
    %cst_69 = arith.constant dense<0.000000e+00> : vector<8x512xf32>
    %353 = tpu.matmul %352, %9, %cst_69 {dimension_numbers = #tpu.dot_dimension_numbers<[1], [0], [0], [1], [0, 0, 1, 1], [], []>} : vector<8x256xbf16>, vector<256x512xbf16>, vector<8x512xf32> -> vector<8x512xf32>
    %354 = arith.addf %353, %12 : vector<8x512xf32>
    %355 = vector.extract_strided_slice %354 {offsets = [0, 0], sizes = [8, 128], strides = [1, 1]} : vector<8x512xf32> to vector<8x128xf32>
    %356 = arith.negf %355 : vector<8x128xf32>
    %357 = math.exp %356 : vector<8x128xf32>
    %cst_70 = arith.constant 1.000000e+00 : f32
    %358 = vector.broadcast %cst_70 : f32 to vector<8x128xf32>
    %359 = arith.addf %358, %357 : vector<8x128xf32>
    %360 = arith.divf %358, %359 : vector<8x128xf32>
    %361 = vector.extract_strided_slice %354 {offsets = [0, 128], sizes = [8, 128], strides = [1, 1]} : vector<8x512xf32> to vector<8x128xf32>
    %362 = arith.negf %361 : vector<8x128xf32>
    %363 = math.exp %362 : vector<8x128xf32>
    %cst_71 = arith.constant 1.000000e+00 : f32
    %364 = vector.broadcast %cst_71 : f32 to vector<8x128xf32>
    %365 = arith.addf %364, %363 : vector<8x128xf32>
    %366 = arith.divf %364, %365 : vector<8x128xf32>
    %367 = vector.extract_strided_slice %354 {offsets = [0, 256], sizes = [8, 128], strides = [1, 1]} : vector<8x512xf32> to vector<8x128xf32>
    %368 = math.tanh %367 : vector<8x128xf32>
    %369 = vector.extract_strided_slice %354 {offsets = [0, 384], sizes = [8, 128], strides = [1, 1]} : vector<8x512xf32> to vector<8x128xf32>
    %370 = arith.negf %369 : vector<8x128xf32>
    %371 = math.exp %370 : vector<8x128xf32>
    %cst_72 = arith.constant 1.000000e+00 : f32
    %372 = vector.broadcast %cst_72 : f32 to vector<8x128xf32>
    %373 = arith.addf %372, %371 : vector<8x128xf32>
    %374 = arith.divf %372, %373 : vector<8x128xf32>
    %375 = arith.mulf %366, %316 : vector<8x128xf32>
    %376 = arith.mulf %360, %368 : vector<8x128xf32>
    %377 = arith.addf %375, %376 : vector<8x128xf32>
    %378 = math.tanh %377 : vector<8x128xf32>
    %379 = arith.mulf %374, %378 : vector<8x128xf32>
    %c6_i32 = arith.constant 6 : i32
    %c8_i32_73 = arith.constant 8 : i32
    %380 = arith.muli %c6_i32, %c8_i32_73 : i32
    %381 = tpu.assume_multiple %380, 8 : i32
    %382 = arith.index_cast %381 : i32 to index
    %c0_74 = arith.constant 0 : index
    %383 = vector.load %arg10[%382, %c0_74] : memref<64x512xf32, #tpu.memory_space<vmem>>, vector<8x512xf32>
    %384 = arith.truncf %350 : vector<8x128xf32> to vector<8x128xbf16>
    %cst_75 = arith.constant dense<0.000000e+00> : vector<8x512xf32>
    %385 = tpu.matmul %384, %8, %cst_75 {dimension_numbers = #tpu.dot_dimension_numbers<[1], [0], [0], [1], [0, 0, 1, 1], [], []>} : vector<8x128xbf16>, vector<128x512xbf16>, vector<8x512xf32> -> vector<8x512xf32>
    %386 = arith.addf %383, %385 : vector<8x512xf32>
    %387 = vector.extract_strided_slice %386 {offsets = [0, 0], sizes = [8, 128], strides = [1, 1]} : vector<8x512xf32> to vector<8x128xf32>
    %388 = arith.negf %387 : vector<8x128xf32>
    %389 = math.exp %388 : vector<8x128xf32>
    %cst_76 = arith.constant 1.000000e+00 : f32
    %390 = vector.broadcast %cst_76 : f32 to vector<8x128xf32>
    %391 = arith.addf %390, %389 : vector<8x128xf32>
    %392 = arith.divf %390, %391 : vector<8x128xf32>
    %393 = vector.extract_strided_slice %386 {offsets = [0, 128], sizes = [8, 128], strides = [1, 1]} : vector<8x512xf32> to vector<8x128xf32>
    %394 = arith.negf %393 : vector<8x128xf32>
    %395 = math.exp %394 : vector<8x128xf32>
    %cst_77 = arith.constant 1.000000e+00 : f32
    %396 = vector.broadcast %cst_77 : f32 to vector<8x128xf32>
    %397 = arith.addf %396, %395 : vector<8x128xf32>
    %398 = arith.divf %396, %397 : vector<8x128xf32>
    %399 = vector.extract_strided_slice %386 {offsets = [0, 256], sizes = [8, 128], strides = [1, 1]} : vector<8x512xf32> to vector<8x128xf32>
    %400 = math.tanh %399 : vector<8x128xf32>
    %401 = vector.extract_strided_slice %386 {offsets = [0, 384], sizes = [8, 128], strides = [1, 1]} : vector<8x512xf32> to vector<8x128xf32>
    %402 = arith.negf %401 : vector<8x128xf32>
    %403 = math.exp %402 : vector<8x128xf32>
    %cst_78 = arith.constant 1.000000e+00 : f32
    %404 = vector.broadcast %cst_78 : f32 to vector<8x128xf32>
    %405 = arith.addf %404, %403 : vector<8x128xf32>
    %406 = arith.divf %404, %405 : vector<8x128xf32>
    %407 = arith.mulf %398, %348 : vector<8x128xf32>
    %408 = arith.mulf %392, %400 : vector<8x128xf32>
    %409 = arith.addf %407, %408 : vector<8x128xf32>
    %410 = math.tanh %409 : vector<8x128xf32>
    %411 = arith.mulf %406, %410 : vector<8x128xf32>
    %412 = tpu.concatenate %411, %379 in 1 : vector<8x128xf32>, vector<8x128xf32> -> vector<8x256xf32>
    %413 = arith.truncf %412 : vector<8x256xf32> to vector<8x256xbf16>
    %cst_79 = arith.constant dense<0.000000e+00> : vector<8x512xf32>
    %414 = tpu.matmul %413, %9, %cst_79 {dimension_numbers = #tpu.dot_dimension_numbers<[1], [0], [0], [1], [0, 0, 1, 1], [], []>} : vector<8x256xbf16>, vector<256x512xbf16>, vector<8x512xf32> -> vector<8x512xf32>
    %415 = arith.addf %414, %12 : vector<8x512xf32>
    %416 = vector.extract_strided_slice %415 {offsets = [0, 0], sizes = [8, 128], strides = [1, 1]} : vector<8x512xf32> to vector<8x128xf32>
    %417 = arith.negf %416 : vector<8x128xf32>
    %418 = math.exp %417 : vector<8x128xf32>
    %cst_80 = arith.constant 1.000000e+00 : f32
    %419 = vector.broadcast %cst_80 : f32 to vector<8x128xf32>
    %420 = arith.addf %419, %418 : vector<8x128xf32>
    %421 = arith.divf %419, %420 : vector<8x128xf32>
    %422 = vector.extract_strided_slice %415 {offsets = [0, 128], sizes = [8, 128], strides = [1, 1]} : vector<8x512xf32> to vector<8x128xf32>
    %423 = arith.negf %422 : vector<8x128xf32>
    %424 = math.exp %423 : vector<8x128xf32>
    %cst_81 = arith.constant 1.000000e+00 : f32
    %425 = vector.broadcast %cst_81 : f32 to vector<8x128xf32>
    %426 = arith.addf %425, %424 : vector<8x128xf32>
    %427 = arith.divf %425, %426 : vector<8x128xf32>
    %428 = vector.extract_strided_slice %415 {offsets = [0, 256], sizes = [8, 128], strides = [1, 1]} : vector<8x512xf32> to vector<8x128xf32>
    %429 = math.tanh %428 : vector<8x128xf32>
    %430 = vector.extract_strided_slice %415 {offsets = [0, 384], sizes = [8, 128], strides = [1, 1]} : vector<8x512xf32> to vector<8x128xf32>
    %431 = arith.negf %430 : vector<8x128xf32>
    %432 = math.exp %431 : vector<8x128xf32>
    %cst_82 = arith.constant 1.000000e+00 : f32
    %433 = vector.broadcast %cst_82 : f32 to vector<8x128xf32>
    %434 = arith.addf %433, %432 : vector<8x128xf32>
    %435 = arith.divf %433, %434 : vector<8x128xf32>
    %436 = arith.mulf %427, %377 : vector<8x128xf32>
    %437 = arith.mulf %421, %429 : vector<8x128xf32>
    %438 = arith.addf %436, %437 : vector<8x128xf32>
    %439 = math.tanh %438 : vector<8x128xf32>
    %440 = arith.mulf %435, %439 : vector<8x128xf32>
    %c7_i32 = arith.constant 7 : i32
    %c8_i32_83 = arith.constant 8 : i32
    %441 = arith.muli %c7_i32, %c8_i32_83 : i32
    %442 = tpu.assume_multiple %441, 8 : i32
    %443 = arith.index_cast %442 : i32 to index
    %c0_84 = arith.constant 0 : index
    %444 = vector.load %arg10[%443, %c0_84] : memref<64x512xf32, #tpu.memory_space<vmem>>, vector<8x512xf32>
    %445 = arith.truncf %411 : vector<8x128xf32> to vector<8x128xbf16>
    %cst_85 = arith.constant dense<0.000000e+00> : vector<8x512xf32>
    %446 = tpu.matmul %445, %8, %cst_85 {dimension_numbers = #tpu.dot_dimension_numbers<[1], [0], [0], [1], [0, 0, 1, 1], [], []>} : vector<8x128xbf16>, vector<128x512xbf16>, vector<8x512xf32> -> vector<8x512xf32>
    %447 = arith.addf %444, %446 : vector<8x512xf32>
    %448 = vector.extract_strided_slice %447 {offsets = [0, 0], sizes = [8, 128], strides = [1, 1]} : vector<8x512xf32> to vector<8x128xf32>
    %449 = arith.negf %448 : vector<8x128xf32>
    %450 = math.exp %449 : vector<8x128xf32>
    %cst_86 = arith.constant 1.000000e+00 : f32
    %451 = vector.broadcast %cst_86 : f32 to vector<8x128xf32>
    %452 = arith.addf %451, %450 : vector<8x128xf32>
    %453 = arith.divf %451, %452 : vector<8x128xf32>
    %454 = vector.extract_strided_slice %447 {offsets = [0, 128], sizes = [8, 128], strides = [1, 1]} : vector<8x512xf32> to vector<8x128xf32>
    %455 = arith.negf %454 : vector<8x128xf32>
    %456 = math.exp %455 : vector<8x128xf32>
    %cst_87 = arith.constant 1.000000e+00 : f32
    %457 = vector.broadcast %cst_87 : f32 to vector<8x128xf32>
    %458 = arith.addf %457, %456 : vector<8x128xf32>
    %459 = arith.divf %457, %458 : vector<8x128xf32>
    %460 = vector.extract_strided_slice %447 {offsets = [0, 256], sizes = [8, 128], strides = [1, 1]} : vector<8x512xf32> to vector<8x128xf32>
    %461 = math.tanh %460 : vector<8x128xf32>
    %462 = vector.extract_strided_slice %447 {offsets = [0, 384], sizes = [8, 128], strides = [1, 1]} : vector<8x512xf32> to vector<8x128xf32>
    %463 = arith.negf %462 : vector<8x128xf32>
    %464 = math.exp %463 : vector<8x128xf32>
    %cst_88 = arith.constant 1.000000e+00 : f32
    %465 = vector.broadcast %cst_88 : f32 to vector<8x128xf32>
    %466 = arith.addf %465, %464 : vector<8x128xf32>
    %467 = arith.divf %465, %466 : vector<8x128xf32>
    %468 = arith.mulf %459, %409 : vector<8x128xf32>
    %469 = arith.mulf %453, %461 : vector<8x128xf32>
    %470 = arith.addf %468, %469 : vector<8x128xf32>
    %471 = math.tanh %470 : vector<8x128xf32>
    %472 = arith.mulf %467, %471 : vector<8x128xf32>
    %473 = tpu.concatenate %472, %440 in 1 : vector<8x128xf32>, vector<8x128xf32> -> vector<8x256xf32>
    %474 = arith.truncf %473 : vector<8x256xf32> to vector<8x256xbf16>
    %cst_89 = arith.constant dense<0.000000e+00> : vector<8x512xf32>
    %475 = tpu.matmul %474, %9, %cst_89 {dimension_numbers = #tpu.dot_dimension_numbers<[1], [0], [0], [1], [0, 0, 1, 1], [], []>} : vector<8x256xbf16>, vector<256x512xbf16>, vector<8x512xf32> -> vector<8x512xf32>
    %476 = arith.addf %475, %12 : vector<8x512xf32>
    %477 = vector.extract_strided_slice %476 {offsets = [0, 0], sizes = [8, 128], strides = [1, 1]} : vector<8x512xf32> to vector<8x128xf32>
    %478 = arith.negf %477 : vector<8x128xf32>
    %479 = math.exp %478 : vector<8x128xf32>
    %cst_90 = arith.constant 1.000000e+00 : f32
    %480 = vector.broadcast %cst_90 : f32 to vector<8x128xf32>
    %481 = arith.addf %480, %479 : vector<8x128xf32>
    %482 = arith.divf %480, %481 : vector<8x128xf32>
    %483 = vector.extract_strided_slice %476 {offsets = [0, 128], sizes = [8, 128], strides = [1, 1]} : vector<8x512xf32> to vector<8x128xf32>
    %484 = arith.negf %483 : vector<8x128xf32>
    %485 = math.exp %484 : vector<8x128xf32>
    %cst_91 = arith.constant 1.000000e+00 : f32
    %486 = vector.broadcast %cst_91 : f32 to vector<8x128xf32>
    %487 = arith.addf %486, %485 : vector<8x128xf32>
    %488 = arith.divf %486, %487 : vector<8x128xf32>
    %489 = vector.extract_strided_slice %476 {offsets = [0, 256], sizes = [8, 128], strides = [1, 1]} : vector<8x512xf32> to vector<8x128xf32>
    %490 = math.tanh %489 : vector<8x128xf32>
    %491 = vector.extract_strided_slice %476 {offsets = [0, 384], sizes = [8, 128], strides = [1, 1]} : vector<8x512xf32> to vector<8x128xf32>
    %492 = arith.negf %491 : vector<8x128xf32>
    %493 = math.exp %492 : vector<8x128xf32>
    %cst_92 = arith.constant 1.000000e+00 : f32
    %494 = vector.broadcast %cst_92 : f32 to vector<8x128xf32>
    %495 = arith.addf %494, %493 : vector<8x128xf32>
    %496 = arith.divf %494, %495 : vector<8x128xf32>
    %497 = arith.mulf %488, %438 : vector<8x128xf32>
    %498 = arith.mulf %482, %490 : vector<8x128xf32>
    %499 = arith.addf %497, %498 : vector<8x128xf32>
    %500 = math.tanh %499 : vector<8x128xf32>
    %501 = arith.mulf %496, %500 : vector<8x128xf32>
    %c8_i32_93 = arith.constant 8 : i32
    %c0_94 = arith.constant 0 : index
    %c0_95 = arith.constant 0 : index
    %502 = vector.load %arg8[%c0_94, %c0_95] : memref<8x128xf32, #tpu.memory_space<vmem>>, vector<8x128xf32>
    tpu.vector_store %arg8[%c0_94, %c0_95], %501 {strides = array<i32>} : memref<8x128xf32, #tpu.memory_space<vmem>>, vector<8x128xf32>,
    %c0_96 = arith.constant 0 : index
    %c0_97 = arith.constant 0 : index
    %503 = vector.load %arg6[%c0_96, %c0_97] : memref<128x128xf32, #tpu.memory_space<vmem>>, vector<128x128xf32>
    %cst_98 = arith.constant dense<0.000000e+00> : vector<8x128xf32>
    %504 = tpu.matmul %501, %503, %cst_98 {dimension_numbers = #tpu.dot_dimension_numbers<[1], [0], [0], [1], [0, 0, 1, 1], [], []>} : vector<8x128xf32>, vector<128x128xf32>, vector<8x128xf32> -> vector<8x128xf32>
    %c0_99 = arith.constant 0 : index
    %c0_100 = arith.constant 0 : index
    %505 = vector.load %arg7[%c0_99, %c0_100] : memref<1x128xf32, #tpu.memory_space<vmem>>, vector<1x128xf32>
    %506 = vector.broadcast %505 : vector<1x128xf32> to vector<8x128xf32>
    %507 = arith.addf %504, %506 : vector<8x128xf32>
    %c0_101 = arith.constant 0 : index
    %c0_102 = arith.constant 0 : index
    %508 = vector.load %arg9[%c0_101, %c0_102] : memref<8x128xf32, #tpu.memory_space<vmem>>, vector<8x128xf32>
    tpu.vector_store %arg9[%c0_101, %c0_102], %507 {strides = array<i32>} : memref<8x128xf32, #tpu.memory_space<vmem>>, vector<8x128xf32>,
    return
  }
}

</mosaic_0001>

<llo_original>
// kernel: lstms_forward.1
$region0: #{lstms_forward.1}
  #allocation0 [shape = 'u32[]', space=smem, size = 0x4, offset = 0x4, fixed_abs, tag = 'smem constant byte address 0x4 - core index']
  #allocation1 [shape = 'u32[72,128]{1,0:T(1,128)}', space=vmem, size = 0x9000, scoped, tag = 'internal scratch']
  #allocation2 [shape = 'f32[64,512]{1,0:T(8,128)}', space=vmem, size = 0x20000, scoped, tag = 'scratch operand']
  %s0 = inlined_call_operand.vmem [shape: f32[64,128], index: 0, kind: input, shape index: {}]
  %s1 = inlined_call_operand.vmem [shape: bf16[128,512], index: 1, kind: input, shape index: {}]
  %s2 = inlined_call_operand.vmem [shape: bf16[128,512], index: 2, kind: input, shape index: {}]
  %s3 = inlined_call_operand.vmem [shape: f32[1,512], index: 3, kind: input, shape index: {}]
  %s4 = inlined_call_operand.vmem [shape: bf16[256,512], index: 4, kind: input, shape index: {}]
  %s5 = inlined_call_operand.vmem [shape: f32[1,512], index: 5, kind: input, shape index: {}]
  %s6 = inlined_call_operand.vmem [shape: f32[128,128], index: 6, kind: input, shape index: {}]
  %s7 = inlined_call_operand.vmem [shape: f32[1,128], index: 7, kind: input, shape index: {}]
  %s8 = inlined_call_operand.vmem [shape: f32[8,128], index: 8, kind: output, shape index: {0}]
  %s9 = inlined_call_operand.vmem [shape: f32[8,128], index: 9, kind: output, shape index: {1}]
  %10 = xla_tuple %s8, %s9
  %s11 = sld [smem:[#allocation0]]
  $region50: #{lstms_forward.1} parent=0
    _
  %s13 = ssub.s32 1, %s11
  %s14 = scalar_select 0, %s13, %s11
  // Predicated region
  $region2: #{lstms_forward.1} parent=0 // pred_check
    _
  $region3: #{lstms_forward.1} parent=0 // pred_check_branch
    %16 = sbr.rel (0) target = $region5
  $region4: #{lstms_forward.1} parent=0 // pred_region
    _
  $region5: #{lstms_forward.1} parent=0 // pred_fallthru
    _
  // Predicated region
  $region6: #{lstms_forward.1} parent=0 // pred_check
    _
  $region7: #{lstms_forward.1} parent=0 // pred_check_branch
    %18 = sbr.rel (0) target = $region9
  $region8: #{lstms_forward.1} parent=0 // pred_region
    _
  $region9: #{lstms_forward.1} parent=0 // pred_fallthru
    _
  // Predicated region
  $region10: #{lstms_forward.1} parent=0 // pred_check
    _
  $region11: #{lstms_forward.1} parent=0 // pred_check_branch
    %20 = sbr.rel (0) target = $region13
  $region12: #{lstms_forward.1} parent=0 // pred_region
    _
  $region13: #{lstms_forward.1} parent=0 // pred_fallthru
    _
  // Predicated region
  $region14: #{lstms_forward.1} parent=0 // pred_check
    _
  $region15: #{lstms_forward.1} parent=0 // pred_check_branch
    %22 = sbr.rel (0) target = $region17
  $region16: #{lstms_forward.1} parent=0 // pred_region
    _
  $region17: #{lstms_forward.1} parent=0 // pred_fallthru
    _
  // Predicated region
  $region18: #{lstms_forward.1} parent=0 // pred_check
    _
  $region19: #{lstms_forward.1} parent=0 // pred_check_branch
    %24 = sbr.rel (0) target = $region21
  $region20: #{lstms_forward.1} parent=0 // pred_region
    _
  $region21: #{lstms_forward.1} parent=0 // pred_fallthru
    _
  // Predicated region
  $region22: #{lstms_forward.1} parent=0 // pred_check
    _
  $region23: #{lstms_forward.1} parent=0 // pred_check_branch
    %26 = sbr.rel (0) target = $region25
  $region24: #{lstms_forward.1} parent=0 // pred_region
    _
  $region25: #{lstms_forward.1} parent=0 // pred_fallthru
    _
  // Predicated region
  $region26: #{lstms_forward.1} parent=0 // pred_check
    _
  $region27: #{lstms_forward.1} parent=0 // pred_check_branch
    %28 = sbr.rel (0) target = $region29
  $region28: #{lstms_forward.1} parent=0 // pred_region
    _
  $region29: #{lstms_forward.1} parent=0 // pred_fallthru
    _
  // Predicated region
  $region30: #{lstms_forward.1} parent=0 // pred_check
    _
  $region31: #{lstms_forward.1} parent=0 // pred_check_branch
    %30 = sbr.rel (0) target = $region33
  $region32: #{lstms_forward.1} parent=0 // pred_region
    _
  $region33: #{lstms_forward.1} parent=0 // pred_fallthru
    _
  %v32 = vld [vmem:[%s0] sm:$0xff]
  %v33 = vld [vmem:[%s0 + $0x8] sm:$0xff]
  %v34 = vld [vmem:[%s0 + $0x10] sm:$0xff]
  %v35 = vld [vmem:[%s0 + $0x18] sm:$0xff]
  %v36 = vld [vmem:[%s0 + $0x20] sm:$0xff]
  %v37 = vld [vmem:[%s0 + $0x28] sm:$0xff]
  %v38 = vld [vmem:[%s0 + $0x30] sm:$0xff]
  %v39 = vld [vmem:[%s0 + $0x38] sm:$0xff]
  %v40 = vpack.c.bf16 %v33, %v32
  %v41 = vpack.c.bf16 %v35, %v34
  %v42 = vpack.c.bf16 %v37, %v36
  %v43 = vpack.c.bf16 %v39, %v38
  %v44 = vld [vmem:[%s1] sm:$0xff]
  %v45 = vld [vmem:[%s1 + $0x8] sm:$0xff]
  %v46 = vld [vmem:[%s1 + $0x10] sm:$0xff]
  %v47 = vld [vmem:[%s1 + $0x18] sm:$0xff]
  %v48 = vld [vmem:[%s1 + $0x20] sm:$0xff]
  %v49 = vld [vmem:[%s1 + $0x28] sm:$0xff]
  %v50 = vld [vmem:[%s1 + $0x30] sm:$0xff]
  %v51 = vld [vmem:[%s1 + $0x38] sm:$0xff]
  %v52 = vld [vmem:[%s1 + $0x40] sm:$0xff]
  %v53 = vld [vmem:[%s1 + $0x48] sm:$0xff]
  %v54 = vld [vmem:[%s1 + $0x50] sm:$0xff]
  %v55 = vld [vmem:[%s1 + $0x58] sm:$0xff]
  %v56 = vld [vmem:[%s1 + $0x60] sm:$0xff]
  %v57 = vld [vmem:[%s1 + $0x68] sm:$0xff]
  %v58 = vld [vmem:[%s1 + $0x70] sm:$0xff]
  %v59 = vld [vmem:[%s1 + $0x78] sm:$0xff]
  %v60 = vld [vmem:[%s1 + $0x80] sm:$0xff]
  %v61 = vld [vmem:[%s1 + $0x88] sm:$0xff]
  %v62 = vld [vmem:[%s1 + $0x90] sm:$0xff]
  %v63 = vld [vmem:[%s1 + $0x98] sm:$0xff]
  %v64 = vld [vmem:[%s1 + $0xa0] sm:$0xff]
  %v65 = vld [vmem:[%s1 + $0xa8] sm:$0xff]
  %v66 = vld [vmem:[%s1 + $0xb0] sm:$0xff]
  %v67 = vld [vmem:[%s1 + $0xb8] sm:$0xff]
  %v68 = vld [vmem:[%s1 + $0xc0] sm:$0xff]
  %v69 = vld [vmem:[%s1 + $0xc8] sm:$0xff]
  %v70 = vld [vmem:[%s1 + $0xd0] sm:$0xff]
  %v71 = vld [vmem:[%s1 + $0xd8] sm:$0xff]
  %v72 = vld [vmem:[%s1 + $0xe0] sm:$0xff]
  %v73 = vld [vmem:[%s1 + $0xe8] sm:$0xff]
  %v74 = vld [vmem:[%s1 + $0xf0] sm:$0xff]
  %v75 = vld [vmem:[%s1 + $0xf8] sm:$0xff]
  %v76 = vld [vmem:[%s3] sm:$0xf]
  %v78 = vperm.slane %v76, 0
  %v79 = vperm.slane %v76, 1
  %v80 = vperm.slane %v76, 2
  %v81 = vperm.slane %v76, 3
  %v118 = vunpack.c.l.b16 %v44
  %v119 = vunpack.c.h.b16 %v44
  %v120 = vunpack.c.l.b16 %v45
  %v121 = vunpack.c.h.b16 %v45
  %v122 = vunpack.c.l.b16 %v46
  %v123 = vunpack.c.h.b16 %v46
  %v124 = vunpack.c.l.b16 %v47
  %v125 = vunpack.c.h.b16 %v47
  %v126 = vunpack.c.l.b16 %v48
  %v127 = vunpack.c.h.b16 %v48
  %v128 = vunpack.c.l.b16 %v49
  %v129 = vunpack.c.h.b16 %v49
  %v130 = vunpack.c.l.b16 %v50
  %v131 = vunpack.c.h.b16 %v50
  %v132 = vunpack.c.l.b16 %v51
  %v133 = vunpack.c.h.b16 %v51
  %v134 = vunpack.c.l.b16 %v52
  %v135 = vunpack.c.h.b16 %v52
  %v136 = vunpack.c.l.b16 %v53
  %v137 = vunpack.c.h.b16 %v53
  %v138 = vunpack.c.l.b16 %v54
  %v139 = vunpack.c.h.b16 %v54
  %v140 = vunpack.c.l.b16 %v55
  %v141 = vunpack.c.h.b16 %v55
  %v142 = vunpack.c.l.b16 %v56
  %v143 = vunpack.c.h.b16 %v56
  %v144 = vunpack.c.l.b16 %v57
  %v145 = vunpack.c.h.b16 %v57
  %v146 = vunpack.c.l.b16 %v58
  %v147 = vunpack.c.h.b16 %v58
  %v148 = vunpack.c.l.b16 %v59
  %v149 = vunpack.c.h.b16 %v59
  %v150 = vunpack.c.l.b16 %v60
  %v151 = vunpack.c.h.b16 %v60
  %v152 = vunpack.c.l.b16 %v61
  %v153 = vunpack.c.h.b16 %v61
  %v154 = vunpack.c.l.b16 %v62
  %v155 = vunpack.c.h.b16 %v62
  %v156 = vunpack.c.l.b16 %v63
  %v157 = vunpack.c.h.b16 %v63
  %v158 = vunpack.c.l.b16 %v64
  %v159 = vunpack.c.h.b16 %v64
  %v160 = vunpack.c.l.b16 %v65
  %v161 = vunpack.c.h.b16 %v65
  %v162 = vunpack.c.l.b16 %v66
  %v163 = vunpack.c.h.b16 %v66
  %v164 = vunpack.c.l.b16 %v67
  %v165 = vunpack.c.h.b16 %v67
  %v166 = vunpack.c.l.b16 %v68
  %v167 = vunpack.c.h.b16 %v68
  %v168 = vunpack.c.l.b16 %v69
  %v169 = vunpack.c.h.b16 %v69
  %v170 = vunpack.c.l.b16 %v70
  %v171 = vunpack.c.h.b16 %v70
  %v172 = vunpack.c.l.b16 %v71
  %v173 = vunpack.c.h.b16 %v71
  %v174 = vunpack.c.l.b16 %v72
  %v175 = vunpack.c.h.b16 %v72
  %v176 = vunpack.c.l.b16 %v73
  %v177 = vunpack.c.h.b16 %v73
  %v178 = vunpack.c.l.b16 %v74
  %v179 = vunpack.c.h.b16 %v74
  %v180 = vunpack.c.l.b16 %v75
  %v181 = vunpack.c.h.b16 %v75
  %v182 = vpack.c.b16 %v122, %v118
  %v183 = vpack.c.b16 %v123, %v119
  %v184 = vpack.c.b16 %v124, %v120
  %v185 = vpack.c.b16 %v125, %v121
  %v186 = vpack.c.b16 %v130, %v126
  %v187 = vpack.c.b16 %v131, %v127
  %v188 = vpack.c.b16 %v132, %v128
  %v189 = vpack.c.b16 %v133, %v129
  %v190 = vpack.c.b16 %v138, %v134
  %v191 = vpack.c.b16 %v139, %v135
  %v192 = vpack.c.b16 %v140, %v136
  %v193 = vpack.c.b16 %v141, %v137
  %v194 = vpack.c.b16 %v146, %v142
  %v195 = vpack.c.b16 %v147, %v143
  %v196 = vpack.c.b16 %v148, %v144
  %v197 = vpack.c.b16 %v149, %v145
  %v198 = vpack.c.b16 %v154, %v150
  %v199 = vpack.c.b16 %v155, %v151
  %v200 = vpack.c.b16 %v156, %v152
  %v201 = vpack.c.b16 %v157, %v153
  %v202 = vpack.c.b16 %v162, %v158
  %v203 = vpack.c.b16 %v163, %v159
  %v204 = vpack.c.b16 %v164, %v160
  %v205 = vpack.c.b16 %v165, %v161
  %v206 = vpack.c.b16 %v170, %v166
  %v207 = vpack.c.b16 %v171, %v167
  %v208 = vpack.c.b16 %v172, %v168
  %v209 = vpack.c.b16 %v173, %v169
  %v210 = vpack.c.b16 %v178, %v174
  %v211 = vpack.c.b16 %v179, %v175
  %v212 = vpack.c.b16 %v180, %v176
  %v213 = vpack.c.b16 %v181, %v177
  %246 = vmatpush.bf16.msra.mxu0 %v210
  %247 = vmatpush.bf16.msra.mxu0 %v206
  %248 = vmatpush.bf16.msra.mxu0 %v202
  %249 = vmatpush.bf16.msra.mxu0 %v198
  %250 = vmatpush.bf16.msra.mxu0 %v194
  %251 = vmatpush.bf16.msra.mxu0 %v190
  %252 = vmatpush.bf16.msra.mxu0 %v186
  %253 = vmatpush.bf16.msra.mxu0 %v182
  %254 = vmatmul.bf16.gmra.mxu0 %v40
  %v255 = vpop.f32.mrf.mxu0
  %v256 = vadd.f32 %v78, %v255
  %v257 = vpop.f32.mrf.mxu0
  %v258 = vadd.f32 %v78, %v257
  %259 = vmatmul.bf16.gmra.mxu0 %v41
  %v260 = vpop.f32.mrf.mxu0
  %v261 = vadd.f32 %v78, %v260
  %v262 = vpop.f32.mrf.mxu0
  %v263 = vadd.f32 %v78, %v262
  %264 = vmatmul.bf16.gmra.mxu0 %v42
  %v265 = vpop.f32.mrf.mxu0
  %v266 = vadd.f32 %v78, %v265
  %v267 = vpop.f32.mrf.mxu0
  %v268 = vadd.f32 %v78, %v267
  %269 = vmatmul.bf16.gmra.mxu0 %v43
  %v270 = vpop.f32.mrf.mxu0
  %v271 = vadd.f32 %v78, %v270
  %v272 = vpop.f32.mrf.mxu0
  %v273 = vadd.f32 %v78, %v272
  %274 = vdwg.mxu0
  %275 = vmatpush.bf16.msra.mxu0 %v211
  %276 = vmatpush.bf16.msra.mxu0 %v207
  %277 = vmatpush.bf16.msra.mxu0 %v203
  %278 = vmatpush.bf16.msra.mxu0 %v199
  %279 = vmatpush.bf16.msra.mxu0 %v195
  %280 = vmatpush.bf16.msra.mxu0 %v191
  %281 = vmatpush.bf16.msra.mxu0 %v187
  %282 = vmatpush.bf16.msra.mxu0 %v183
  %283 = vmatmul.bf16.gmra.mxu0 %v40
  %v284 = vpop.f32.mrf.mxu0
  %v285 = vadd.f32 %v79, %v284
  %v286 = vpop.f32.mrf.mxu0
  %v287 = vadd.f32 %v79, %v286
  %288 = vmatmul.bf16.gmra.mxu0 %v41
  %v289 = vpop.f32.mrf.mxu0
  %v290 = vadd.f32 %v79, %v289
  %v291 = vpop.f32.mrf.mxu0
  %v292 = vadd.f32 %v79, %v291
  %293 = vmatmul.bf16.gmra.mxu0 %v42
  %v294 = vpop.f32.mrf.mxu0
  %v295 = vadd.f32 %v79, %v294
  %v296 = vpop.f32.mrf.mxu0
  %v297 = vadd.f32 %v79, %v296
  %298 = vmatmul.bf16.gmra.mxu0 %v43
  %v299 = vpop.f32.mrf.mxu0
  %v300 = vadd.f32 %v79, %v299
  %v301 = vpop.f32.mrf.mxu0
  %v302 = vadd.f32 %v79, %v301
  %303 = vdwg.mxu0
  %304 = vmatpush.bf16.msra.mxu0 %v212
  %305 = vmatpush.bf16.msra.mxu0 %v208
  %306 = vmatpush.bf16.msra.mxu0 %v204
  %307 = vmatpush.bf16.msra.mxu0 %v200
  %308 = vmatpush.bf16.msra.mxu0 %v196
  %309 = vmatpush.bf16.msra.mxu0 %v192
  %310 = vmatpush.bf16.msra.mxu0 %v188
  %311 = vmatpush.bf16.msra.mxu0 %v184
  %312 = vmatmul.bf16.gmra.mxu0 %v40
  %v313 = vpop.f32.mrf.mxu0
  %v314 = vadd.f32 %v80, %v313
  %v315 = vpop.f32.mrf.mxu0
  %v316 = vadd.f32 %v80, %v315
  %317 = vmatmul.bf16.gmra.mxu0 %v41
  %v318 = vpop.f32.mrf.mxu0
  %v319 = vadd.f32 %v80, %v318
  %v320 = vpop.f32.mrf.mxu0
  %v321 = vadd.f32 %v80, %v320
  %322 = vmatmul.bf16.gmra.mxu0 %v42
  %v323 = vpop.f32.mrf.mxu0
  %v324 = vadd.f32 %v80, %v323
  %v325 = vpop.f32.mrf.mxu0
  %v326 = vadd.f32 %v80, %v325
  %327 = vmatmul.bf16.gmra.mxu0 %v43
  %v328 = vpop.f32.mrf.mxu0
  %v329 = vadd.f32 %v80, %v328
  %v330 = vpop.f32.mrf.mxu0
  %v331 = vadd.f32 %v80, %v330
  %332 = vdwg.mxu0
  %333 = vmatpush.bf16.msra.mxu0 %v213
  %334 = vmatpush.bf16.msra.mxu0 %v209
  %335 = vmatpush.bf16.msra.mxu0 %v205
  %336 = vmatpush.bf16.msra.mxu0 %v201
  %337 = vmatpush.bf16.msra.mxu0 %v197
  %338 = vmatpush.bf16.msra.mxu0 %v193
  %339 = vmatpush.bf16.msra.mxu0 %v189
  %340 = vmatpush.bf16.msra.mxu0 %v185
  %341 = vmatmul.bf16.gmra.mxu0 %v40
  %v342 = vpop.f32.mrf.mxu0
  %v343 = vadd.f32 %v81, %v342
  %v344 = vpop.f32.mrf.mxu0
  %v345 = vadd.f32 %v81, %v344
  %346 = vmatmul.bf16.gmra.mxu0 %v41
  %v347 = vpop.f32.mrf.mxu0
  %v348 = vadd.f32 %v81, %v347
  %v349 = vpop.f32.mrf.mxu0
  %v350 = vadd.f32 %v81, %v349
  %351 = vmatmul.bf16.gmra.mxu0 %v42
  %v352 = vpop.f32.mrf.mxu0
  %v353 = vadd.f32 %v81, %v352
  %v354 = vpop.f32.mrf.mxu0
  %v355 = vadd.f32 %v81, %v354
  %356 = vmatmul.bf16.gmra.mxu0 %v43
  %v357 = vpop.f32.mrf.mxu0
  %v358 = vadd.f32 %v81, %v357
  %v359 = vpop.f32.mrf.mxu0
  %v360 = vadd.f32 %v81, %v359
  %361 = vdwg.mxu0
  %362 = vst [vmem:[#allocation2] sm:$0xff] %v256
  %363 = vst [vmem:[#allocation2 + $0x8] sm:$0xff] %v285
  %364 = vst [vmem:[#allocation2 + $0x10] sm:$0xff] %v314
  %365 = vst [vmem:[#allocation2 + $0x18] sm:$0xff] %v343
  %366 = vst [vmem:[#allocation2 + $0x20] sm:$0xff] %v258
  %367 = vst [vmem:[#allocation2 + $0x28] sm:$0xff] %v287
  %368 = vst [vmem:[#allocation2 + $0x30] sm:$0xff] %v316
  %369 = vst [vmem:[#allocation2 + $0x38] sm:$0xff] %v345
  %370 = vst [vmem:[#allocation2 + $0x40] sm:$0xff] %v261
  %371 = vst [vmem:[#allocation2 + $0x48] sm:$0xff] %v290
  %372 = vst [vmem:[#allocation2 + $0x50] sm:$0xff] %v319
  %373 = vst [vmem:[#allocation2 + $0x58] sm:$0xff] %v348
  %374 = vst [vmem:[#allocation2 + $0x60] sm:$0xff] %v263
  %375 = vst [vmem:[#allocation2 + $0x68] sm:$0xff] %v292
  %376 = vst [vmem:[#allocation2 + $0x70] sm:$0xff] %v321
  %377 = vst [vmem:[#allocation2 + $0x78] sm:$0xff] %v350
  %378 = vst [vmem:[#allocation2 + $0x80] sm:$0xff] %v266
  %379 = vst [vmem:[#allocation2 + $0x88] sm:$0xff] %v295
  %380 = vst [vmem:[#allocation2 + $0x90] sm:$0xff] %v324
  %381 = vst [vmem:[#allocation2 + $0x98] sm:$0xff] %v353
  %382 = vst [vmem:[#allocation2 + $0xa0] sm:$0xff] %v268
  %383 = vst [vmem:[#allocation2 + $0xa8] sm:$0xff] %v297
  %384 = vst [vmem:[#allocation2 + $0xb0] sm:$0xff] %v326
  %385 = vst [vmem:[#allocation2 + $0xb8] sm:$0xff] %v355
  %386 = vst [vmem:[#allocation2 + $0xc0] sm:$0xff] %v271
  %387 = vst [vmem:[#allocation2 + $0xc8] sm:$0xff] %v300
  %388 = vst [vmem:[#allocation2 + $0xd0] sm:$0xff] %v329
  %389 = vst [vmem:[#allocation2 + $0xd8] sm:$0xff] %v358
  %390 = vst [vmem:[#allocation2 + $0xe0] sm:$0xff] %v273
  %391 = vst [vmem:[#allocation2 + $0xe8] sm:$0xff] %v302
  %392 = vst [vmem:[#allocation2 + $0xf0] sm:$0xff] %v331
  %393 = vst [vmem:[#allocation2 + $0xf8] sm:$0xff] %v360
  %v394 = vld [vmem:[%s2] sm:$0xff]
  %v395 = vld [vmem:[%s2 + $0x8] sm:$0xff]
  %v396 = vld [vmem:[%s2 + $0x10] sm:$0xff]
  %v397 = vld [vmem:[%s2 + $0x18] sm:$0xff]
  %v398 = vld [vmem:[%s2 + $0x20] sm:$0xff]
  %v399 = vld [vmem:[%s2 + $0x28] sm:$0xff]
  %v400 = vld [vmem:[%s2 + $0x30] sm:$0xff]
  %v401 = vld [vmem:[%s2 + $0x38] sm:$0xff]
  %v402 = vld [vmem:[%s2 + $0x40] sm:$0xff]
  %v403 = vld [vmem:[%s2 + $0x48] sm:$0xff]
  %v404 = vld [vmem:[%s2 + $0x50] sm:$0xff]
  %v405 = vld [vmem:[%s2 + $0x58] sm:$0xff]
  %v406 = vld [vmem:[%s2 + $0x60] sm:$0xff]
  %v407 = vld [vmem:[%s2 + $0x68] sm:$0xff]
  %v408 = vld [vmem:[%s2 + $0x70] sm:$0xff]
  %v409 = vld [vmem:[%s2 + $0x78] sm:$0xff]
  %v410 = vld [vmem:[%s2 + $0x80] sm:$0xff]
  %v411 = vld [vmem:[%s2 + $0x88] sm:$0xff]
  %v412 = vld [vmem:[%s2 + $0x90] sm:$0xff]
  %v413 = vld [vmem:[%s2 + $0x98] sm:$0xff]
  %v414 = vld [vmem:[%s2 + $0xa0] sm:$0xff]
  %v415 = vld [vmem:[%s2 + $0xa8] sm:$0xff]
  %v416 = vld [vmem:[%s2 + $0xb0] sm:$0xff]
  %v417 = vld [vmem:[%s2 + $0xb8] sm:$0xff]
  %v418 = vld [vmem:[%s2 + $0xc0] sm:$0xff]
  %v419 = vld [vmem:[%s2 + $0xc8] sm:$0xff]
  %v420 = vld [vmem:[%s2 + $0xd0] sm:$0xff]
  %v421 = vld [vmem:[%s2 + $0xd8] sm:$0xff]
  %v422 = vld [vmem:[%s2 + $0xe0] sm:$0xff]
  %v423 = vld [vmem:[%s2 + $0xe8] sm:$0xff]
  %v424 = vld [vmem:[%s2 + $0xf0] sm:$0xff]
  %v425 = vld [vmem:[%s2 + $0xf8] sm:$0xff]
  %v426 = vld [vmem:[%s4] sm:$0xff]
  %v427 = vld [vmem:[%s4 + $0x8] sm:$0xff]
  %v428 = vld [vmem:[%s4 + $0x10] sm:$0xff]
  %v429 = vld [vmem:[%s4 + $0x18] sm:$0xff]
  %v430 = vld [vmem:[%s4 + $0x20] sm:$0xff]
  %v431 = vld [vmem:[%s4 + $0x28] sm:$0xff]
  %v432 = vld [vmem:[%s4 + $0x30] sm:$0xff]
  %v433 = vld [vmem:[%s4 + $0x38] sm:$0xff]
  %v434 = vld [vmem:[%s4 + $0x40] sm:$0xff]
  %v435 = vld [vmem:[%s4 + $0x48] sm:$0xff]
  %v436 = vld [vmem:[%s4 + $0x50] sm:$0xff]
  %v437 = vld [vmem:[%s4 + $0x58] sm:$0xff]
  %v438 = vld [vmem:[%s4 + $0x60] sm:$0xff]
  %v439 = vld [vmem:[%s4 + $0x68] sm:$0xff]
  %v440 = vld [vmem:[%s4 + $0x70] sm:$0xff]
  %v441 = vld [vmem:[%s4 + $0x78] sm:$0xff]
  %v442 = vld [vmem:[%s4 + $0x80] sm:$0xff]
  %v443 = vld [vmem:[%s4 + $0x88] sm:$0xff]
  %v444 = vld [vmem:[%s4 + $0x90] sm:$0xff]
  %v445 = vld [vmem:[%s4 + $0x98] sm:$0xff]
  %v446 = vld [vmem:[%s4 + $0xa0] sm:$0xff]
  %v447 = vld [vmem:[%s4 + $0xa8] sm:$0xff]
  %v448 = vld [vmem:[%s4 + $0xb0] sm:$0xff]
  %v449 = vld [vmem:[%s4 + $0xb8] sm:$0xff]
  %v450 = vld [vmem:[%s4 + $0xc0] sm:$0xff]
  %v451 = vld [vmem:[%s4 + $0xc8] sm:$0xff]
  %v452 = vld [vmem:[%s4 + $0xd0] sm:$0xff]
  %v453 = vld [vmem:[%s4 + $0xd8] sm:$0xff]
  %v454 = vld [vmem:[%s4 + $0xe0] sm:$0xff]
  %v455 = vld [vmem:[%s4 + $0xe8] sm:$0xff]
  %v456 = vld [vmem:[%s4 + $0xf0] sm:$0xff]
  %v457 = vld [vmem:[%s4 + $0xf8] sm:$0xff]
  %v458 = vld [vmem:[%s4 + $0x100] sm:$0xff]
  %v459 = vld [vmem:[%s4 + $0x108] sm:$0xff]
  %v460 = vld [vmem:[%s4 + $0x110] sm:$0xff]
  %v461 = vld [vmem:[%s4 + $0x118] sm:$0xff]
  %v462 = vld [vmem:[%s4 + $0x120] sm:$0xff]
  %v463 = vld [vmem:[%s4 + $0x128] sm:$0xff]
  %v464 = vld [vmem:[%s4 + $0x130] sm:$0xff]
  %v465 = vld [vmem:[%s4 + $0x138] sm:$0xff]
  %v466 = vld [vmem:[%s4 + $0x140] sm:$0xff]
  %v467 = vld [vmem:[%s4 + $0x148] sm:$0xff]
  %v468 = vld [vmem:[%s4 + $0x150] sm:$0xff]
  %v469 = vld [vmem:[%s4 + $0x158] sm:$0xff]
  %v470 = vld [vmem:[%s4 + $0x160] sm:$0xff]
  %v471 = vld [vmem:[%s4 + $0x168] sm:$0xff]
  %v472 = vld [vmem:[%s4 + $0x170] sm:$0xff]
  %v473 = vld [vmem:[%s4 + $0x178] sm:$0xff]
  %v474 = vld [vmem:[%s4 + $0x180] sm:$0xff]
  %v475 = vld [vmem:[%s4 + $0x188] sm:$0xff]
  %v476 = vld [vmem:[%s4 + $0x190] sm:$0xff]
  %v477 = vld [vmem:[%s4 + $0x198] sm:$0xff]
  %v478 = vld [vmem:[%s4 + $0x1a0] sm:$0xff]
  %v479 = vld [vmem:[%s4 + $0x1a8] sm:$0xff]
  %v480 = vld [vmem:[%s4 + $0x1b0] sm:$0xff]
  %v481 = vld [vmem:[%s4 + $0x1b8] sm:$0xff]
  %v482 = vld [vmem:[%s4 + $0x1c0] sm:$0xff]
  %v483 = vld [vmem:[%s4 + $0x1c8] sm:$0xff]
  %v484 = vld [vmem:[%s4 + $0x1d0] sm:$0xff]
  %v485 = vld [vmem:[%s4 + $0x1d8] sm:$0xff]
  %v486 = vld [vmem:[%s4 + $0x1e0] sm:$0xff]
  %v487 = vld [vmem:[%s4 + $0x1e8] sm:$0xff]
  %v488 = vld [vmem:[%s4 + $0x1f0] sm:$0xff]
  %v489 = vld [vmem:[%s4 + $0x1f8] sm:$0xff]
  %v490 = vld [vmem:[%s5] sm:$0xf]
  %v492 = vperm.slane %v490, 0
  %v493 = vperm.slane %v490, 1
  %v494 = vperm.slane %v490, 2
  %v495 = vperm.slane %v490, 3
  %s500 = smul.u32 0, 4
  %s501 = smul.addr %s500, 8
  %s502 = scalar_lea.vmem [#allocation2], %s501
  %v503 = vld [vmem:[%s502] sm:$0xff]
  %v504 = vld [vmem:[%s502 + $0x8] sm:$0xff]
  %v505 = vld [vmem:[%s502 + $0x10] sm:$0xff]
  %v506 = vld [vmem:[%s502 + $0x18] sm:$0xff]
  %v539 = vunpack.c.l.b16 %v394
  %v540 = vunpack.c.h.b16 %v394
  %v541 = vunpack.c.l.b16 %v395
  %v542 = vunpack.c.h.b16 %v395
  %v543 = vunpack.c.l.b16 %v396
  %v544 = vunpack.c.h.b16 %v396
  %v545 = vunpack.c.l.b16 %v397
  %v546 = vunpack.c.h.b16 %v397
  %v547 = vunpack.c.l.b16 %v398
  %v548 = vunpack.c.h.b16 %v398
  %v549 = vunpack.c.l.b16 %v399
  %v550 = vunpack.c.h.b16 %v399
  %v551 = vunpack.c.l.b16 %v400
  %v552 = vunpack.c.h.b16 %v400
  %v553 = vunpack.c.l.b16 %v401
  %v554 = vunpack.c.h.b16 %v401
  %v555 = vunpack.c.l.b16 %v402
  %v556 = vunpack.c.h.b16 %v402
  %v557 = vunpack.c.l.b16 %v403
  %v558 = vunpack.c.h.b16 %v403
  %v559 = vunpack.c.l.b16 %v404
  %v560 = vunpack.c.h.b16 %v404
  %v561 = vunpack.c.l.b16 %v405
  %v562 = vunpack.c.h.b16 %v405
  %v563 = vunpack.c.l.b16 %v406
  %v564 = vunpack.c.h.b16 %v406
  %v565 = vunpack.c.l.b16 %v407
  %v566 = vunpack.c.h.b16 %v407
  %v567 = vunpack.c.l.b16 %v408
  %v568 = vunpack.c.h.b16 %v408
  %v569 = vunpack.c.l.b16 %v409
  %v570 = vunpack.c.h.b16 %v409
  %v571 = vunpack.c.l.b16 %v410
  %v572 = vunpack.c.h.b16 %v410
  %v573 = vunpack.c.l.b16 %v411
  %v574 = vunpack.c.h.b16 %v411
  %v575 = vunpack.c.l.b16 %v412
  %v576 = vunpack.c.h.b16 %v412
  %v577 = vunpack.c.l.b16 %v413
  %v578 = vunpack.c.h.b16 %v413
  %v579 = vunpack.c.l.b16 %v414
  %v580 = vunpack.c.h.b16 %v414
  %v581 = vunpack.c.l.b16 %v415
  %v582 = vunpack.c.h.b16 %v415
  %v583 = vunpack.c.l.b16 %v416
  %v584 = vunpack.c.h.b16 %v416
  %v585 = vunpack.c.l.b16 %v417
  %v586 = vunpack.c.h.b16 %v417
  %v587 = vunpack.c.l.b16 %v418
  %v588 = vunpack.c.h.b16 %v418
  %v589 = vunpack.c.l.b16 %v419
  %v590 = vunpack.c.h.b16 %v419
  %v591 = vunpack.c.l.b16 %v420
  %v592 = vunpack.c.h.b16 %v420
  %v593 = vunpack.c.l.b16 %v421
  %v594 = vunpack.c.h.b16 %v421
  %v595 = vunpack.c.l.b16 %v422
  %v596 = vunpack.c.h.b16 %v422
  %v597 = vunpack.c.l.b16 %v423
  %v598 = vunpack.c.h.b16 %v423
  %v599 = vunpack.c.l.b16 %v424
  %v600 = vunpack.c.h.b16 %v424
  %v601 = vunpack.c.l.b16 %v425
  %v602 = vunpack.c.h.b16 %v425
  %v603 = vpack.c.b16 %v543, %v539
  %v604 = vpack.c.b16 %v544, %v540
  %v605 = vpack.c.b16 %v545, %v541
  %v606 = vpack.c.b16 %v546, %v542
  %v607 = vpack.c.b16 %v551, %v547
  %v608 = vpack.c.b16 %v552, %v548
  %v609 = vpack.c.b16 %v553, %v549
  %v610 = vpack.c.b16 %v554, %v550
  %v611 = vpack.c.b16 %v559, %v555
  %v612 = vpack.c.b16 %v560, %v556
  %v613 = vpack.c.b16 %v561, %v557
  %v614 = vpack.c.b16 %v562, %v558
  %v615 = vpack.c.b16 %v567, %v563
  %v616 = vpack.c.b16 %v568, %v564
  %v617 = vpack.c.b16 %v569, %v565
  %v618 = vpack.c.b16 %v570, %v566
  %v619 = vpack.c.b16 %v575, %v571
  %v620 = vpack.c.b16 %v576, %v572
  %v621 = vpack.c.b16 %v577, %v573
  %v622 = vpack.c.b16 %v578, %v574
  %v623 = vpack.c.b16 %v583, %v579
  %v624 = vpack.c.b16 %v584, %v580
  %v625 = vpack.c.b16 %v585, %v581
  %v626 = vpack.c.b16 %v586, %v582
  %v627 = vpack.c.b16 %v591, %v587
  %v628 = vpack.c.b16 %v592, %v588
  %v629 = vpack.c.b16 %v593, %v589
  %v630 = vpack.c.b16 %v594, %v590
  %v631 = vpack.c.b16 %v599, %v595
  %v632 = vpack.c.b16 %v600, %v596
  %v633 = vpack.c.b16 %v601, %v597
  %v634 = vpack.c.b16 %v602, %v598
  %667 = vmatpush.bf16.msra.mxu0 %v631
  %668 = vmatpush.bf16.msra.mxu0 %v627
  %669 = vmatpush.bf16.msra.mxu0 %v623
  %670 = vmatpush.bf16.msra.mxu0 %v619
  %671 = vmatpush.bf16.msra.mxu0 %v615
  %672 = vmatpush.bf16.msra.mxu0 %v611
  %673 = vmatpush.bf16.msra.mxu0 %v607
  %674 = vmatpush.bf16.msra.mxu0 %v603
  %675 = vmatmul.bf16.gmra.mxu0 0
  %v676 = vpop.f32.mrf.mxu0
  %v677 = vadd.f32 0.0, %v676
  %v678 = vpop.f32.mrf.mxu0
  %679 = vdwg.mxu0
  %680 = vmatpush.bf16.msra.mxu0 %v632
  %681 = vmatpush.bf16.msra.mxu0 %v628
  %682 = vmatpush.bf16.msra.mxu0 %v624
  %683 = vmatpush.bf16.msra.mxu0 %v620
  %684 = vmatpush.bf16.msra.mxu0 %v616
  %685 = vmatpush.bf16.msra.mxu0 %v612
  %686 = vmatpush.bf16.msra.mxu0 %v608
  %687 = vmatpush.bf16.msra.mxu0 %v604
  %688 = vmatmul.bf16.gmra.mxu0 0
  %v689 = vpop.f32.mrf.mxu0
  %v690 = vadd.f32 0.0, %v689
  %v691 = vpop.f32.mrf.mxu0
  %692 = vdwg.mxu0
  %693 = vmatpush.bf16.msra.mxu0 %v633
  %694 = vmatpush.bf16.msra.mxu0 %v629
  %695 = vmatpush.bf16.msra.mxu0 %v625
  %696 = vmatpush.bf16.msra.mxu0 %v621
  %697 = vmatpush.bf16.msra.mxu0 %v617
  %698 = vmatpush.bf16.msra.mxu0 %v613
  %699 = vmatpush.bf16.msra.mxu0 %v609
  %700 = vmatpush.bf16.msra.mxu0 %v605
  %701 = vmatmul.bf16.gmra.mxu0 0
  %v702 = vpop.f32.mrf.mxu0
  %v703 = vadd.f32 0.0, %v702
  %v704 = vpop.f32.mrf.mxu0
  %705 = vdwg.mxu0
  %706 = vmatpush.bf16.msra.mxu0 %v634
  %707 = vmatpush.bf16.msra.mxu0 %v630
  %708 = vmatpush.bf16.msra.mxu0 %v626
  %709 = vmatpush.bf16.msra.mxu0 %v622
  %710 = vmatpush.bf16.msra.mxu0 %v618
  %711 = vmatpush.bf16.msra.mxu0 %v614
  %712 = vmatpush.bf16.msra.mxu0 %v610
  %713 = vmatpush.bf16.msra.mxu0 %v606
  %714 = vmatmul.bf16.gmra.mxu0 0
  %v715 = vpop.f32.mrf.mxu0
  %v716 = vadd.f32 0.0, %v715
  %v717 = vpop.f32.mrf.mxu0
  %718 = vdwg.mxu0
  %v719 = vadd.f32 %v503, %v677
  %v720 = vadd.f32 %v504, %v690
  %v721 = vadd.f32 %v505, %v703
  %v722 = vadd.f32 %v506, %v716
  %v723 = vxor.u32 %v719, 2147483648
  %v724 = vmul.f32 %v723, 1.442695
  %v725 = vpow.pop %v724
  %v726 = vadd.f32 %v725, 1.0
  %v727 = vrcp.pop %v726
  %v728 = vmul.f32 %v726, %v727
  %v729 = vsub.f32 1.0, %v728
  %v730 = vmul.f32 %v727, %v729
  %v731 = vadd.f32 %v727, %v730
  %vm732 = vweird.f32 %v726
  %vm733 = vweird.f32 %v727
  %vm734 = vmor %vm732, %vm733
  %v735 = vsel %vm734, %v727, %v731
  %v736 = vand.u32 2147483647, %v726
  %vm737 = vcmp.eq.f32.partialorder %v736, 8.507059e+37
  %v738 = vand.u32 %v726, 2147483648
  %v739 = vor.u32 1.1754944e-38, %v738
  %v740 = vsel %vm737, %v739, %v735
  %v741 = vmul.f32 1.0, %v740
  %v742 = vxor.u32 %v720, 2147483648
  %v743 = vmul.f32 %v742, 1.442695
  %v744 = vpow.pop %v743
  %v745 = vadd.f32 %v744, 1.0
  %v746 = vrcp.pop %v745
  %v747 = vmul.f32 %v745, %v746
  %v748 = vsub.f32 1.0, %v747
  %v749 = vmul.f32 %v746, %v748
  %v750 = vadd.f32 %v746, %v749
  %vm751 = vweird.f32 %v745
  %vm752 = vweird.f32 %v746
  %vm753 = vmor %vm751, %vm752
  %v754 = vsel %vm753, %v746, %v750
  %v755 = vand.u32 2147483647, %v745
  %vm756 = vcmp.eq.f32.partialorder %v755, 8.507059e+37
  %v757 = vand.u32 %v745, 2147483648
  %v758 = vor.u32 1.1754944e-38, %v757
  %v759 = vsel %vm756, %v758, %v754
  %v760 = vmul.f32 1.0, %v759
  %v761 = vtanh.pop %v721
  %v762 = vxor.u32 %v722, 2147483648
  %v763 = vmul.f32 %v762, 1.442695
  %v764 = vpow.pop %v763
  %v765 = vadd.f32 %v764, 1.0
  %v766 = vrcp.pop %v765
  %v767 = vmul.f32 %v765, %v766
  %v768 = vsub.f32 1.0, %v767
  %v769 = vmul.f32 %v766, %v768
  %v770 = vadd.f32 %v766, %v769
  %vm771 = vweird.f32 %v765
  %vm772 = vweird.f32 %v766
  %vm773 = vmor %vm771, %vm772
  %v774 = vsel %vm773, %v766, %v770
  %v775 = vand.u32 2147483647, %v765
  %vm776 = vcmp.eq.f32.partialorder %v775, 8.507059e+37
  %v777 = vand.u32 %v765, 2147483648
  %v778 = vor.u32 1.1754944e-38, %v777
  %v779 = vsel %vm776, %v778, %v774
  %v780 = vmul.f32 1.0, %v779
  %v781 = vmul.f32 %v760, 0.0
  %v782 = vmul.f32 %v741, %v761
  %v783 = vadd.f32 %v781, %v782
  %v784 = vtanh.pop %v783
  %v785 = vmul.f32 %v780, %v784
  %v786 = vpack.c.bf16 %v785, %v785
  %v787 = vpack.c.bf16 0.0, 0.0
  %v852 = vunpack.c.l.b16 %v426
  %v853 = vunpack.c.h.b16 %v426
  %v854 = vunpack.c.l.b16 %v427
  %v855 = vunpack.c.h.b16 %v427
  %v856 = vunpack.c.l.b16 %v428
  %v857 = vunpack.c.h.b16 %v428
  %v858 = vunpack.c.l.b16 %v429
  %v859 = vunpack.c.h.b16 %v429
  %v860 = vunpack.c.l.b16 %v430
  %v861 = vunpack.c.h.b16 %v430
  %v862 = vunpack.c.l.b16 %v431
  %v863 = vunpack.c.h.b16 %v431
  %v864 = vunpack.c.l.b16 %v432
  %v865 = vunpack.c.h.b16 %v432
  %v866 = vunpack.c.l.b16 %v433
  %v867 = vunpack.c.h.b16 %v433
  %v868 = vunpack.c.l.b16 %v434
  %v869 = vunpack.c.h.b16 %v434
  %v870 = vunpack.c.l.b16 %v435
  %v871 = vunpack.c.h.b16 %v435
  %v872 = vunpack.c.l.b16 %v436
  %v873 = vunpack.c.h.b16 %v436
  %v874 = vunpack.c.l.b16 %v437
  %v875 = vunpack.c.h.b16 %v437
  %v876 = vunpack.c.l.b16 %v438
  %v877 = vunpack.c.h.b16 %v438
  %v878 = vunpack.c.l.b16 %v439
  %v879 = vunpack.c.h.b16 %v439
  %v880 = vunpack.c.l.b16 %v440
  %v881 = vunpack.c.h.b16 %v440
  %v882 = vunpack.c.l.b16 %v441
  %v883 = vunpack.c.h.b16 %v441
  %v884 = vunpack.c.l.b16 %v442
  %v885 = vunpack.c.h.b16 %v442
  %v886 = vunpack.c.l.b16 %v443
  %v887 = vunpack.c.h.b16 %v443
  %v888 = vunpack.c.l.b16 %v444
  %v889 = vunpack.c.h.b16 %v444
  %v890 = vunpack.c.l.b16 %v445
  %v891 = vunpack.c.h.b16 %v445
  %v892 = vunpack.c.l.b16 %v446
  %v893 = vunpack.c.h.b16 %v446
  %v894 = vunpack.c.l.b16 %v447
  %v895 = vunpack.c.h.b16 %v447
  %v896 = vunpack.c.l.b16 %v448
  %v897 = vunpack.c.h.b16 %v448
  %v898 = vunpack.c.l.b16 %v449
  %v899 = vunpack.c.h.b16 %v449
  %v900 = vunpack.c.l.b16 %v450
  %v901 = vunpack.c.h.b16 %v450
  %v902 = vunpack.c.l.b16 %v451
  %v903 = vunpack.c.h.b16 %v451
  %v904 = vunpack.c.l.b16 %v452
  %v905 = vunpack.c.h.b16 %v452
  %v906 = vunpack.c.l.b16 %v453
  %v907 = vunpack.c.h.b16 %v453
  %v908 = vunpack.c.l.b16 %v454
  %v909 = vunpack.c.h.b16 %v454
  %v910 = vunpack.c.l.b16 %v455
  %v911 = vunpack.c.h.b16 %v455
  %v912 = vunpack.c.l.b16 %v456
  %v913 = vunpack.c.h.b16 %v456
  %v914 = vunpack.c.l.b16 %v457
  %v915 = vunpack.c.h.b16 %v457
  %v916 = vunpack.c.l.b16 %v458
  %v917 = vunpack.c.h.b16 %v458
  %v918 = vunpack.c.l.b16 %v459
  %v919 = vunpack.c.h.b16 %v459
  %v920 = vunpack.c.l.b16 %v460
  %v921 = vunpack.c.h.b16 %v460
  %v922 = vunpack.c.l.b16 %v461
  %v923 = vunpack.c.h.b16 %v461
  %v924 = vunpack.c.l.b16 %v462
  %v925 = vunpack.c.h.b16 %v462
  %v926 = vunpack.c.l.b16 %v463
  %v927 = vunpack.c.h.b16 %v463
  %v928 = vunpack.c.l.b16 %v464
  %v929 = vunpack.c.h.b16 %v464
  %v930 = vunpack.c.l.b16 %v465
  %v931 = vunpack.c.h.b16 %v465
  %v932 = vunpack.c.l.b16 %v466
  %v933 = vunpack.c.h.b16 %v466
  %v934 = vunpack.c.l.b16 %v467
  %v935 = vunpack.c.h.b16 %v467
  %v936 = vunpack.c.l.b16 %v468
  %v937 = vunpack.c.h.b16 %v468
  %v938 = vunpack.c.l.b16 %v469
  %v939 = vunpack.c.h.b16 %v469
  %v940 = vunpack.c.l.b16 %v470
  %v941 = vunpack.c.h.b16 %v470
  %v942 = vunpack.c.l.b16 %v471
  %v943 = vunpack.c.h.b16 %v471
  %v944 = vunpack.c.l.b16 %v472
  %v945 = vunpack.c.h.b16 %v472
  %v946 = vunpack.c.l.b16 %v473
  %v947 = vunpack.c.h.b16 %v473
  %v948 = vunpack.c.l.b16 %v474
  %v949 = vunpack.c.h.b16 %v474
  %v950 = vunpack.c.l.b16 %v475
  %v951 = vunpack.c.h.b16 %v475
  %v952 = vunpack.c.l.b16 %v476
  %v953 = vunpack.c.h.b16 %v476
  %v954 = vunpack.c.l.b16 %v477
  %v955 = vunpack.c.h.b16 %v477
  %v956 = vunpack.c.l.b16 %v478
  %v957 = vunpack.c.h.b16 %v478
  %v958 = vunpack.c.l.b16 %v479
  %v959 = vunpack.c.h.b16 %v479
  %v960 = vunpack.c.l.b16 %v480
  %v961 = vunpack.c.h.b16 %v480
  %v962 = vunpack.c.l.b16 %v481
  %v963 = vunpack.c.h.b16 %v481
  %v964 = vunpack.c.l.b16 %v482
  %v965 = vunpack.c.h.b16 %v482
  %v966 = vunpack.c.l.b16 %v483
  %v967 = vunpack.c.h.b16 %v483
  %v968 = vunpack.c.l.b16 %v484
  %v969 = vunpack.c.h.b16 %v484
  %v970 = vunpack.c.l.b16 %v485
  %v971 = vunpack.c.h.b16 %v485
  %v972 = vunpack.c.l.b16 %v486
  %v973 = vunpack.c.h.b16 %v486
  %v974 = vunpack.c.l.b16 %v487
  %v975 = vunpack.c.h.b16 %v487
  %v976 = vunpack.c.l.b16 %v488
  %v977 = vunpack.c.h.b16 %v488
  %v978 = vunpack.c.l.b16 %v489
  %v979 = vunpack.c.h.b16 %v489
  %v980 = vpack.c.b16 %v856, %v852
  %v981 = vpack.c.b16 %v857, %v853
  %v982 = vpack.c.b16 %v858, %v854
  %v983 = vpack.c.b16 %v859, %v855
  %v984 = vpack.c.b16 %v864, %v860
  %v985 = vpack.c.b16 %v865, %v861
  %v986 = vpack.c.b16 %v866, %v862
  %v987 = vpack.c.b16 %v867, %v863
  %v988 = vpack.c.b16 %v872, %v868
  %v989 = vpack.c.b16 %v873, %v869
  %v990 = vpack.c.b16 %v874, %v870
  %v991 = vpack.c.b16 %v875, %v871
  %v992 = vpack.c.b16 %v880, %v876
  %v993 = vpack.c.b16 %v881, %v877
  %v994 = vpack.c.b16 %v882, %v878
  %v995 = vpack.c.b16 %v883, %v879
  %v996 = vpack.c.b16 %v888, %v884
  %v997 = vpack.c.b16 %v889, %v885
  %v998 = vpack.c.b16 %v890, %v886
  %v999 = vpack.c.b16 %v891, %v887
  %v1000 = vpack.c.b16 %v896, %v892
  %v1001 = vpack.c.b16 %v897, %v893
  %v1002 = vpack.c.b16 %v898, %v894
  %v1003 = vpack.c.b16 %v899, %v895
  %v1004 = vpack.c.b16 %v904, %v900
  %v1005 = vpack.c.b16 %v905, %v901
  %v1006 = vpack.c.b16 %v906, %v902
  %v1007 = vpack.c.b16 %v907, %v903
  %v1008 = vpack.c.b16 %v912, %v908
  %v1009 = vpack.c.b16 %v913, %v909
  %v1010 = vpack.c.b16 %v914, %v910
  %v1011 = vpack.c.b16 %v915, %v911
  %v1012 = vpack.c.b16 %v920, %v916
  %v1013 = vpack.c.b16 %v921, %v917
  %v1014 = vpack.c.b16 %v922, %v918
  %v1015 = vpack.c.b16 %v923, %v919
  %v1016 = vpack.c.b16 %v928, %v924
  %v1017 = vpack.c.b16 %v929, %v925
  %v1018 = vpack.c.b16 %v930, %v926
  %v1019 = vpack.c.b16 %v931, %v927
  %v1020 = vpack.c.b16 %v936, %v932
  %v1021 = vpack.c.b16 %v937, %v933
  %v1022 = vpack.c.b16 %v938, %v934
  %v1023 = vpack.c.b16 %v939, %v935
  %v1024 = vpack.c.b16 %v944, %v940
  %v1025 = vpack.c.b16 %v945, %v941
  %v1026 = vpack.c.b16 %v946, %v942
  %v1027 = vpack.c.b16 %v947, %v943
  %v1028 = vpack.c.b16 %v952, %v948
  %v1029 = vpack.c.b16 %v953, %v949
  %v1030 = vpack.c.b16 %v954, %v950
  %v1031 = vpack.c.b16 %v955, %v951
  %v1032 = vpack.c.b16 %v960, %v956
  %v1033 = vpack.c.b16 %v961, %v957
  %v1034 = vpack.c.b16 %v962, %v958
  %v1035 = vpack.c.b16 %v963, %v959
  %v1036 = vpack.c.b16 %v968, %v964
  %v1037 = vpack.c.b16 %v969, %v965
  %v1038 = vpack.c.b16 %v970, %v966
  %v1039 = vpack.c.b16 %v971, %v967
  %v1040 = vpack.c.b16 %v976, %v972
  %v1041 = vpack.c.b16 %v977, %v973
  %v1042 = vpack.c.b16 %v978, %v974
  %v1043 = vpack.c.b16 %v979, %v975
  %1108 = vmatpush.bf16.msra.mxu0 %v1008
  %1109 = vmatpush.bf16.msra.mxu0 %v1004
  %1110 = vmatpush.bf16.msra.mxu0 %v1000
  %1111 = vmatpush.bf16.msra.mxu0 %v996
  %1112 = vmatpush.bf16.msra.mxu0 %v992
  %1113 = vmatpush.bf16.msra.mxu0 %v988
  %1114 = vmatpush.bf16.msra.mxu0 %v984
  %1115 = vmatpush.bf16.msra.mxu0 %v980
  %1116 = vmatmul.bf16.gmra.mxu0 %v786
  %v1117 = vpop.f32.mrf.mxu0
  %v1118 = vadd.f32 %v492, %v1117
  %v1119 = vpop.f32.mrf.mxu0
  %1120 = vdwg.mxu0
  %1121 = vmatpush.bf16.msra.mxu0 %v1040
  %1122 = vmatpush.bf16.msra.mxu0 %v1036
  %1123 = vmatpush.bf16.msra.mxu0 %v1032
  %1124 = vmatpush.bf16.msra.mxu0 %v1028
  %1125 = vmatpush.bf16.msra.mxu0 %v1024
  %1126 = vmatpush.bf16.msra.mxu0 %v1020
  %1127 = vmatpush.bf16.msra.mxu0 %v1016
  %1128 = vmatpush.bf16.msra.mxu0 %v1012
  %1129 = vmatmul.bf16.gmra.mxu0 %v787
  %v1130 = vpop.f32.mrf.mxu0
  %v1131 = vadd.f32 %v1118, %v1130
  %v1132 = vpop.f32.mrf.mxu0
  %1133 = vdwg.mxu0
  %1134 = vmatpush.bf16.msra.mxu0 %v1009
  %1135 = vmatpush.bf16.msra.mxu0 %v1005
  %1136 = vmatpush.bf16.msra.mxu0 %v1001
  %1137 = vmatpush.bf16.msra.mxu0 %v997
  %1138 = vmatpush.bf16.msra.mxu0 %v993
  %1139 = vmatpush.bf16.msra.mxu0 %v989
  %1140 = vmatpush.bf16.msra.mxu0 %v985
  %1141 = vmatpush.bf16.msra.mxu0 %v981
  %1142 = vmatmul.bf16.gmra.mxu0 %v786
  %v1143 = vpop.f32.mrf.mxu0
  %v1144 = vadd.f32 %v493, %v1143
  %v1145 = vpop.f32.mrf.mxu0
  %1146 = vdwg.mxu0
  %1147 = vmatpush.bf16.msra.mxu0 %v1041
  %1148 = vmatpush.bf16.msra.mxu0 %v1037
  %1149 = vmatpush.bf16.msra.mxu0 %v1033
  %1150 = vmatpush.bf16.msra.mxu0 %v1029
  %1151 = vmatpush.bf16.msra.mxu0 %v1025
  %1152 = vmatpush.bf16.msra.mxu0 %v1021
  %1153 = vmatpush.bf16.msra.mxu0 %v1017
  %1154 = vmatpush.bf16.msra.mxu0 %v1013
  %1155 = vmatmul.bf16.gmra.mxu0 %v787
  %v1156 = vpop.f32.mrf.mxu0
  %v1157 = vadd.f32 %v1144, %v1156
  %v1158 = vpop.f32.mrf.mxu0
  %1159 = vdwg.mxu0
  %1160 = vmatpush.bf16.msra.mxu0 %v1010
  %1161 = vmatpush.bf16.msra.mxu0 %v1006
  %1162 = vmatpush.bf16.msra.mxu0 %v1002
  %1163 = vmatpush.bf16.msra.mxu0 %v998
  %1164 = vmatpush.bf16.msra.mxu0 %v994
  %1165 = vmatpush.bf16.msra.mxu0 %v990
  %1166 = vmatpush.bf16.msra.mxu0 %v986
  %1167 = vmatpush.bf16.msra.mxu0 %v982
  %1168 = vmatmul.bf16.gmra.mxu0 %v786
  %v1169 = vpop.f32.mrf.mxu0
  %v1170 = vadd.f32 %v494, %v1169
  %v1171 = vpop.f32.mrf.mxu0
  %1172 = vdwg.mxu0
  %1173 = vmatpush.bf16.msra.mxu0 %v1042
  %1174 = vmatpush.bf16.msra.mxu0 %v1038
  %1175 = vmatpush.bf16.msra.mxu0 %v1034
  %1176 = vmatpush.bf16.msra.mxu0 %v1030
  %1177 = vmatpush.bf16.msra.mxu0 %v1026
  %1178 = vmatpush.bf16.msra.mxu0 %v1022
  %1179 = vmatpush.bf16.msra.mxu0 %v1018
  %1180 = vmatpush.bf16.msra.mxu0 %v1014
  %1181 = vmatmul.bf16.gmra.mxu0 %v787
  %v1182 = vpop.f32.mrf.mxu0
  %v1183 = vadd.f32 %v1170, %v1182
  %v1184 = vpop.f32.mrf.mxu0
  %1185 = vdwg.mxu0
  %1186 = vmatpush.bf16.msra.mxu0 %v1011
  %1187 = vmatpush.bf16.msra.mxu0 %v1007
  %1188 = vmatpush.bf16.msra.mxu0 %v1003
  %1189 = vmatpush.bf16.msra.mxu0 %v999
  %1190 = vmatpush.bf16.msra.mxu0 %v995
  %1191 = vmatpush.bf16.msra.mxu0 %v991
  %1192 = vmatpush.bf16.msra.mxu0 %v987
  %1193 = vmatpush.bf16.msra.mxu0 %v983
  %1194 = vmatmul.bf16.gmra.mxu0 %v786
  %v1195 = vpop.f32.mrf.mxu0
  %v1196 = vadd.f32 %v495, %v1195
  %v1197 = vpop.f32.mrf.mxu0
  %1198 = vdwg.mxu0
  %1199 = vmatpush.bf16.msra.mxu0 %v1043
  %1200 = vmatpush.bf16.msra.mxu0 %v1039
  %1201 = vmatpush.bf16.msra.mxu0 %v1035
  %1202 = vmatpush.bf16.msra.mxu0 %v1031
  %1203 = vmatpush.bf16.msra.mxu0 %v1027
  %1204 = vmatpush.bf16.msra.mxu0 %v1023
  %1205 = vmatpush.bf16.msra.mxu0 %v1019
  %1206 = vmatpush.bf16.msra.mxu0 %v1015
  %1207 = vmatmul.bf16.gmra.mxu0 %v787
  %v1208 = vpop.f32.mrf.mxu0
  %v1209 = vadd.f32 %v1196, %v1208
  %v1210 = vpop.f32.mrf.mxu0
  %1211 = vdwg.mxu0
  %v1212 = vxor.u32 %v1131, 2147483648
  %v1213 = vmul.f32 %v1212, 1.442695
  %v1214 = vpow.pop %v1213
  %v1215 = vadd.f32 %v1214, 1.0
  %v1216 = vrcp.pop %v1215
  %v1217 = vmul.f32 %v1215, %v1216
  %v1218 = vsub.f32 1.0, %v1217
  %v1219 = vmul.f32 %v1216, %v1218
  %v1220 = vadd.f32 %v1216, %v1219
  %vm1221 = vweird.f32 %v1215
  %vm1222 = vweird.f32 %v1216
  %vm1223 = vmor %vm1221, %vm1222
  %v1224 = vsel %vm1223, %v1216, %v1220
  %v1225 = vand.u32 2147483647, %v1215
  %vm1226 = vcmp.eq.f32.partialorder %v1225, 8.507059e+37
  %v1227 = vand.u32 %v1215, 2147483648
  %v1228 = vor.u32 1.1754944e-38, %v1227
  %v1229 = vsel %vm1226, %v1228, %v1224
  %v1230 = vmul.f32 1.0, %v1229
  %v1231 = vxor.u32 %v1157, 2147483648
  %v1232 = vmul.f32 %v1231, 1.442695
  %v1233 = vpow.pop %v1232
  %v1234 = vadd.f32 %v1233, 1.0
  %v1235 = vrcp.pop %v1234
  %v1236 = vmul.f32 %v1234, %v1235
  %v1237 = vsub.f32 1.0, %v1236
  %v1238 = vmul.f32 %v1235, %v1237
  %v1239 = vadd.f32 %v1235, %v1238
  %vm1240 = vweird.f32 %v1234
  %vm1241 = vweird.f32 %v1235
  %vm1242 = vmor %vm1240, %vm1241
  %v1243 = vsel %vm1242, %v1235, %v1239
  %v1244 = vand.u32 2147483647, %v1234
  %vm1245 = vcmp.eq.f32.partialorder %v1244, 8.507059e+37
  %v1246 = vand.u32 %v1234, 2147483648
  %v1247 = vor.u32 1.1754944e-38, %v1246
  %v1248 = vsel %vm1245, %v1247, %v1243
  %v1249 = vmul.f32 1.0, %v1248
  %v1250 = vtanh.pop %v1183
  %v1251 = vxor.u32 %v1209, 2147483648
  %v1252 = vmul.f32 %v1251, 1.442695
  %v1253 = vpow.pop %v1252
  %v1254 = vadd.f32 %v1253, 1.0
  %v1255 = vrcp.pop %v1254
  %v1256 = vmul.f32 %v1254, %v1255
  %v1257 = vsub.f32 1.0, %v1256
  %v1258 = vmul.f32 %v1255, %v1257
  %v1259 = vadd.f32 %v1255, %v1258
  %vm1260 = vweird.f32 %v1254
  %vm1261 = vweird.f32 %v1255
  %vm1262 = vmor %vm1260, %vm1261
  %v1263 = vsel %vm1262, %v1255, %v1259
  %v1264 = vand.u32 2147483647, %v1254
  %vm1265 = vcmp.eq.f32.partialorder %v1264, 8.507059e+37
  %v1266 = vand.u32 %v1254, 2147483648
  %v1267 = vor.u32 1.1754944e-38, %v1266
  %v1268 = vsel %vm1265, %v1267, %v1263
  %v1269 = vmul.f32 1.0, %v1268
  %v1270 = vmul.f32 %v1249, 0.0
  %v1271 = vmul.f32 %v1230, %v1250
  %v1272 = vadd.f32 %v1270, %v1271
  %v1273 = vtanh.pop %v1272
  %v1274 = vmul.f32 %v1269, %v1273
  %s1275 = smul.u32 1, 4
  %s1276 = smul.addr %s1275, 8
  %s1277 = scalar_lea.vmem [#allocation2], %s1276
  %v1278 = vld [vmem:[%s1277] sm:$0xff]
  %v1279 = vld [vmem:[%s1277 + $0x8] sm:$0xff]
  %v1280 = vld [vmem:[%s1277 + $0x10] sm:$0xff]
  %v1281 = vld [vmem:[%s1277 + $0x18] sm:$0xff]
  %1282 = vmatpush.bf16.msra.mxu0 %v631
  %1283 = vmatpush.bf16.msra.mxu0 %v627
  %1284 = vmatpush.bf16.msra.mxu0 %v623
  %1285 = vmatpush.bf16.msra.mxu0 %v619
  %1286 = vmatpush.bf16.msra.mxu0 %v615
  %1287 = vmatpush.bf16.msra.mxu0 %v611
  %1288 = vmatpush.bf16.msra.mxu0 %v607
  %1289 = vmatpush.bf16.msra.mxu0 %v603
  %1290 = vmatmul.bf16.gmra.mxu0 %v786
  %v1291 = vpop.f32.mrf.mxu0
  %v1292 = vadd.f32 0.0, %v1291
  %v1293 = vpop.f32.mrf.mxu0
  %1294 = vdwg.mxu0
  %1295 = vmatpush.bf16.msra.mxu0 %v632
  %1296 = vmatpush.bf16.msra.mxu0 %v628
  %1297 = vmatpush.bf16.msra.mxu0 %v624
  %1298 = vmatpush.bf16.msra.mxu0 %v620
  %1299 = vmatpush.bf16.msra.mxu0 %v616
  %1300 = vmatpush.bf16.msra.mxu0 %v612
  %1301 = vmatpush.bf16.msra.mxu0 %v608
  %1302 = vmatpush.bf16.msra.mxu0 %v604
  %1303 = vmatmul.bf16.gmra.mxu0 %v786
  %v1304 = vpop.f32.mrf.mxu0
  %v1305 = vadd.f32 0.0, %v1304
  %v1306 = vpop.f32.mrf.mxu0
  %1307 = vdwg.mxu0
  %1308 = vmatpush.bf16.msra.mxu0 %v633
  %1309 = vmatpush.bf16.msra.mxu0 %v629
  %1310 = vmatpush.bf16.msra.mxu0 %v625
  %1311 = vmatpush.bf16.msra.mxu0 %v621
  %1312 = vmatpush.bf16.msra.mxu0 %v617
  %1313 = vmatpush.bf16.msra.mxu0 %v613
  %1314 = vmatpush.bf16.msra.mxu0 %v609
  %1315 = vmatpush.bf16.msra.mxu0 %v605
  %1316 = vmatmul.bf16.gmra.mxu0 %v786
  %v1317 = vpop.f32.mrf.mxu0
  %v1318 = vadd.f32 0.0, %v1317
  %v1319 = vpop.f32.mrf.mxu0
  %1320 = vdwg.mxu0
  %1321 = vmatpush.bf16.msra.mxu0 %v634
  %1322 = vmatpush.bf16.msra.mxu0 %v630
  %1323 = vmatpush.bf16.msra.mxu0 %v626
  %1324 = vmatpush.bf16.msra.mxu0 %v622
  %1325 = vmatpush.bf16.msra.mxu0 %v618
  %1326 = vmatpush.bf16.msra.mxu0 %v614
  %1327 = vmatpush.bf16.msra.mxu0 %v610
  %1328 = vmatpush.bf16.msra.mxu0 %v606
  %1329 = vmatmul.bf16.gmra.mxu0 %v786
  %v1330 = vpop.f32.mrf.mxu0
  %v1331 = vadd.f32 0.0, %v1330
  %v1332 = vpop.f32.mrf.mxu0
  %1333 = vdwg.mxu0
  %v1334 = vadd.f32 %v1278, %v1292
  %v1335 = vadd.f32 %v1279, %v1305
  %v1336 = vadd.f32 %v1280, %v1318
  %v1337 = vadd.f32 %v1281, %v1331
  %v1338 = vxor.u32 %v1334, 2147483648
  %v1339 = vmul.f32 %v1338, 1.442695
  %v1340 = vpow.pop %v1339
  %v1341 = vadd.f32 %v1340, 1.0
  %v1342 = vrcp.pop %v1341
  %v1343 = vmul.f32 %v1341, %v1342
  %v1344 = vsub.f32 1.0, %v1343
  %v1345 = vmul.f32 %v1342, %v1344
  %v1346 = vadd.f32 %v1342, %v1345
  %vm1347 = vweird.f32 %v1341
  %vm1348 = vweird.f32 %v1342
  %vm1349 = vmor %vm1347, %vm1348
  %v1350 = vsel %vm1349, %v1342, %v1346
  %v1351 = vand.u32 2147483647, %v1341
  %vm1352 = vcmp.eq.f32.partialorder %v1351, 8.507059e+37
  %v1353 = vand.u32 %v1341, 2147483648
  %v1354 = vor.u32 1.1754944e-38, %v1353
  %v1355 = vsel %vm1352, %v1354, %v1350
  %v1356 = vmul.f32 1.0, %v1355
  %v1357 = vxor.u32 %v1335, 2147483648
  %v1358 = vmul.f32 %v1357, 1.442695
  %v1359 = vpow.pop %v1358
  %v1360 = vadd.f32 %v1359, 1.0
  %v1361 = vrcp.pop %v1360
  %v1362 = vmul.f32 %v1360, %v1361
  %v1363 = vsub.f32 1.0, %v1362
  %v1364 = vmul.f32 %v1361, %v1363
  %v1365 = vadd.f32 %v1361, %v1364
  %vm1366 = vweird.f32 %v1360
  %vm1367 = vweird.f32 %v1361
  %vm1368 = vmor %vm1366, %vm1367
  %v1369 = vsel %vm1368, %v1361, %v1365
  %v1370 = vand.u32 2147483647, %v1360
  %vm1371 = vcmp.eq.f32.partialorder %v1370, 8.507059e+37
  %v1372 = vand.u32 %v1360, 2147483648
  %v1373 = vor.u32 1.1754944e-38, %v1372
  %v1374 = vsel %vm1371, %v1373, %v1369
  %v1375 = vmul.f32 1.0, %v1374
  %v1376 = vtanh.pop %v1336
  %v1377 = vxor.u32 %v1337, 2147483648
  %v1378 = vmul.f32 %v1377, 1.442695
  %v1379 = vpow.pop %v1378
  %v1380 = vadd.f32 %v1379, 1.0
  %v1381 = vrcp.pop %v1380
  %v1382 = vmul.f32 %v1380, %v1381
  %v1383 = vsub.f32 1.0, %v1382
  %v1384 = vmul.f32 %v1381, %v1383
  %v1385 = vadd.f32 %v1381, %v1384
  %vm1386 = vweird.f32 %v1380
  %vm1387 = vweird.f32 %v1381
  %vm1388 = vmor %vm1386, %vm1387
  %v1389 = vsel %vm1388, %v1381, %v1385
  %v1390 = vand.u32 2147483647, %v1380
  %vm1391 = vcmp.eq.f32.partialorder %v1390, 8.507059e+37
  %v1392 = vand.u32 %v1380, 2147483648
  %v1393 = vor.u32 1.1754944e-38, %v1392
  %v1394 = vsel %vm1391, %v1393, %v1389
  %v1395 = vmul.f32 1.0, %v1394
  %v1396 = vmul.f32 %v1375, %v783
  %v1397 = vmul.f32 %v1356, %v1376
  %v1398 = vadd.f32 %v1396, %v1397
  %v1399 = vtanh.pop %v1398
  %v1400 = vmul.f32 %v1395, %v1399
  %v1401 = vpack.c.bf16 %v1400, %v1400
  %v1402 = vpack.c.bf16 %v1274, %v1274
  %1403 = vmatpush.bf16.msra.mxu0 %v1008
  %1404 = vmatpush.bf16.msra.mxu0 %v1004
  %1405 = vmatpush.bf16.msra.mxu0 %v1000
  %1406 = vmatpush.bf16.msra.mxu0 %v996
  %1407 = vmatpush.bf16.msra.mxu0 %v992
  %1408 = vmatpush.bf16.msra.mxu0 %v988
  %1409 = vmatpush.bf16.msra.mxu0 %v984
  %1410 = vmatpush.bf16.msra.mxu0 %v980
  %1411 = vmatmul.bf16.gmra.mxu0 %v1401
  %v1412 = vpop.f32.mrf.mxu0
  %v1413 = vadd.f32 %v492, %v1412
  %v1414 = vpop.f32.mrf.mxu0
  %1415 = vdwg.mxu0
  %1416 = vmatpush.bf16.msra.mxu0 %v1040
  %1417 = vmatpush.bf16.msra.mxu0 %v1036
  %1418 = vmatpush.bf16.msra.mxu0 %v1032
  %1419 = vmatpush.bf16.msra.mxu0 %v1028
  %1420 = vmatpush.bf16.msra.mxu0 %v1024
  %1421 = vmatpush.bf16.msra.mxu0 %v1020
  %1422 = vmatpush.bf16.msra.mxu0 %v1016
  %1423 = vmatpush.bf16.msra.mxu0 %v1012
  %1424 = vmatmul.bf16.gmra.mxu0 %v1402
  %v1425 = vpop.f32.mrf.mxu0
  %v1426 = vadd.f32 %v1413, %v1425
  %v1427 = vpop.f32.mrf.mxu0
  %1428 = vdwg.mxu0
  %1429 = vmatpush.bf16.msra.mxu0 %v1009
  %1430 = vmatpush.bf16.msra.mxu0 %v1005
  %1431 = vmatpush.bf16.msra.mxu0 %v1001
  %1432 = vmatpush.bf16.msra.mxu0 %v997
  %1433 = vmatpush.bf16.msra.mxu0 %v993
  %1434 = vmatpush.bf16.msra.mxu0 %v989
  %1435 = vmatpush.bf16.msra.mxu0 %v985
  %1436 = vmatpush.bf16.msra.mxu0 %v981
  %1437 = vmatmul.bf16.gmra.mxu0 %v1401
  %v1438 = vpop.f32.mrf.mxu0
  %v1439 = vadd.f32 %v493, %v1438
  %v1440 = vpop.f32.mrf.mxu0
  %1441 = vdwg.mxu0
  %1442 = vmatpush.bf16.msra.mxu0 %v1041
  %1443 = vmatpush.bf16.msra.mxu0 %v1037
  %1444 = vmatpush.bf16.msra.mxu0 %v1033
  %1445 = vmatpush.bf16.msra.mxu0 %v1029
  %1446 = vmatpush.bf16.msra.mxu0 %v1025
  %1447 = vmatpush.bf16.msra.mxu0 %v1021
  %1448 = vmatpush.bf16.msra.mxu0 %v1017
  %1449 = vmatpush.bf16.msra.mxu0 %v1013
  %1450 = vmatmul.bf16.gmra.mxu0 %v1402
  %v1451 = vpop.f32.mrf.mxu0
  %v1452 = vadd.f32 %v1439, %v1451
  %v1453 = vpop.f32.mrf.mxu0
  %1454 = vdwg.mxu0
  %1455 = vmatpush.bf16.msra.mxu0 %v1010
  %1456 = vmatpush.bf16.msra.mxu0 %v1006
  %1457 = vmatpush.bf16.msra.mxu0 %v1002
  %1458 = vmatpush.bf16.msra.mxu0 %v998
  %1459 = vmatpush.bf16.msra.mxu0 %v994
  %1460 = vmatpush.bf16.msra.mxu0 %v990
  %1461 = vmatpush.bf16.msra.mxu0 %v986
  %1462 = vmatpush.bf16.msra.mxu0 %v982
  %1463 = vmatmul.bf16.gmra.mxu0 %v1401
  %v1464 = vpop.f32.mrf.mxu0
  %v1465 = vadd.f32 %v494, %v1464
  %v1466 = vpop.f32.mrf.mxu0
  %1467 = vdwg.mxu0
  %1468 = vmatpush.bf16.msra.mxu0 %v1042
  %1469 = vmatpush.bf16.msra.mxu0 %v1038
  %1470 = vmatpush.bf16.msra.mxu0 %v1034
  %1471 = vmatpush.bf16.msra.mxu0 %v1030
  %1472 = vmatpush.bf16.msra.mxu0 %v1026
  %1473 = vmatpush.bf16.msra.mxu0 %v1022
  %1474 = vmatpush.bf16.msra.mxu0 %v1018
  %1475 = vmatpush.bf16.msra.mxu0 %v1014
  %1476 = vmatmul.bf16.gmra.mxu0 %v1402
  %v1477 = vpop.f32.mrf.mxu0
  %v1478 = vadd.f32 %v1465, %v1477
  %v1479 = vpop.f32.mrf.mxu0
  %1480 = vdwg.mxu0
  %1481 = vmatpush.bf16.msra.mxu0 %v1011
  %1482 = vmatpush.bf16.msra.mxu0 %v1007
  %1483 = vmatpush.bf16.msra.mxu0 %v1003
  %1484 = vmatpush.bf16.msra.mxu0 %v999
  %1485 = vmatpush.bf16.msra.mxu0 %v995
  %1486 = vmatpush.bf16.msra.mxu0 %v991
  %1487 = vmatpush.bf16.msra.mxu0 %v987
  %1488 = vmatpush.bf16.msra.mxu0 %v983
  %1489 = vmatmul.bf16.gmra.mxu0 %v1401
  %v1490 = vpop.f32.mrf.mxu0
  %v1491 = vadd.f32 %v495, %v1490
  %v1492 = vpop.f32.mrf.mxu0
  %1493 = vdwg.mxu0
  %1494 = vmatpush.bf16.msra.mxu0 %v1043
  %1495 = vmatpush.bf16.msra.mxu0 %v1039
  %1496 = vmatpush.bf16.msra.mxu0 %v1035
  %1497 = vmatpush.bf16.msra.mxu0 %v1031
  %1498 = vmatpush.bf16.msra.mxu0 %v1027
  %1499 = vmatpush.bf16.msra.mxu0 %v1023
  %1500 = vmatpush.bf16.msra.mxu0 %v1019
  %1501 = vmatpush.bf16.msra.mxu0 %v1015
  %1502 = vmatmul.bf16.gmra.mxu0 %v1402
  %v1503 = vpop.f32.mrf.mxu0
  %v1504 = vadd.f32 %v1491, %v1503
  %v1505 = vpop.f32.mrf.mxu0
  %1506 = vdwg.mxu0
  %v1507 = vxor.u32 %v1426, 2147483648
  %v1508 = vmul.f32 %v1507, 1.442695
  %v1509 = vpow.pop %v1508
  %v1510 = vadd.f32 %v1509, 1.0
  %v1511 = vrcp.pop %v1510
  %v1512 = vmul.f32 %v1510, %v1511
  %v1513 = vsub.f32 1.0, %v1512
  %v1514 = vmul.f32 %v1511, %v1513
  %v1515 = vadd.f32 %v1511, %v1514
  %vm1516 = vweird.f32 %v1510
  %vm1517 = vweird.f32 %v1511
  %vm1518 = vmor %vm1516, %vm1517
  %v1519 = vsel %vm1518, %v1511, %v1515
  %v1520 = vand.u32 2147483647, %v1510
  %vm1521 = vcmp.eq.f32.partialorder %v1520, 8.507059e+37
  %v1522 = vand.u32 %v1510, 2147483648
  %v1523 = vor.u32 1.1754944e-38, %v1522
  %v1524 = vsel %vm1521, %v1523, %v1519
  %v1525 = vmul.f32 1.0, %v1524
  %v1526 = vxor.u32 %v1452, 2147483648
  %v1527 = vmul.f32 %v1526, 1.442695
  %v1528 = vpow.pop %v1527
  %v1529 = vadd.f32 %v1528, 1.0
  %v1530 = vrcp.pop %v1529
  %v1531 = vmul.f32 %v1529, %v1530
  %v1532 = vsub.f32 1.0, %v1531
  %v1533 = vmul.f32 %v1530, %v1532
  %v1534 = vadd.f32 %v1530, %v1533
  %vm1535 = vweird.f32 %v1529
  %vm1536 = vweird.f32 %v1530
  %vm1537 = vmor %vm1535, %vm1536
  %v1538 = vsel %vm1537, %v1530, %v1534
  %v1539 = vand.u32 2147483647, %v1529
  %vm1540 = vcmp.eq.f32.partialorder %v1539, 8.507059e+37
  %v1541 = vand.u32 %v1529, 2147483648
  %v1542 = vor.u32 1.1754944e-38, %v1541
  %v1543 = vsel %vm1540, %v1542, %v1538
  %v1544 = vmul.f32 1.0, %v1543
  %v1545 = vtanh.pop %v1478
  %v1546 = vxor.u32 %v1504, 2147483648
  %v1547 = vmul.f32 %v1546, 1.442695
  %v1548 = vpow.pop %v1547
  %v1549 = vadd.f32 %v1548, 1.0
  %v1550 = vrcp.pop %v1549
  %v1551 = vmul.f32 %v1549, %v1550
  %v1552 = vsub.f32 1.0, %v1551
  %v1553 = vmul.f32 %v1550, %v1552
  %v1554 = vadd.f32 %v1550, %v1553
  %vm1555 = vweird.f32 %v1549
  %vm1556 = vweird.f32 %v1550
  %vm1557 = vmor %vm1555, %vm1556
  %v1558 = vsel %vm1557, %v1550, %v1554
  %v1559 = vand.u32 2147483647, %v1549
  %vm1560 = vcmp.eq.f32.partialorder %v1559, 8.507059e+37
  %v1561 = vand.u32 %v1549, 2147483648
  %v1562 = vor.u32 1.1754944e-38, %v1561
  %v1563 = vsel %vm1560, %v1562, %v1558
  %v1564 = vmul.f32 1.0, %v1563
  %v1565 = vmul.f32 %v1544, %v1272
  %v1566 = vmul.f32 %v1525, %v1545
  %v1567 = vadd.f32 %v1565, %v1566
  %v1568 = vtanh.pop %v1567
  %v1569 = vmul.f32 %v1564, %v1568
  %s1570 = smul.u32 2, 4
  %s1571 = smul.addr %s1570, 8
  %s1572 = scalar_lea.vmem [#allocation2], %s1571
  %v1573 = vld [vmem:[%s1572] sm:$0xff]
  %v1574 = vld [vmem:[%s1572 + $0x8] sm:$0xff]
  %v1575 = vld [vmem:[%s1572 + $0x10] sm:$0xff]
  %v1576 = vld [vmem:[%s1572 + $0x18] sm:$0xff]
  %1577 = vmatpush.bf16.msra.mxu0 %v631
  %1578 = vmatpush.bf16.msra.mxu0 %v627
  %1579 = vmatpush.bf16.msra.mxu0 %v623
  %1580 = vmatpush.bf16.msra.mxu0 %v619
  %1581 = vmatpush.bf16.msra.mxu0 %v615
  %1582 = vmatpush.bf16.msra.mxu0 %v611
  %1583 = vmatpush.bf16.msra.mxu0 %v607
  %1584 = vmatpush.bf16.msra.mxu0 %v603
  %1585 = vmatmul.bf16.gmra.mxu0 %v1401
  %v1586 = vpop.f32.mrf.mxu0
  %v1587 = vadd.f32 0.0, %v1586
  %v1588 = vpop.f32.mrf.mxu0
  %1589 = vdwg.mxu0
  %1590 = vmatpush.bf16.msra.mxu0 %v632
  %1591 = vmatpush.bf16.msra.mxu0 %v628
  %1592 = vmatpush.bf16.msra.mxu0 %v624
  %1593 = vmatpush.bf16.msra.mxu0 %v620
  %1594 = vmatpush.bf16.msra.mxu0 %v616
  %1595 = vmatpush.bf16.msra.mxu0 %v612
  %1596 = vmatpush.bf16.msra.mxu0 %v608
  %1597 = vmatpush.bf16.msra.mxu0 %v604
  %1598 = vmatmul.bf16.gmra.mxu0 %v1401
  %v1599 = vpop.f32.mrf.mxu0
  %v1600 = vadd.f32 0.0, %v1599
  %v1601 = vpop.f32.mrf.mxu0
  %1602 = vdwg.mxu0
  %1603 = vmatpush.bf16.msra.mxu0 %v633
  %1604 = vmatpush.bf16.msra.mxu0 %v629
  %1605 = vmatpush.bf16.msra.mxu0 %v625
  %1606 = vmatpush.bf16.msra.mxu0 %v621
  %1607 = vmatpush.bf16.msra.mxu0 %v617
  %1608 = vmatpush.bf16.msra.mxu0 %v613
  %1609 = vmatpush.bf16.msra.mxu0 %v609
  %1610 = vmatpush.bf16.msra.mxu0 %v605
  %1611 = vmatmul.bf16.gmra.mxu0 %v1401
  %v1612 = vpop.f32.mrf.mxu0
  %v1613 = vadd.f32 0.0, %v1612
  %v1614 = vpop.f32.mrf.mxu0
  %1615 = vdwg.mxu0
  %1616 = vmatpush.bf16.msra.mxu0 %v634
  %1617 = vmatpush.bf16.msra.mxu0 %v630
  %1618 = vmatpush.bf16.msra.mxu0 %v626
  %1619 = vmatpush.bf16.msra.mxu0 %v622
  %1620 = vmatpush.bf16.msra.mxu0 %v618
  %1621 = vmatpush.bf16.msra.mxu0 %v614
  %1622 = vmatpush.bf16.msra.mxu0 %v610
  %1623 = vmatpush.bf16.msra.mxu0 %v606
  %1624 = vmatmul.bf16.gmra.mxu0 %v1401
  %v1625 = vpop.f32.mrf.mxu0
  %v1626 = vadd.f32 0.0, %v1625
  %v1627 = vpop.f32.mrf.mxu0
  %1628 = vdwg.mxu0
  %v1629 = vadd.f32 %v1573, %v1587
  %v1630 = vadd.f32 %v1574, %v1600
  %v1631 = vadd.f32 %v1575, %v1613
  %v1632 = vadd.f32 %v1576, %v1626
  %v1633 = vxor.u32 %v1629, 2147483648
  %v1634 = vmul.f32 %v1633, 1.442695
  %v1635 = vpow.pop %v1634
  %v1636 = vadd.f32 %v1635, 1.0
  %v1637 = vrcp.pop %v1636
  %v1638 = vmul.f32 %v1636, %v1637
  %v1639 = vsub.f32 1.0, %v1638
  %v1640 = vmul.f32 %v1637, %v1639
  %v1641 = vadd.f32 %v1637, %v1640
  %vm1642 = vweird.f32 %v1636
  %vm1643 = vweird.f32 %v1637
  %vm1644 = vmor %vm1642, %vm1643
  %v1645 = vsel %vm1644, %v1637, %v1641
  %v1646 = vand.u32 2147483647, %v1636
  %vm1647 = vcmp.eq.f32.partialorder %v1646, 8.507059e+37
  %v1648 = vand.u32 %v1636, 2147483648
  %v1649 = vor.u32 1.1754944e-38, %v1648
  %v1650 = vsel %vm1647, %v1649, %v1645
  %v1651 = vmul.f32 1.0, %v1650
  %v1652 = vxor.u32 %v1630, 2147483648
  %v1653 = vmul.f32 %v1652, 1.442695
  %v1654 = vpow.pop %v1653
  %v1655 = vadd.f32 %v1654, 1.0
  %v1656 = vrcp.pop %v1655
  %v1657 = vmul.f32 %v1655, %v1656
  %v1658 = vsub.f32 1.0, %v1657
  %v1659 = vmul.f32 %v1656, %v1658
  %v1660 = vadd.f32 %v1656, %v1659
  %vm1661 = vweird.f32 %v1655
  %vm1662 = vweird.f32 %v1656
  %vm1663 = vmor %vm1661, %vm1662
  %v1664 = vsel %vm1663, %v1656, %v1660
  %v1665 = vand.u32 2147483647, %v1655
  %vm1666 = vcmp.eq.f32.partialorder %v1665, 8.507059e+37
  %v1667 = vand.u32 %v1655, 2147483648
  %v1668 = vor.u32 1.1754944e-38, %v1667
  %v1669 = vsel %vm1666, %v1668, %v1664
  %v1670 = vmul.f32 1.0, %v1669
  %v1671 = vtanh.pop %v1631
  %v1672 = vxor.u32 %v1632, 2147483648
  %v1673 = vmul.f32 %v1672, 1.442695
  %v1674 = vpow.pop %v1673
  %v1675 = vadd.f32 %v1674, 1.0
  %v1676 = vrcp.pop %v1675
  %v1677 = vmul.f32 %v1675, %v1676
  %v1678 = vsub.f32 1.0, %v1677
  %v1679 = vmul.f32 %v1676, %v1678
  %v1680 = vadd.f32 %v1676, %v1679
  %vm1681 = vweird.f32 %v1675
  %vm1682 = vweird.f32 %v1676
  %vm1683 = vmor %vm1681, %vm1682
  %v1684 = vsel %vm1683, %v1676, %v1680
  %v1685 = vand.u32 2147483647, %v1675
  %vm1686 = vcmp.eq.f32.partialorder %v1685, 8.507059e+37
  %v1687 = vand.u32 %v1675, 2147483648
  %v1688 = vor.u32 1.1754944e-38, %v1687
  %v1689 = vsel %vm1686, %v1688, %v1684
  %v1690 = vmul.f32 1.0, %v1689
  %v1691 = vmul.f32 %v1670, %v1398
  %v1692 = vmul.f32 %v1651, %v1671
  %v1693 = vadd.f32 %v1691, %v1692
  %v1694 = vtanh.pop %v1693
  %v1695 = vmul.f32 %v1690, %v1694
  %v1696 = vpack.c.bf16 %v1695, %v1695
  %v1697 = vpack.c.bf16 %v1569, %v1569
  %1698 = vmatpush.bf16.msra.mxu0 %v1008
  %1699 = vmatpush.bf16.msra.mxu0 %v1004
  %1700 = vmatpush.bf16.msra.mxu0 %v1000
  %1701 = vmatpush.bf16.msra.mxu0 %v996
  %1702 = vmatpush.bf16.msra.mxu0 %v992
  %1703 = vmatpush.bf16.msra.mxu0 %v988
  %1704 = vmatpush.bf16.msra.mxu0 %v984
  %1705 = vmatpush.bf16.msra.mxu0 %v980
  %1706 = vmatmul.bf16.gmra.mxu0 %v1696
  %v1707 = vpop.f32.mrf.mxu0
  %v1708 = vadd.f32 %v492, %v1707
  %v1709 = vpop.f32.mrf.mxu0
  %1710 = vdwg.mxu0
  %1711 = vmatpush.bf16.msra.mxu0 %v1040
  %1712 = vmatpush.bf16.msra.mxu0 %v1036
  %1713 = vmatpush.bf16.msra.mxu0 %v1032
  %1714 = vmatpush.bf16.msra.mxu0 %v1028
  %1715 = vmatpush.bf16.msra.mxu0 %v1024
  %1716 = vmatpush.bf16.msra.mxu0 %v1020
  %1717 = vmatpush.bf16.msra.mxu0 %v1016
  %1718 = vmatpush.bf16.msra.mxu0 %v1012
  %1719 = vmatmul.bf16.gmra.mxu0 %v1697
  %v1720 = vpop.f32.mrf.mxu0
  %v1721 = vadd.f32 %v1708, %v1720
  %v1722 = vpop.f32.mrf.mxu0
  %1723 = vdwg.mxu0
  %1724 = vmatpush.bf16.msra.mxu0 %v1009
  %1725 = vmatpush.bf16.msra.mxu0 %v1005
  %1726 = vmatpush.bf16.msra.mxu0 %v1001
  %1727 = vmatpush.bf16.msra.mxu0 %v997
  %1728 = vmatpush.bf16.msra.mxu0 %v993
  %1729 = vmatpush.bf16.msra.mxu0 %v989
  %1730 = vmatpush.bf16.msra.mxu0 %v985
  %1731 = vmatpush.bf16.msra.mxu0 %v981
  %1732 = vmatmul.bf16.gmra.mxu0 %v1696
  %v1733 = vpop.f32.mrf.mxu0
  %v1734 = vadd.f32 %v493, %v1733
  %v1735 = vpop.f32.mrf.mxu0
  %1736 = vdwg.mxu0
  %1737 = vmatpush.bf16.msra.mxu0 %v1041
  %1738 = vmatpush.bf16.msra.mxu0 %v1037
  %1739 = vmatpush.bf16.msra.mxu0 %v1033
  %1740 = vmatpush.bf16.msra.mxu0 %v1029
  %1741 = vmatpush.bf16.msra.mxu0 %v1025
  %1742 = vmatpush.bf16.msra.mxu0 %v1021
  %1743 = vmatpush.bf16.msra.mxu0 %v1017
  %1744 = vmatpush.bf16.msra.mxu0 %v1013
  %1745 = vmatmul.bf16.gmra.mxu0 %v1697
  %v1746 = vpop.f32.mrf.mxu0
  %v1747 = vadd.f32 %v1734, %v1746
  %v1748 = vpop.f32.mrf.mxu0
  %1749 = vdwg.mxu0
  %1750 = vmatpush.bf16.msra.mxu0 %v1010
  %1751 = vmatpush.bf16.msra.mxu0 %v1006
  %1752 = vmatpush.bf16.msra.mxu0 %v1002
  %1753 = vmatpush.bf16.msra.mxu0 %v998
  %1754 = vmatpush.bf16.msra.mxu0 %v994
  %1755 = vmatpush.bf16.msra.mxu0 %v990
  %1756 = vmatpush.bf16.msra.mxu0 %v986
  %1757 = vmatpush.bf16.msra.mxu0 %v982
  %1758 = vmatmul.bf16.gmra.mxu0 %v1696
  %v1759 = vpop.f32.mrf.mxu0
  %v1760 = vadd.f32 %v494, %v1759
  %v1761 = vpop.f32.mrf.mxu0
  %1762 = vdwg.mxu0
  %1763 = vmatpush.bf16.msra.mxu0 %v1042
  %1764 = vmatpush.bf16.msra.mxu0 %v1038
  %1765 = vmatpush.bf16.msra.mxu0 %v1034
  %1766 = vmatpush.bf16.msra.mxu0 %v1030
  %1767 = vmatpush.bf16.msra.mxu0 %v1026
  %1768 = vmatpush.bf16.msra.mxu0 %v1022
  %1769 = vmatpush.bf16.msra.mxu0 %v1018
  %1770 = vmatpush.bf16.msra.mxu0 %v1014
  %1771 = vmatmul.bf16.gmra.mxu0 %v1697
  %v1772 = vpop.f32.mrf.mxu0
  %v1773 = vadd.f32 %v1760, %v1772
  %v1774 = vpop.f32.mrf.mxu0
  %1775 = vdwg.mxu0
  %1776 = vmatpush.bf16.msra.mxu0 %v1011
  %1777 = vmatpush.bf16.msra.mxu0 %v1007
  %1778 = vmatpush.bf16.msra.mxu0 %v1003
  %1779 = vmatpush.bf16.msra.mxu0 %v999
  %1780 = vmatpush.bf16.msra.mxu0 %v995
  %1781 = vmatpush.bf16.msra.mxu0 %v991
  %1782 = vmatpush.bf16.msra.mxu0 %v987
  %1783 = vmatpush.bf16.msra.mxu0 %v983
  %1784 = vmatmul.bf16.gmra.mxu0 %v1696
  %v1785 = vpop.f32.mrf.mxu0
  %v1786 = vadd.f32 %v495, %v1785
  %v1787 = vpop.f32.mrf.mxu0
  %1788 = vdwg.mxu0
  %1789 = vmatpush.bf16.msra.mxu0 %v1043
  %1790 = vmatpush.bf16.msra.mxu0 %v1039
  %1791 = vmatpush.bf16.msra.mxu0 %v1035
  %1792 = vmatpush.bf16.msra.mxu0 %v1031
  %1793 = vmatpush.bf16.msra.mxu0 %v1027
  %1794 = vmatpush.bf16.msra.mxu0 %v1023
  %1795 = vmatpush.bf16.msra.mxu0 %v1019
  %1796 = vmatpush.bf16.msra.mxu0 %v1015
  %1797 = vmatmul.bf16.gmra.mxu0 %v1697
  %v1798 = vpop.f32.mrf.mxu0
  %v1799 = vadd.f32 %v1786, %v1798
  %v1800 = vpop.f32.mrf.mxu0
  %1801 = vdwg.mxu0
  %v1802 = vxor.u32 %v1721, 2147483648
  %v1803 = vmul.f32 %v1802, 1.442695
  %v1804 = vpow.pop %v1803
  %v1805 = vadd.f32 %v1804, 1.0
  %v1806 = vrcp.pop %v1805
  %v1807 = vmul.f32 %v1805, %v1806
  %v1808 = vsub.f32 1.0, %v1807
  %v1809 = vmul.f32 %v1806, %v1808
  %v1810 = vadd.f32 %v1806, %v1809
  %vm1811 = vweird.f32 %v1805
  %vm1812 = vweird.f32 %v1806
  %vm1813 = vmor %vm1811, %vm1812
  %v1814 = vsel %vm1813, %v1806, %v1810
  %v1815 = vand.u32 2147483647, %v1805
  %vm1816 = vcmp.eq.f32.partialorder %v1815, 8.507059e+37
  %v1817 = vand.u32 %v1805, 2147483648
  %v1818 = vor.u32 1.1754944e-38, %v1817
  %v1819 = vsel %vm1816, %v1818, %v1814
  %v1820 = vmul.f32 1.0, %v1819
  %v1821 = vxor.u32 %v1747, 2147483648
  %v1822 = vmul.f32 %v1821, 1.442695
  %v1823 = vpow.pop %v1822
  %v1824 = vadd.f32 %v1823, 1.0
  %v1825 = vrcp.pop %v1824
  %v1826 = vmul.f32 %v1824, %v1825
  %v1827 = vsub.f32 1.0, %v1826
  %v1828 = vmul.f32 %v1825, %v1827
  %v1829 = vadd.f32 %v1825, %v1828
  %vm1830 = vweird.f32 %v1824
  %vm1831 = vweird.f32 %v1825
  %vm1832 = vmor %vm1830, %vm1831
  %v1833 = vsel %vm1832, %v1825, %v1829
  %v1834 = vand.u32 2147483647, %v1824
  %vm1835 = vcmp.eq.f32.partialorder %v1834, 8.507059e+37
  %v1836 = vand.u32 %v1824, 2147483648
  %v1837 = vor.u32 1.1754944e-38, %v1836
  %v1838 = vsel %vm1835, %v1837, %v1833
  %v1839 = vmul.f32 1.0, %v1838
  %v1840 = vtanh.pop %v1773
  %v1841 = vxor.u32 %v1799, 2147483648
  %v1842 = vmul.f32 %v1841, 1.442695
  %v1843 = vpow.pop %v1842
  %v1844 = vadd.f32 %v1843, 1.0
  %v1845 = vrcp.pop %v1844
  %v1846 = vmul.f32 %v1844, %v1845
  %v1847 = vsub.f32 1.0, %v1846
  %v1848 = vmul.f32 %v1845, %v1847
  %v1849 = vadd.f32 %v1845, %v1848
  %vm1850 = vweird.f32 %v1844
  %vm1851 = vweird.f32 %v1845
  %vm1852 = vmor %vm1850, %vm1851
  %v1853 = vsel %vm1852, %v1845, %v1849
  %v1854 = vand.u32 2147483647, %v1844
  %vm1855 = vcmp.eq.f32.partialorder %v1854, 8.507059e+37
  %v1856 = vand.u32 %v1844, 2147483648
  %v1857 = vor.u32 1.1754944e-38, %v1856
  %v1858 = vsel %vm1855, %v1857, %v1853
  %v1859 = vmul.f32 1.0, %v1858
  %v1860 = vmul.f32 %v1839, %v1567
  %v1861 = vmul.f32 %v1820, %v1840
  %v1862 = vadd.f32 %v1860, %v1861
  %v1863 = vtanh.pop %v1862
  %v1864 = vmul.f32 %v1859, %v1863
  %s1865 = smul.u32 3, 4
  %s1866 = smul.addr %s1865, 8
  %s1867 = scalar_lea.vmem [#allocation2], %s1866
  %v1868 = vld [vmem:[%s1867] sm:$0xff]
  %v1869 = vld [vmem:[%s1867 + $0x8] sm:$0xff]
  %v1870 = vld [vmem:[%s1867 + $0x10] sm:$0xff]
  %v1871 = vld [vmem:[%s1867 + $0x18] sm:$0xff]
  %1872 = vmatpush.bf16.msra.mxu0 %v631
  %1873 = vmatpush.bf16.msra.mxu0 %v627
  %1874 = vmatpush.bf16.msra.mxu0 %v623
  %1875 = vmatpush.bf16.msra.mxu0 %v619
  %1876 = vmatpush.bf16.msra.mxu0 %v615
  %1877 = vmatpush.bf16.msra.mxu0 %v611
  %1878 = vmatpush.bf16.msra.mxu0 %v607
  %1879 = vmatpush.bf16.msra.mxu0 %v603
  %1880 = vmatmul.bf16.gmra.mxu0 %v1696
  %v1881 = vpop.f32.mrf.mxu0
  %v1882 = vadd.f32 0.0, %v1881
  %v1883 = vpop.f32.mrf.mxu0
  %1884 = vdwg.mxu0
  %1885 = vmatpush.bf16.msra.mxu0 %v632
  %1886 = vmatpush.bf16.msra.mxu0 %v628
  %1887 = vmatpush.bf16.msra.mxu0 %v624
  %1888 = vmatpush.bf16.msra.mxu0 %v620
  %1889 = vmatpush.bf16.msra.mxu0 %v616
  %1890 = vmatpush.bf16.msra.mxu0 %v612
  %1891 = vmatpush.bf16.msra.mxu0 %v608
  %1892 = vmatpush.bf16.msra.mxu0 %v604
  %1893 = vmatmul.bf16.gmra.mxu0 %v1696
  %v1894 = vpop.f32.mrf.mxu0
  %v1895 = vadd.f32 0.0, %v1894
  %v1896 = vpop.f32.mrf.mxu0
  %1897 = vdwg.mxu0
  %1898 = vmatpush.bf16.msra.mxu0 %v633
  %1899 = vmatpush.bf16.msra.mxu0 %v629
  %1900 = vmatpush.bf16.msra.mxu0 %v625
  %1901 = vmatpush.bf16.msra.mxu0 %v621
  %1902 = vmatpush.bf16.msra.mxu0 %v617
  %1903 = vmatpush.bf16.msra.mxu0 %v613
  %1904 = vmatpush.bf16.msra.mxu0 %v609
  %1905 = vmatpush.bf16.msra.mxu0 %v605
  %1906 = vmatmul.bf16.gmra.mxu0 %v1696
  %v1907 = vpop.f32.mrf.mxu0
  %v1908 = vadd.f32 0.0, %v1907
  %v1909 = vpop.f32.mrf.mxu0
  %1910 = vdwg.mxu0
  %1911 = vmatpush.bf16.msra.mxu0 %v634
  %1912 = vmatpush.bf16.msra.mxu0 %v630
  %1913 = vmatpush.bf16.msra.mxu0 %v626
  %1914 = vmatpush.bf16.msra.mxu0 %v622
  %1915 = vmatpush.bf16.msra.mxu0 %v618
  %1916 = vmatpush.bf16.msra.mxu0 %v614
  %1917 = vmatpush.bf16.msra.mxu0 %v610
  %1918 = vmatpush.bf16.msra.mxu0 %v606
  %1919 = vmatmul.bf16.gmra.mxu0 %v1696
  %v1920 = vpop.f32.mrf.mxu0
  %v1921 = vadd.f32 0.0, %v1920
  %v1922 = vpop.f32.mrf.mxu0
  %1923 = vdwg.mxu0
  %v1924 = vadd.f32 %v1868, %v1882
  %v1925 = vadd.f32 %v1869, %v1895
  %v1926 = vadd.f32 %v1870, %v1908
  %v1927 = vadd.f32 %v1871, %v1921
  %v1928 = vxor.u32 %v1924, 2147483648
  %v1929 = vmul.f32 %v1928, 1.442695
  %v1930 = vpow.pop %v1929
  %v1931 = vadd.f32 %v1930, 1.0
  %v1932 = vrcp.pop %v1931
  %v1933 = vmul.f32 %v1931, %v1932
  %v1934 = vsub.f32 1.0, %v1933
  %v1935 = vmul.f32 %v1932, %v1934
  %v1936 = vadd.f32 %v1932, %v1935
  %vm1937 = vweird.f32 %v1931
  %vm1938 = vweird.f32 %v1932
  %vm1939 = vmor %vm1937, %vm1938
  %v1940 = vsel %vm1939, %v1932, %v1936
  %v1941 = vand.u32 2147483647, %v1931
  %vm1942 = vcmp.eq.f32.partialorder %v1941, 8.507059e+37
  %v1943 = vand.u32 %v1931, 2147483648
  %v1944 = vor.u32 1.1754944e-38, %v1943
  %v1945 = vsel %vm1942, %v1944, %v1940
  %v1946 = vmul.f32 1.0, %v1945
  %v1947 = vxor.u32 %v1925, 2147483648
  %v1948 = vmul.f32 %v1947, 1.442695
  %v1949 = vpow.pop %v1948
  %v1950 = vadd.f32 %v1949, 1.0
  %v1951 = vrcp.pop %v1950
  %v1952 = vmul.f32 %v1950, %v1951
  %v1953 = vsub.f32 1.0, %v1952
  %v1954 = vmul.f32 %v1951, %v1953
  %v1955 = vadd.f32 %v1951, %v1954
  %vm1956 = vweird.f32 %v1950
  %vm1957 = vweird.f32 %v1951
  %vm1958 = vmor %vm1956, %vm1957
  %v1959 = vsel %vm1958, %v1951, %v1955
  %v1960 = vand.u32 2147483647, %v1950
  %vm1961 = vcmp.eq.f32.partialorder %v1960, 8.507059e+37
  %v1962 = vand.u32 %v1950, 2147483648
  %v1963 = vor.u32 1.1754944e-38, %v1962
  %v1964 = vsel %vm1961, %v1963, %v1959
  %v1965 = vmul.f32 1.0, %v1964
  %v1966 = vtanh.pop %v1926
  %v1967 = vxor.u32 %v1927, 2147483648
  %v1968 = vmul.f32 %v1967, 1.442695
  %v1969 = vpow.pop %v1968
  %v1970 = vadd.f32 %v1969, 1.0
  %v1971 = vrcp.pop %v1970
  %v1972 = vmul.f32 %v1970, %v1971
  %v1973 = vsub.f32 1.0, %v1972
  %v1974 = vmul.f32 %v1971, %v1973
  %v1975 = vadd.f32 %v1971, %v1974
  %vm1976 = vweird.f32 %v1970
  %vm1977 = vweird.f32 %v1971
  %vm1978 = vmor %vm1976, %vm1977
  %v1979 = vsel %vm1978, %v1971, %v1975
  %v1980 = vand.u32 2147483647, %v1970
  %vm1981 = vcmp.eq.f32.partialorder %v1980, 8.507059e+37
  %v1982 = vand.u32 %v1970, 2147483648
  %v1983 = vor.u32 1.1754944e-38, %v1982
  %v1984 = vsel %vm1981, %v1983, %v1979
  %v1985 = vmul.f32 1.0, %v1984
  %v1986 = vmul.f32 %v1965, %v1693
  %v1987 = vmul.f32 %v1946, %v1966
  %v1988 = vadd.f32 %v1986, %v1987
  %v1989 = vtanh.pop %v1988
  %v1990 = vmul.f32 %v1985, %v1989
  %v1991 = vpack.c.bf16 %v1990, %v1990
  %v1992 = vpack.c.bf16 %v1864, %v1864
  %1993 = vmatpush.bf16.msra.mxu0 %v1008
  %1994 = vmatpush.bf16.msra.mxu0 %v1004
  %1995 = vmatpush.bf16.msra.mxu0 %v1000
  %1996 = vmatpush.bf16.msra.mxu0 %v996
  %1997 = vmatpush.bf16.msra.mxu0 %v992
  %1998 = vmatpush.bf16.msra.mxu0 %v988
  %1999 = vmatpush.bf16.msra.mxu0 %v984
  %2000 = vmatpush.bf16.msra.mxu0 %v980
  %2001 = vmatmul.bf16.gmra.mxu0 %v1991
  %v2002 = vpop.f32.mrf.mxu0
  %v2003 = vadd.f32 %v492, %v2002
  %v2004 = vpop.f32.mrf.mxu0
  %2005 = vdwg.mxu0
  %2006 = vmatpush.bf16.msra.mxu0 %v1040
  %2007 = vmatpush.bf16.msra.mxu0 %v1036
  %2008 = vmatpush.bf16.msra.mxu0 %v1032
  %2009 = vmatpush.bf16.msra.mxu0 %v1028
  %2010 = vmatpush.bf16.msra.mxu0 %v1024
  %2011 = vmatpush.bf16.msra.mxu0 %v1020
  %2012 = vmatpush.bf16.msra.mxu0 %v1016
  %2013 = vmatpush.bf16.msra.mxu0 %v1012
  %2014 = vmatmul.bf16.gmra.mxu0 %v1992
  %v2015 = vpop.f32.mrf.mxu0
  %v2016 = vadd.f32 %v2003, %v2015
  %v2017 = vpop.f32.mrf.mxu0
  %2018 = vdwg.mxu0
  %2019 = vmatpush.bf16.msra.mxu0 %v1009
  %2020 = vmatpush.bf16.msra.mxu0 %v1005
  %2021 = vmatpush.bf16.msra.mxu0 %v1001
  %2022 = vmatpush.bf16.msra.mxu0 %v997
  %2023 = vmatpush.bf16.msra.mxu0 %v993
  %2024 = vmatpush.bf16.msra.mxu0 %v989
  %2025 = vmatpush.bf16.msra.mxu0 %v985
  %2026 = vmatpush.bf16.msra.mxu0 %v981
  %2027 = vmatmul.bf16.gmra.mxu0 %v1991
  %v2028 = vpop.f32.mrf.mxu0
  %v2029 = vadd.f32 %v493, %v2028
  %v2030 = vpop.f32.mrf.mxu0
  %2031 = vdwg.mxu0
  %2032 = vmatpush.bf16.msra.mxu0 %v1041
  %2033 = vmatpush.bf16.msra.mxu0 %v1037
  %2034 = vmatpush.bf16.msra.mxu0 %v1033
  %2035 = vmatpush.bf16.msra.mxu0 %v1029
  %2036 = vmatpush.bf16.msra.mxu0 %v1025
  %2037 = vmatpush.bf16.msra.mxu0 %v1021
  %2038 = vmatpush.bf16.msra.mxu0 %v1017
  %2039 = vmatpush.bf16.msra.mxu0 %v1013
  %2040 = vmatmul.bf16.gmra.mxu0 %v1992
  %v2041 = vpop.f32.mrf.mxu0
  %v2042 = vadd.f32 %v2029, %v2041
  %v2043 = vpop.f32.mrf.mxu0
  %2044 = vdwg.mxu0
  %2045 = vmatpush.bf16.msra.mxu0 %v1010
  %2046 = vmatpush.bf16.msra.mxu0 %v1006
  %2047 = vmatpush.bf16.msra.mxu0 %v1002
  %2048 = vmatpush.bf16.msra.mxu0 %v998
  %2049 = vmatpush.bf16.msra.mxu0 %v994
  %2050 = vmatpush.bf16.msra.mxu0 %v990
  %2051 = vmatpush.bf16.msra.mxu0 %v986
  %2052 = vmatpush.bf16.msra.mxu0 %v982
  %2053 = vmatmul.bf16.gmra.mxu0 %v1991
  %v2054 = vpop.f32.mrf.mxu0
  %v2055 = vadd.f32 %v494, %v2054
  %v2056 = vpop.f32.mrf.mxu0
  %2057 = vdwg.mxu0
  %2058 = vmatpush.bf16.msra.mxu0 %v1042
  %2059 = vmatpush.bf16.msra.mxu0 %v1038
  %2060 = vmatpush.bf16.msra.mxu0 %v1034
  %2061 = vmatpush.bf16.msra.mxu0 %v1030
  %2062 = vmatpush.bf16.msra.mxu0 %v1026
  %2063 = vmatpush.bf16.msra.mxu0 %v1022
  %2064 = vmatpush.bf16.msra.mxu0 %v1018
  %2065 = vmatpush.bf16.msra.mxu0 %v1014
  %2066 = vmatmul.bf16.gmra.mxu0 %v1992
  %v2067 = vpop.f32.mrf.mxu0
  %v2068 = vadd.f32 %v2055, %v2067
  %v2069 = vpop.f32.mrf.mxu0
  %2070 = vdwg.mxu0
  %2071 = vmatpush.bf16.msra.mxu0 %v1011
  %2072 = vmatpush.bf16.msra.mxu0 %v1007
  %2073 = vmatpush.bf16.msra.mxu0 %v1003
  %2074 = vmatpush.bf16.msra.mxu0 %v999
  %2075 = vmatpush.bf16.msra.mxu0 %v995
  %2076 = vmatpush.bf16.msra.mxu0 %v991
  %2077 = vmatpush.bf16.msra.mxu0 %v987
  %2078 = vmatpush.bf16.msra.mxu0 %v983
  %2079 = vmatmul.bf16.gmra.mxu0 %v1991
  %v2080 = vpop.f32.mrf.mxu0
  %v2081 = vadd.f32 %v495, %v2080
  %v2082 = vpop.f32.mrf.mxu0
  %2083 = vdwg.mxu0
  %2084 = vmatpush.bf16.msra.mxu0 %v1043
  %2085 = vmatpush.bf16.msra.mxu0 %v1039
  %2086 = vmatpush.bf16.msra.mxu0 %v1035
  %2087 = vmatpush.bf16.msra.mxu0 %v1031
  %2088 = vmatpush.bf16.msra.mxu0 %v1027
  %2089 = vmatpush.bf16.msra.mxu0 %v1023
  %2090 = vmatpush.bf16.msra.mxu0 %v1019
  %2091 = vmatpush.bf16.msra.mxu0 %v1015
  %2092 = vmatmul.bf16.gmra.mxu0 %v1992
  %v2093 = vpop.f32.mrf.mxu0
  %v2094 = vadd.f32 %v2081, %v2093
  %v2095 = vpop.f32.mrf.mxu0
  %2096 = vdwg.mxu0
  %v2097 = vxor.u32 %v2016, 2147483648
  %v2098 = vmul.f32 %v2097, 1.442695
  %v2099 = vpow.pop %v2098
  %v2100 = vadd.f32 %v2099, 1.0
  %v2101 = vrcp.pop %v2100
  %v2102 = vmul.f32 %v2100, %v2101
  %v2103 = vsub.f32 1.0, %v2102
  %v2104 = vmul.f32 %v2101, %v2103
  %v2105 = vadd.f32 %v2101, %v2104
  %vm2106 = vweird.f32 %v2100
  %vm2107 = vweird.f32 %v2101
  %vm2108 = vmor %vm2106, %vm2107
  %v2109 = vsel %vm2108, %v2101, %v2105
  %v2110 = vand.u32 2147483647, %v2100
  %vm2111 = vcmp.eq.f32.partialorder %v2110, 8.507059e+37
  %v2112 = vand.u32 %v2100, 2147483648
  %v2113 = vor.u32 1.1754944e-38, %v2112
  %v2114 = vsel %vm2111, %v2113, %v2109
  %v2115 = vmul.f32 1.0, %v2114
  %v2116 = vxor.u32 %v2042, 2147483648
  %v2117 = vmul.f32 %v2116, 1.442695
  %v2118 = vpow.pop %v2117
  %v2119 = vadd.f32 %v2118, 1.0
  %v2120 = vrcp.pop %v2119
  %v2121 = vmul.f32 %v2119, %v2120
  %v2122 = vsub.f32 1.0, %v2121
  %v2123 = vmul.f32 %v2120, %v2122
  %v2124 = vadd.f32 %v2120, %v2123
  %vm2125 = vweird.f32 %v2119
  %vm2126 = vweird.f32 %v2120
  %vm2127 = vmor %vm2125, %vm2126
  %v2128 = vsel %vm2127, %v2120, %v2124
  %v2129 = vand.u32 2147483647, %v2119
  %vm2130 = vcmp.eq.f32.partialorder %v2129, 8.507059e+37
  %v2131 = vand.u32 %v2119, 2147483648
  %v2132 = vor.u32 1.1754944e-38, %v2131
  %v2133 = vsel %vm2130, %v2132, %v2128
  %v2134 = vmul.f32 1.0, %v2133
  %v2135 = vtanh.pop %v2068
  %v2136 = vxor.u32 %v2094, 2147483648
  %v2137 = vmul.f32 %v2136, 1.442695
  %v2138 = vpow.pop %v2137
  %v2139 = vadd.f32 %v2138, 1.0
  %v2140 = vrcp.pop %v2139
  %v2141 = vmul.f32 %v2139, %v2140
  %v2142 = vsub.f32 1.0, %v2141
  %v2143 = vmul.f32 %v2140, %v2142
  %v2144 = vadd.f32 %v2140, %v2143
  %vm2145 = vweird.f32 %v2139
  %vm2146 = vweird.f32 %v2140
  %vm2147 = vmor %vm2145, %vm2146
  %v2148 = vsel %vm2147, %v2140, %v2144
  %v2149 = vand.u32 2147483647, %v2139
  %vm2150 = vcmp.eq.f32.partialorder %v2149, 8.507059e+37
  %v2151 = vand.u32 %v2139, 2147483648
  %v2152 = vor.u32 1.1754944e-38, %v2151
  %v2153 = vsel %vm2150, %v2152, %v2148
  %v2154 = vmul.f32 1.0, %v2153
  %v2155 = vmul.f32 %v2134, %v1862
  %v2156 = vmul.f32 %v2115, %v2135
  %v2157 = vadd.f32 %v2155, %v2156
  %v2158 = vtanh.pop %v2157
  %v2159 = vmul.f32 %v2154, %v2158
  %s2160 = smul.u32 4, 4
  %s2161 = smul.addr %s2160, 8
  %s2162 = scalar_lea.vmem [#allocation2], %s2161
  %v2163 = vld [vmem:[%s2162] sm:$0xff]
  %v2164 = vld [vmem:[%s2162 + $0x8] sm:$0xff]
  %v2165 = vld [vmem:[%s2162 + $0x10] sm:$0xff]
  %v2166 = vld [vmem:[%s2162 + $0x18] sm:$0xff]
  %2167 = vmatpush.bf16.msra.mxu0 %v631
  %2168 = vmatpush.bf16.msra.mxu0 %v627
  %2169 = vmatpush.bf16.msra.mxu0 %v623
  %2170 = vmatpush.bf16.msra.mxu0 %v619
  %2171 = vmatpush.bf16.msra.mxu0 %v615
  %2172 = vmatpush.bf16.msra.mxu0 %v611
  %2173 = vmatpush.bf16.msra.mxu0 %v607
  %2174 = vmatpush.bf16.msra.mxu0 %v603
  %2175 = vmatmul.bf16.gmra.mxu0 %v1991
  %v2176 = vpop.f32.mrf.mxu0
  %v2177 = vadd.f32 0.0, %v2176
  %v2178 = vpop.f32.mrf.mxu0
  %2179 = vdwg.mxu0
  %2180 = vmatpush.bf16.msra.mxu0 %v632
  %2181 = vmatpush.bf16.msra.mxu0 %v628
  %2182 = vmatpush.bf16.msra.mxu0 %v624
  %2183 = vmatpush.bf16.msra.mxu0 %v620
  %2184 = vmatpush.bf16.msra.mxu0 %v616
  %2185 = vmatpush.bf16.msra.mxu0 %v612
  %2186 = vmatpush.bf16.msra.mxu0 %v608
  %2187 = vmatpush.bf16.msra.mxu0 %v604
  %2188 = vmatmul.bf16.gmra.mxu0 %v1991
  %v2189 = vpop.f32.mrf.mxu0
  %v2190 = vadd.f32 0.0, %v2189
  %v2191 = vpop.f32.mrf.mxu0
  %2192 = vdwg.mxu0
  %2193 = vmatpush.bf16.msra.mxu0 %v633
  %2194 = vmatpush.bf16.msra.mxu0 %v629
  %2195 = vmatpush.bf16.msra.mxu0 %v625
  %2196 = vmatpush.bf16.msra.mxu0 %v621
  %2197 = vmatpush.bf16.msra.mxu0 %v617
  %2198 = vmatpush.bf16.msra.mxu0 %v613
  %2199 = vmatpush.bf16.msra.mxu0 %v609
  %2200 = vmatpush.bf16.msra.mxu0 %v605
  %2201 = vmatmul.bf16.gmra.mxu0 %v1991
  %v2202 = vpop.f32.mrf.mxu0
  %v2203 = vadd.f32 0.0, %v2202
  %v2204 = vpop.f32.mrf.mxu0
  %2205 = vdwg.mxu0
  %2206 = vmatpush.bf16.msra.mxu0 %v634
  %2207 = vmatpush.bf16.msra.mxu0 %v630
  %2208 = vmatpush.bf16.msra.mxu0 %v626
  %2209 = vmatpush.bf16.msra.mxu0 %v622
  %2210 = vmatpush.bf16.msra.mxu0 %v618
  %2211 = vmatpush.bf16.msra.mxu0 %v614
  %2212 = vmatpush.bf16.msra.mxu0 %v610
  %2213 = vmatpush.bf16.msra.mxu0 %v606
  %2214 = vmatmul.bf16.gmra.mxu0 %v1991
  %v2215 = vpop.f32.mrf.mxu0
  %v2216 = vadd.f32 0.0, %v2215
  %v2217 = vpop.f32.mrf.mxu0
  %2218 = vdwg.mxu0
  %v2219 = vadd.f32 %v2163, %v2177
  %v2220 = vadd.f32 %v2164, %v2190
  %v2221 = vadd.f32 %v2165, %v2203
  %v2222 = vadd.f32 %v2166, %v2216
  %v2223 = vxor.u32 %v2219, 2147483648
  %v2224 = vmul.f32 %v2223, 1.442695
  %v2225 = vpow.pop %v2224
  %v2226 = vadd.f32 %v2225, 1.0
  %v2227 = vrcp.pop %v2226
  %v2228 = vmul.f32 %v2226, %v2227
  %v2229 = vsub.f32 1.0, %v2228
  %v2230 = vmul.f32 %v2227, %v2229
  %v2231 = vadd.f32 %v2227, %v2230
  %vm2232 = vweird.f32 %v2226
  %vm2233 = vweird.f32 %v2227
  %vm2234 = vmor %vm2232, %vm2233
  %v2235 = vsel %vm2234, %v2227, %v2231
  %v2236 = vand.u32 2147483647, %v2226
  %vm2237 = vcmp.eq.f32.partialorder %v2236, 8.507059e+37
  %v2238 = vand.u32 %v2226, 2147483648
  %v2239 = vor.u32 1.1754944e-38, %v2238
  %v2240 = vsel %vm2237, %v2239, %v2235
  %v2241 = vmul.f32 1.0, %v2240
  %v2242 = vxor.u32 %v2220, 2147483648
  %v2243 = vmul.f32 %v2242, 1.442695
  %v2244 = vpow.pop %v2243
  %v2245 = vadd.f32 %v2244, 1.0
  %v2246 = vrcp.pop %v2245
  %v2247 = vmul.f32 %v2245, %v2246
  %v2248 = vsub.f32 1.0, %v2247
  %v2249 = vmul.f32 %v2246, %v2248
  %v2250 = vadd.f32 %v2246, %v2249
  %vm2251 = vweird.f32 %v2245
  %vm2252 = vweird.f32 %v2246
  %vm2253 = vmor %vm2251, %vm2252
  %v2254 = vsel %vm2253, %v2246, %v2250
  %v2255 = vand.u32 2147483647, %v2245
  %vm2256 = vcmp.eq.f32.partialorder %v2255, 8.507059e+37
  %v2257 = vand.u32 %v2245, 2147483648
  %v2258 = vor.u32 1.1754944e-38, %v2257
  %v2259 = vsel %vm2256, %v2258, %v2254
  %v2260 = vmul.f32 1.0, %v2259
  %v2261 = vtanh.pop %v2221
  %v2262 = vxor.u32 %v2222, 2147483648
  %v2263 = vmul.f32 %v2262, 1.442695
  %v2264 = vpow.pop %v2263
  %v2265 = vadd.f32 %v2264, 1.0
  %v2266 = vrcp.pop %v2265
  %v2267 = vmul.f32 %v2265, %v2266
  %v2268 = vsub.f32 1.0, %v2267
  %v2269 = vmul.f32 %v2266, %v2268
  %v2270 = vadd.f32 %v2266, %v2269
  %vm2271 = vweird.f32 %v2265
  %vm2272 = vweird.f32 %v2266
  %vm2273 = vmor %vm2271, %vm2272
  %v2274 = vsel %vm2273, %v2266, %v2270
  %v2275 = vand.u32 2147483647, %v2265
  %vm2276 = vcmp.eq.f32.partialorder %v2275, 8.507059e+37
  %v2277 = vand.u32 %v2265, 2147483648
  %v2278 = vor.u32 1.1754944e-38, %v2277
  %v2279 = vsel %vm2276, %v2278, %v2274
  %v2280 = vmul.f32 1.0, %v2279
  %v2281 = vmul.f32 %v2260, %v1988
  %v2282 = vmul.f32 %v2241, %v2261
  %v2283 = vadd.f32 %v2281, %v2282
  %v2284 = vtanh.pop %v2283
  %v2285 = vmul.f32 %v2280, %v2284
  %v2286 = vpack.c.bf16 %v2285, %v2285
  %v2287 = vpack.c.bf16 %v2159, %v2159
  %2288 = vmatpush.bf16.msra.mxu0 %v1008
  %2289 = vmatpush.bf16.msra.mxu0 %v1004
  %2290 = vmatpush.bf16.msra.mxu0 %v1000
  %2291 = vmatpush.bf16.msra.mxu0 %v996
  %2292 = vmatpush.bf16.msra.mxu0 %v992
  %2293 = vmatpush.bf16.msra.mxu0 %v988
  %2294 = vmatpush.bf16.msra.mxu0 %v984
  %2295 = vmatpush.bf16.msra.mxu0 %v980
  %2296 = vmatmul.bf16.gmra.mxu0 %v2286
  %v2297 = vpop.f32.mrf.mxu0
  %v2298 = vadd.f32 %v492, %v2297
  %v2299 = vpop.f32.mrf.mxu0
  %2300 = vdwg.mxu0
  %2301 = vmatpush.bf16.msra.mxu0 %v1040
  %2302 = vmatpush.bf16.msra.mxu0 %v1036
  %2303 = vmatpush.bf16.msra.mxu0 %v1032
  %2304 = vmatpush.bf16.msra.mxu0 %v1028
  %2305 = vmatpush.bf16.msra.mxu0 %v1024
  %2306 = vmatpush.bf16.msra.mxu0 %v1020
  %2307 = vmatpush.bf16.msra.mxu0 %v1016
  %2308 = vmatpush.bf16.msra.mxu0 %v1012
  %2309 = vmatmul.bf16.gmra.mxu0 %v2287
  %v2310 = vpop.f32.mrf.mxu0
  %v2311 = vadd.f32 %v2298, %v2310
  %v2312 = vpop.f32.mrf.mxu0
  %2313 = vdwg.mxu0
  %2314 = vmatpush.bf16.msra.mxu0 %v1009
  %2315 = vmatpush.bf16.msra.mxu0 %v1005
  %2316 = vmatpush.bf16.msra.mxu0 %v1001
  %2317 = vmatpush.bf16.msra.mxu0 %v997
  %2318 = vmatpush.bf16.msra.mxu0 %v993
  %2319 = vmatpush.bf16.msra.mxu0 %v989
  %2320 = vmatpush.bf16.msra.mxu0 %v985
  %2321 = vmatpush.bf16.msra.mxu0 %v981
  %2322 = vmatmul.bf16.gmra.mxu0 %v2286
  %v2323 = vpop.f32.mrf.mxu0
  %v2324 = vadd.f32 %v493, %v2323
  %v2325 = vpop.f32.mrf.mxu0
  %2326 = vdwg.mxu0
  %2327 = vmatpush.bf16.msra.mxu0 %v1041
  %2328 = vmatpush.bf16.msra.mxu0 %v1037
  %2329 = vmatpush.bf16.msra.mxu0 %v1033
  %2330 = vmatpush.bf16.msra.mxu0 %v1029
  %2331 = vmatpush.bf16.msra.mxu0 %v1025
  %2332 = vmatpush.bf16.msra.mxu0 %v1021
  %2333 = vmatpush.bf16.msra.mxu0 %v1017
  %2334 = vmatpush.bf16.msra.mxu0 %v1013
  %2335 = vmatmul.bf16.gmra.mxu0 %v2287
  %v2336 = vpop.f32.mrf.mxu0
  %v2337 = vadd.f32 %v2324, %v2336
  %v2338 = vpop.f32.mrf.mxu0
  %2339 = vdwg.mxu0
  %2340 = vmatpush.bf16.msra.mxu0 %v1010
  %2341 = vmatpush.bf16.msra.mxu0 %v1006
  %2342 = vmatpush.bf16.msra.mxu0 %v1002
  %2343 = vmatpush.bf16.msra.mxu0 %v998
  %2344 = vmatpush.bf16.msra.mxu0 %v994
  %2345 = vmatpush.bf16.msra.mxu0 %v990
  %2346 = vmatpush.bf16.msra.mxu0 %v986
  %2347 = vmatpush.bf16.msra.mxu0 %v982
  %2348 = vmatmul.bf16.gmra.mxu0 %v2286
  %v2349 = vpop.f32.mrf.mxu0
  %v2350 = vadd.f32 %v494, %v2349
  %v2351 = vpop.f32.mrf.mxu0
  %2352 = vdwg.mxu0
  %2353 = vmatpush.bf16.msra.mxu0 %v1042
  %2354 = vmatpush.bf16.msra.mxu0 %v1038
  %2355 = vmatpush.bf16.msra.mxu0 %v1034
  %2356 = vmatpush.bf16.msra.mxu0 %v1030
  %2357 = vmatpush.bf16.msra.mxu0 %v1026
  %2358 = vmatpush.bf16.msra.mxu0 %v1022
  %2359 = vmatpush.bf16.msra.mxu0 %v1018
  %2360 = vmatpush.bf16.msra.mxu0 %v1014
  %2361 = vmatmul.bf16.gmra.mxu0 %v2287
  %v2362 = vpop.f32.mrf.mxu0
  %v2363 = vadd.f32 %v2350, %v2362
  %v2364 = vpop.f32.mrf.mxu0
  %2365 = vdwg.mxu0
  %2366 = vmatpush.bf16.msra.mxu0 %v1011
  %2367 = vmatpush.bf16.msra.mxu0 %v1007
  %2368 = vmatpush.bf16.msra.mxu0 %v1003
  %2369 = vmatpush.bf16.msra.mxu0 %v999
  %2370 = vmatpush.bf16.msra.mxu0 %v995
  %2371 = vmatpush.bf16.msra.mxu0 %v991
  %2372 = vmatpush.bf16.msra.mxu0 %v987
  %2373 = vmatpush.bf16.msra.mxu0 %v983
  %2374 = vmatmul.bf16.gmra.mxu0 %v2286
  %v2375 = vpop.f32.mrf.mxu0
  %v2376 = vadd.f32 %v495, %v2375
  %v2377 = vpop.f32.mrf.mxu0
  %2378 = vdwg.mxu0
  %2379 = vmatpush.bf16.msra.mxu0 %v1043
  %2380 = vmatpush.bf16.msra.mxu0 %v1039
  %2381 = vmatpush.bf16.msra.mxu0 %v1035
  %2382 = vmatpush.bf16.msra.mxu0 %v1031
  %2383 = vmatpush.bf16.msra.mxu0 %v1027
  %2384 = vmatpush.bf16.msra.mxu0 %v1023
  %2385 = vmatpush.bf16.msra.mxu0 %v1019
  %2386 = vmatpush.bf16.msra.mxu0 %v1015
  %2387 = vmatmul.bf16.gmra.mxu0 %v2287
  %v2388 = vpop.f32.mrf.mxu0
  %v2389 = vadd.f32 %v2376, %v2388
  %v2390 = vpop.f32.mrf.mxu0
  %2391 = vdwg.mxu0
  %v2392 = vxor.u32 %v2311, 2147483648
  %v2393 = vmul.f32 %v2392, 1.442695
  %v2394 = vpow.pop %v2393
  %v2395 = vadd.f32 %v2394, 1.0
  %v2396 = vrcp.pop %v2395
  %v2397 = vmul.f32 %v2395, %v2396
  %v2398 = vsub.f32 1.0, %v2397
  %v2399 = vmul.f32 %v2396, %v2398
  %v2400 = vadd.f32 %v2396, %v2399
  %vm2401 = vweird.f32 %v2395
  %vm2402 = vweird.f32 %v2396
  %vm2403 = vmor %vm2401, %vm2402
  %v2404 = vsel %vm2403, %v2396, %v2400
  %v2405 = vand.u32 2147483647, %v2395
  %vm2406 = vcmp.eq.f32.partialorder %v2405, 8.507059e+37
  %v2407 = vand.u32 %v2395, 2147483648
  %v2408 = vor.u32 1.1754944e-38, %v2407
  %v2409 = vsel %vm2406, %v2408, %v2404
  %v2410 = vmul.f32 1.0, %v2409
  %v2411 = vxor.u32 %v2337, 2147483648
  %v2412 = vmul.f32 %v2411, 1.442695
  %v2413 = vpow.pop %v2412
  %v2414 = vadd.f32 %v2413, 1.0
  %v2415 = vrcp.pop %v2414
  %v2416 = vmul.f32 %v2414, %v2415
  %v2417 = vsub.f32 1.0, %v2416
  %v2418 = vmul.f32 %v2415, %v2417
  %v2419 = vadd.f32 %v2415, %v2418
  %vm2420 = vweird.f32 %v2414
  %vm2421 = vweird.f32 %v2415
  %vm2422 = vmor %vm2420, %vm2421
  %v2423 = vsel %vm2422, %v2415, %v2419
  %v2424 = vand.u32 2147483647, %v2414
  %vm2425 = vcmp.eq.f32.partialorder %v2424, 8.507059e+37
  %v2426 = vand.u32 %v2414, 2147483648
  %v2427 = vor.u32 1.1754944e-38, %v2426
  %v2428 = vsel %vm2425, %v2427, %v2423
  %v2429 = vmul.f32 1.0, %v2428
  %v2430 = vtanh.pop %v2363
  %v2431 = vxor.u32 %v2389, 2147483648
  %v2432 = vmul.f32 %v2431, 1.442695
  %v2433 = vpow.pop %v2432
  %v2434 = vadd.f32 %v2433, 1.0
  %v2435 = vrcp.pop %v2434
  %v2436 = vmul.f32 %v2434, %v2435
  %v2437 = vsub.f32 1.0, %v2436
  %v2438 = vmul.f32 %v2435, %v2437
  %v2439 = vadd.f32 %v2435, %v2438
  %vm2440 = vweird.f32 %v2434
  %vm2441 = vweird.f32 %v2435
  %vm2442 = vmor %vm2440, %vm2441
  %v2443 = vsel %vm2442, %v2435, %v2439
  %v2444 = vand.u32 2147483647, %v2434
  %vm2445 = vcmp.eq.f32.partialorder %v2444, 8.507059e+37
  %v2446 = vand.u32 %v2434, 2147483648
  %v2447 = vor.u32 1.1754944e-38, %v2446
  %v2448 = vsel %vm2445, %v2447, %v2443
  %v2449 = vmul.f32 1.0, %v2448
  %v2450 = vmul.f32 %v2429, %v2157
  %v2451 = vmul.f32 %v2410, %v2430
  %v2452 = vadd.f32 %v2450, %v2451
  %v2453 = vtanh.pop %v2452
  %v2454 = vmul.f32 %v2449, %v2453
  %s2455 = smul.u32 5, 4
  %s2456 = smul.addr %s2455, 8
  %s2457 = scalar_lea.vmem [#allocation2], %s2456
  %v2458 = vld [vmem:[%s2457] sm:$0xff]
  %v2459 = vld [vmem:[%s2457 + $0x8] sm:$0xff]
  %v2460 = vld [vmem:[%s2457 + $0x10] sm:$0xff]
  %v2461 = vld [vmem:[%s2457 + $0x18] sm:$0xff]
  %2462 = vmatpush.bf16.msra.mxu0 %v631
  %2463 = vmatpush.bf16.msra.mxu0 %v627
  %2464 = vmatpush.bf16.msra.mxu0 %v623
  %2465 = vmatpush.bf16.msra.mxu0 %v619
  %2466 = vmatpush.bf16.msra.mxu0 %v615
  %2467 = vmatpush.bf16.msra.mxu0 %v611
  %2468 = vmatpush.bf16.msra.mxu0 %v607
  %2469 = vmatpush.bf16.msra.mxu0 %v603
  %2470 = vmatmul.bf16.gmra.mxu0 %v2286
  %v2471 = vpop.f32.mrf.mxu0
  %v2472 = vadd.f32 0.0, %v2471
  %v2473 = vpop.f32.mrf.mxu0
  %2474 = vdwg.mxu0
  %2475 = vmatpush.bf16.msra.mxu0 %v632
  %2476 = vmatpush.bf16.msra.mxu0 %v628
  %2477 = vmatpush.bf16.msra.mxu0 %v624
  %2478 = vmatpush.bf16.msra.mxu0 %v620
  %2479 = vmatpush.bf16.msra.mxu0 %v616
  %2480 = vmatpush.bf16.msra.mxu0 %v612
  %2481 = vmatpush.bf16.msra.mxu0 %v608
  %2482 = vmatpush.bf16.msra.mxu0 %v604
  %2483 = vmatmul.bf16.gmra.mxu0 %v2286
  %v2484 = vpop.f32.mrf.mxu0
  %v2485 = vadd.f32 0.0, %v2484
  %v2486 = vpop.f32.mrf.mxu0
  %2487 = vdwg.mxu0
  %2488 = vmatpush.bf16.msra.mxu0 %v633
  %2489 = vmatpush.bf16.msra.mxu0 %v629
  %2490 = vmatpush.bf16.msra.mxu0 %v625
  %2491 = vmatpush.bf16.msra.mxu0 %v621
  %2492 = vmatpush.bf16.msra.mxu0 %v617
  %2493 = vmatpush.bf16.msra.mxu0 %v613
  %2494 = vmatpush.bf16.msra.mxu0 %v609
  %2495 = vmatpush.bf16.msra.mxu0 %v605
  %2496 = vmatmul.bf16.gmra.mxu0 %v2286
  %v2497 = vpop.f32.mrf.mxu0
  %v2498 = vadd.f32 0.0, %v2497
  %v2499 = vpop.f32.mrf.mxu0
  %2500 = vdwg.mxu0
  %2501 = vmatpush.bf16.msra.mxu0 %v634
  %2502 = vmatpush.bf16.msra.mxu0 %v630
  %2503 = vmatpush.bf16.msra.mxu0 %v626
  %2504 = vmatpush.bf16.msra.mxu0 %v622
  %2505 = vmatpush.bf16.msra.mxu0 %v618
  %2506 = vmatpush.bf16.msra.mxu0 %v614
  %2507 = vmatpush.bf16.msra.mxu0 %v610
  %2508 = vmatpush.bf16.msra.mxu0 %v606
  %2509 = vmatmul.bf16.gmra.mxu0 %v2286
  %v2510 = vpop.f32.mrf.mxu0
  %v2511 = vadd.f32 0.0, %v2510
  %v2512 = vpop.f32.mrf.mxu0
  %2513 = vdwg.mxu0
  %v2514 = vadd.f32 %v2458, %v2472
  %v2515 = vadd.f32 %v2459, %v2485
  %v2516 = vadd.f32 %v2460, %v2498
  %v2517 = vadd.f32 %v2461, %v2511
  %v2518 = vxor.u32 %v2514, 2147483648
  %v2519 = vmul.f32 %v2518, 1.442695
  %v2520 = vpow.pop %v2519
  %v2521 = vadd.f32 %v2520, 1.0
  %v2522 = vrcp.pop %v2521
  %v2523 = vmul.f32 %v2521, %v2522
  %v2524 = vsub.f32 1.0, %v2523
  %v2525 = vmul.f32 %v2522, %v2524
  %v2526 = vadd.f32 %v2522, %v2525
  %vm2527 = vweird.f32 %v2521
  %vm2528 = vweird.f32 %v2522
  %vm2529 = vmor %vm2527, %vm2528
  %v2530 = vsel %vm2529, %v2522, %v2526
  %v2531 = vand.u32 2147483647, %v2521
  %vm2532 = vcmp.eq.f32.partialorder %v2531, 8.507059e+37
  %v2533 = vand.u32 %v2521, 2147483648
  %v2534 = vor.u32 1.1754944e-38, %v2533
  %v2535 = vsel %vm2532, %v2534, %v2530
  %v2536 = vmul.f32 1.0, %v2535
  %v2537 = vxor.u32 %v2515, 2147483648
  %v2538 = vmul.f32 %v2537, 1.442695
  %v2539 = vpow.pop %v2538
  %v2540 = vadd.f32 %v2539, 1.0
  %v2541 = vrcp.pop %v2540
  %v2542 = vmul.f32 %v2540, %v2541
  %v2543 = vsub.f32 1.0, %v2542
  %v2544 = vmul.f32 %v2541, %v2543
  %v2545 = vadd.f32 %v2541, %v2544
  %vm2546 = vweird.f32 %v2540
  %vm2547 = vweird.f32 %v2541
  %vm2548 = vmor %vm2546, %vm2547
  %v2549 = vsel %vm2548, %v2541, %v2545
  %v2550 = vand.u32 2147483647, %v2540
  %vm2551 = vcmp.eq.f32.partialorder %v2550, 8.507059e+37
  %v2552 = vand.u32 %v2540, 2147483648
  %v2553 = vor.u32 1.1754944e-38, %v2552
  %v2554 = vsel %vm2551, %v2553, %v2549
  %v2555 = vmul.f32 1.0, %v2554
  %v2556 = vtanh.pop %v2516
  %v2557 = vxor.u32 %v2517, 2147483648
  %v2558 = vmul.f32 %v2557, 1.442695
  %v2559 = vpow.pop %v2558
  %v2560 = vadd.f32 %v2559, 1.0
  %v2561 = vrcp.pop %v2560
  %v2562 = vmul.f32 %v2560, %v2561
  %v2563 = vsub.f32 1.0, %v2562
  %v2564 = vmul.f32 %v2561, %v2563
  %v2565 = vadd.f32 %v2561, %v2564
  %vm2566 = vweird.f32 %v2560
  %vm2567 = vweird.f32 %v2561
  %vm2568 = vmor %vm2566, %vm2567
  %v2569 = vsel %vm2568, %v2561, %v2565
  %v2570 = vand.u32 2147483647, %v2560
  %vm2571 = vcmp.eq.f32.partialorder %v2570, 8.507059e+37
  %v2572 = vand.u32 %v2560, 2147483648
  %v2573 = vor.u32 1.1754944e-38, %v2572
  %v2574 = vsel %vm2571, %v2573, %v2569
  %v2575 = vmul.f32 1.0, %v2574
  %v2576 = vmul.f32 %v2555, %v2283
  %v2577 = vmul.f32 %v2536, %v2556
  %v2578 = vadd.f32 %v2576, %v2577
  %v2579 = vtanh.pop %v2578
  %v2580 = vmul.f32 %v2575, %v2579
  %v2581 = vpack.c.bf16 %v2580, %v2580
  %v2582 = vpack.c.bf16 %v2454, %v2454
  %2583 = vmatpush.bf16.msra.mxu0 %v1008
  %2584 = vmatpush.bf16.msra.mxu0 %v1004
  %2585 = vmatpush.bf16.msra.mxu0 %v1000
  %2586 = vmatpush.bf16.msra.mxu0 %v996
  %2587 = vmatpush.bf16.msra.mxu0 %v992
  %2588 = vmatpush.bf16.msra.mxu0 %v988
  %2589 = vmatpush.bf16.msra.mxu0 %v984
  %2590 = vmatpush.bf16.msra.mxu0 %v980
  %2591 = vmatmul.bf16.gmra.mxu0 %v2581
  %v2592 = vpop.f32.mrf.mxu0
  %v2593 = vadd.f32 %v492, %v2592
  %v2594 = vpop.f32.mrf.mxu0
  %2595 = vdwg.mxu0
  %2596 = vmatpush.bf16.msra.mxu0 %v1040
  %2597 = vmatpush.bf16.msra.mxu0 %v1036
  %2598 = vmatpush.bf16.msra.mxu0 %v1032
  %2599 = vmatpush.bf16.msra.mxu0 %v1028
  %2600 = vmatpush.bf16.msra.mxu0 %v1024
  %2601 = vmatpush.bf16.msra.mxu0 %v1020
  %2602 = vmatpush.bf16.msra.mxu0 %v1016
  %2603 = vmatpush.bf16.msra.mxu0 %v1012
  %2604 = vmatmul.bf16.gmra.mxu0 %v2582
  %v2605 = vpop.f32.mrf.mxu0
  %v2606 = vadd.f32 %v2593, %v2605
  %v2607 = vpop.f32.mrf.mxu0
  %2608 = vdwg.mxu0
  %2609 = vmatpush.bf16.msra.mxu0 %v1009
  %2610 = vmatpush.bf16.msra.mxu0 %v1005
  %2611 = vmatpush.bf16.msra.mxu0 %v1001
  %2612 = vmatpush.bf16.msra.mxu0 %v997
  %2613 = vmatpush.bf16.msra.mxu0 %v993
  %2614 = vmatpush.bf16.msra.mxu0 %v989
  %2615 = vmatpush.bf16.msra.mxu0 %v985
  %2616 = vmatpush.bf16.msra.mxu0 %v981
  %2617 = vmatmul.bf16.gmra.mxu0 %v2581
  %v2618 = vpop.f32.mrf.mxu0
  %v2619 = vadd.f32 %v493, %v2618
  %v2620 = vpop.f32.mrf.mxu0
  %2621 = vdwg.mxu0
  %2622 = vmatpush.bf16.msra.mxu0 %v1041
  %2623 = vmatpush.bf16.msra.mxu0 %v1037
  %2624 = vmatpush.bf16.msra.mxu0 %v1033
  %2625 = vmatpush.bf16.msra.mxu0 %v1029
  %2626 = vmatpush.bf16.msra.mxu0 %v1025
  %2627 = vmatpush.bf16.msra.mxu0 %v1021
  %2628 = vmatpush.bf16.msra.mxu0 %v1017
  %2629 = vmatpush.bf16.msra.mxu0 %v1013
  %2630 = vmatmul.bf16.gmra.mxu0 %v2582
  %v2631 = vpop.f32.mrf.mxu0
  %v2632 = vadd.f32 %v2619, %v2631
  %v2633 = vpop.f32.mrf.mxu0
  %2634 = vdwg.mxu0
  %2635 = vmatpush.bf16.msra.mxu0 %v1010
  %2636 = vmatpush.bf16.msra.mxu0 %v1006
  %2637 = vmatpush.bf16.msra.mxu0 %v1002
  %2638 = vmatpush.bf16.msra.mxu0 %v998
  %2639 = vmatpush.bf16.msra.mxu0 %v994
  %2640 = vmatpush.bf16.msra.mxu0 %v990
  %2641 = vmatpush.bf16.msra.mxu0 %v986
  %2642 = vmatpush.bf16.msra.mxu0 %v982
  %2643 = vmatmul.bf16.gmra.mxu0 %v2581
  %v2644 = vpop.f32.mrf.mxu0
  %v2645 = vadd.f32 %v494, %v2644
  %v2646 = vpop.f32.mrf.mxu0
  %2647 = vdwg.mxu0
  %2648 = vmatpush.bf16.msra.mxu0 %v1042
  %2649 = vmatpush.bf16.msra.mxu0 %v1038
  %2650 = vmatpush.bf16.msra.mxu0 %v1034
  %2651 = vmatpush.bf16.msra.mxu0 %v1030
  %2652 = vmatpush.bf16.msra.mxu0 %v1026
  %2653 = vmatpush.bf16.msra.mxu0 %v1022
  %2654 = vmatpush.bf16.msra.mxu0 %v1018
  %2655 = vmatpush.bf16.msra.mxu0 %v1014
  %2656 = vmatmul.bf16.gmra.mxu0 %v2582
  %v2657 = vpop.f32.mrf.mxu0
  %v2658 = vadd.f32 %v2645, %v2657
  %v2659 = vpop.f32.mrf.mxu0
  %2660 = vdwg.mxu0
  %2661 = vmatpush.bf16.msra.mxu0 %v1011
  %2662 = vmatpush.bf16.msra.mxu0 %v1007
  %2663 = vmatpush.bf16.msra.mxu0 %v1003
  %2664 = vmatpush.bf16.msra.mxu0 %v999
  %2665 = vmatpush.bf16.msra.mxu0 %v995
  %2666 = vmatpush.bf16.msra.mxu0 %v991
  %2667 = vmatpush.bf16.msra.mxu0 %v987
  %2668 = vmatpush.bf16.msra.mxu0 %v983
  %2669 = vmatmul.bf16.gmra.mxu0 %v2581
  %v2670 = vpop.f32.mrf.mxu0
  %v2671 = vadd.f32 %v495, %v2670
  %v2672 = vpop.f32.mrf.mxu0
  %2673 = vdwg.mxu0
  %2674 = vmatpush.bf16.msra.mxu0 %v1043
  %2675 = vmatpush.bf16.msra.mxu0 %v1039
  %2676 = vmatpush.bf16.msra.mxu0 %v1035
  %2677 = vmatpush.bf16.msra.mxu0 %v1031
  %2678 = vmatpush.bf16.msra.mxu0 %v1027
  %2679 = vmatpush.bf16.msra.mxu0 %v1023
  %2680 = vmatpush.bf16.msra.mxu0 %v1019
  %2681 = vmatpush.bf16.msra.mxu0 %v1015
  %2682 = vmatmul.bf16.gmra.mxu0 %v2582
  %v2683 = vpop.f32.mrf.mxu0
  %v2684 = vadd.f32 %v2671, %v2683
  %v2685 = vpop.f32.mrf.mxu0
  %2686 = vdwg.mxu0
  %v2687 = vxor.u32 %v2606, 2147483648
  %v2688 = vmul.f32 %v2687, 1.442695
  %v2689 = vpow.pop %v2688
  %v2690 = vadd.f32 %v2689, 1.0
  %v2691 = vrcp.pop %v2690
  %v2692 = vmul.f32 %v2690, %v2691
  %v2693 = vsub.f32 1.0, %v2692
  %v2694 = vmul.f32 %v2691, %v2693
  %v2695 = vadd.f32 %v2691, %v2694
  %vm2696 = vweird.f32 %v2690
  %vm2697 = vweird.f32 %v2691
  %vm2698 = vmor %vm2696, %vm2697
  %v2699 = vsel %vm2698, %v2691, %v2695
  %v2700 = vand.u32 2147483647, %v2690
  %vm2701 = vcmp.eq.f32.partialorder %v2700, 8.507059e+37
  %v2702 = vand.u32 %v2690, 2147483648
  %v2703 = vor.u32 1.1754944e-38, %v2702
  %v2704 = vsel %vm2701, %v2703, %v2699
  %v2705 = vmul.f32 1.0, %v2704
  %v2706 = vxor.u32 %v2632, 2147483648
  %v2707 = vmul.f32 %v2706, 1.442695
  %v2708 = vpow.pop %v2707
  %v2709 = vadd.f32 %v2708, 1.0
  %v2710 = vrcp.pop %v2709
  %v2711 = vmul.f32 %v2709, %v2710
  %v2712 = vsub.f32 1.0, %v2711
  %v2713 = vmul.f32 %v2710, %v2712
  %v2714 = vadd.f32 %v2710, %v2713
  %vm2715 = vweird.f32 %v2709
  %vm2716 = vweird.f32 %v2710
  %vm2717 = vmor %vm2715, %vm2716
  %v2718 = vsel %vm2717, %v2710, %v2714
  %v2719 = vand.u32 2147483647, %v2709
  %vm2720 = vcmp.eq.f32.partialorder %v2719, 8.507059e+37
  %v2721 = vand.u32 %v2709, 2147483648
  %v2722 = vor.u32 1.1754944e-38, %v2721
  %v2723 = vsel %vm2720, %v2722, %v2718
  %v2724 = vmul.f32 1.0, %v2723
  %v2725 = vtanh.pop %v2658
  %v2726 = vxor.u32 %v2684, 2147483648
  %v2727 = vmul.f32 %v2726, 1.442695
  %v2728 = vpow.pop %v2727
  %v2729 = vadd.f32 %v2728, 1.0
  %v2730 = vrcp.pop %v2729
  %v2731 = vmul.f32 %v2729, %v2730
  %v2732 = vsub.f32 1.0, %v2731
  %v2733 = vmul.f32 %v2730, %v2732
  %v2734 = vadd.f32 %v2730, %v2733
  %vm2735 = vweird.f32 %v2729
  %vm2736 = vweird.f32 %v2730
  %vm2737 = vmor %vm2735, %vm2736
  %v2738 = vsel %vm2737, %v2730, %v2734
  %v2739 = vand.u32 2147483647, %v2729
  %vm2740 = vcmp.eq.f32.partialorder %v2739, 8.507059e+37
  %v2741 = vand.u32 %v2729, 2147483648
  %v2742 = vor.u32 1.1754944e-38, %v2741
  %v2743 = vsel %vm2740, %v2742, %v2738
  %v2744 = vmul.f32 1.0, %v2743
  %v2745 = vmul.f32 %v2724, %v2452
  %v2746 = vmul.f32 %v2705, %v2725
  %v2747 = vadd.f32 %v2745, %v2746
  %v2748 = vtanh.pop %v2747
  %v2749 = vmul.f32 %v2744, %v2748
  %s2750 = smul.u32 6, 4
  %s2751 = smul.addr %s2750, 8
  %s2752 = scalar_lea.vmem [#allocation2], %s2751
  %v2753 = vld [vmem:[%s2752] sm:$0xff]
  %v2754 = vld [vmem:[%s2752 + $0x8] sm:$0xff]
  %v2755 = vld [vmem:[%s2752 + $0x10] sm:$0xff]
  %v2756 = vld [vmem:[%s2752 + $0x18] sm:$0xff]
  %2757 = vmatpush.bf16.msra.mxu0 %v631
  %2758 = vmatpush.bf16.msra.mxu0 %v627
  %2759 = vmatpush.bf16.msra.mxu0 %v623
  %2760 = vmatpush.bf16.msra.mxu0 %v619
  %2761 = vmatpush.bf16.msra.mxu0 %v615
  %2762 = vmatpush.bf16.msra.mxu0 %v611
  %2763 = vmatpush.bf16.msra.mxu0 %v607
  %2764 = vmatpush.bf16.msra.mxu0 %v603
  %2765 = vmatmul.bf16.gmra.mxu0 %v2581
  %v2766 = vpop.f32.mrf.mxu0
  %v2767 = vadd.f32 0.0, %v2766
  %v2768 = vpop.f32.mrf.mxu0
  %2769 = vdwg.mxu0
  %2770 = vmatpush.bf16.msra.mxu0 %v632
  %2771 = vmatpush.bf16.msra.mxu0 %v628
  %2772 = vmatpush.bf16.msra.mxu0 %v624
  %2773 = vmatpush.bf16.msra.mxu0 %v620
  %2774 = vmatpush.bf16.msra.mxu0 %v616
  %2775 = vmatpush.bf16.msra.mxu0 %v612
  %2776 = vmatpush.bf16.msra.mxu0 %v608
  %2777 = vmatpush.bf16.msra.mxu0 %v604
  %2778 = vmatmul.bf16.gmra.mxu0 %v2581
  %v2779 = vpop.f32.mrf.mxu0
  %v2780 = vadd.f32 0.0, %v2779
  %v2781 = vpop.f32.mrf.mxu0
  %2782 = vdwg.mxu0
  %2783 = vmatpush.bf16.msra.mxu0 %v633
  %2784 = vmatpush.bf16.msra.mxu0 %v629
  %2785 = vmatpush.bf16.msra.mxu0 %v625
  %2786 = vmatpush.bf16.msra.mxu0 %v621
  %2787 = vmatpush.bf16.msra.mxu0 %v617
  %2788 = vmatpush.bf16.msra.mxu0 %v613
  %2789 = vmatpush.bf16.msra.mxu0 %v609
  %2790 = vmatpush.bf16.msra.mxu0 %v605
  %2791 = vmatmul.bf16.gmra.mxu0 %v2581
  %v2792 = vpop.f32.mrf.mxu0
  %v2793 = vadd.f32 0.0, %v2792
  %v2794 = vpop.f32.mrf.mxu0
  %2795 = vdwg.mxu0
  %2796 = vmatpush.bf16.msra.mxu0 %v634
  %2797 = vmatpush.bf16.msra.mxu0 %v630
  %2798 = vmatpush.bf16.msra.mxu0 %v626
  %2799 = vmatpush.bf16.msra.mxu0 %v622
  %2800 = vmatpush.bf16.msra.mxu0 %v618
  %2801 = vmatpush.bf16.msra.mxu0 %v614
  %2802 = vmatpush.bf16.msra.mxu0 %v610
  %2803 = vmatpush.bf16.msra.mxu0 %v606
  %2804 = vmatmul.bf16.gmra.mxu0 %v2581
  %v2805 = vpop.f32.mrf.mxu0
  %v2806 = vadd.f32 0.0, %v2805
  %v2807 = vpop.f32.mrf.mxu0
  %2808 = vdwg.mxu0
  %v2809 = vadd.f32 %v2753, %v2767
  %v2810 = vadd.f32 %v2754, %v2780
  %v2811 = vadd.f32 %v2755, %v2793
  %v2812 = vadd.f32 %v2756, %v2806
  %v2813 = vxor.u32 %v2809, 2147483648
  %v2814 = vmul.f32 %v2813, 1.442695
  %v2815 = vpow.pop %v2814
  %v2816 = vadd.f32 %v2815, 1.0
  %v2817 = vrcp.pop %v2816
  %v2818 = vmul.f32 %v2816, %v2817
  %v2819 = vsub.f32 1.0, %v2818
  %v2820 = vmul.f32 %v2817, %v2819
  %v2821 = vadd.f32 %v2817, %v2820
  %vm2822 = vweird.f32 %v2816
  %vm2823 = vweird.f32 %v2817
  %vm2824 = vmor %vm2822, %vm2823
  %v2825 = vsel %vm2824, %v2817, %v2821
  %v2826 = vand.u32 2147483647, %v2816
  %vm2827 = vcmp.eq.f32.partialorder %v2826, 8.507059e+37
  %v2828 = vand.u32 %v2816, 2147483648
  %v2829 = vor.u32 1.1754944e-38, %v2828
  %v2830 = vsel %vm2827, %v2829, %v2825
  %v2831 = vmul.f32 1.0, %v2830
  %v2832 = vxor.u32 %v2810, 2147483648
  %v2833 = vmul.f32 %v2832, 1.442695
  %v2834 = vpow.pop %v2833
  %v2835 = vadd.f32 %v2834, 1.0
  %v2836 = vrcp.pop %v2835
  %v2837 = vmul.f32 %v2835, %v2836
  %v2838 = vsub.f32 1.0, %v2837
  %v2839 = vmul.f32 %v2836, %v2838
  %v2840 = vadd.f32 %v2836, %v2839
  %vm2841 = vweird.f32 %v2835
  %vm2842 = vweird.f32 %v2836
  %vm2843 = vmor %vm2841, %vm2842
  %v2844 = vsel %vm2843, %v2836, %v2840
  %v2845 = vand.u32 2147483647, %v2835
  %vm2846 = vcmp.eq.f32.partialorder %v2845, 8.507059e+37
  %v2847 = vand.u32 %v2835, 2147483648
  %v2848 = vor.u32 1.1754944e-38, %v2847
  %v2849 = vsel %vm2846, %v2848, %v2844
  %v2850 = vmul.f32 1.0, %v2849
  %v2851 = vtanh.pop %v2811
  %v2852 = vxor.u32 %v2812, 2147483648
  %v2853 = vmul.f32 %v2852, 1.442695
  %v2854 = vpow.pop %v2853
  %v2855 = vadd.f32 %v2854, 1.0
  %v2856 = vrcp.pop %v2855
  %v2857 = vmul.f32 %v2855, %v2856
  %v2858 = vsub.f32 1.0, %v2857
  %v2859 = vmul.f32 %v2856, %v2858
  %v2860 = vadd.f32 %v2856, %v2859
  %vm2861 = vweird.f32 %v2855
  %vm2862 = vweird.f32 %v2856
  %vm2863 = vmor %vm2861, %vm2862
  %v2864 = vsel %vm2863, %v2856, %v2860
  %v2865 = vand.u32 2147483647, %v2855
  %vm2866 = vcmp.eq.f32.partialorder %v2865, 8.507059e+37
  %v2867 = vand.u32 %v2855, 2147483648
  %v2868 = vor.u32 1.1754944e-38, %v2867
  %v2869 = vsel %vm2866, %v2868, %v2864
  %v2870 = vmul.f32 1.0, %v2869
  %v2871 = vmul.f32 %v2850, %v2578
  %v2872 = vmul.f32 %v2831, %v2851
  %v2873 = vadd.f32 %v2871, %v2872
  %v2874 = vtanh.pop %v2873
  %v2875 = vmul.f32 %v2870, %v2874
  %v2876 = vpack.c.bf16 %v2875, %v2875
  %v2877 = vpack.c.bf16 %v2749, %v2749
  %2878 = vmatpush.bf16.msra.mxu0 %v1008
  %2879 = vmatpush.bf16.msra.mxu0 %v1004
  %2880 = vmatpush.bf16.msra.mxu0 %v1000
  %2881 = vmatpush.bf16.msra.mxu0 %v996
  %2882 = vmatpush.bf16.msra.mxu0 %v992
  %2883 = vmatpush.bf16.msra.mxu0 %v988
  %2884 = vmatpush.bf16.msra.mxu0 %v984
  %2885 = vmatpush.bf16.msra.mxu0 %v980
  %2886 = vmatmul.bf16.gmra.mxu0 %v2876
  %v2887 = vpop.f32.mrf.mxu0
  %v2888 = vadd.f32 %v492, %v2887
  %v2889 = vpop.f32.mrf.mxu0
  %2890 = vdwg.mxu0
  %2891 = vmatpush.bf16.msra.mxu0 %v1040
  %2892 = vmatpush.bf16.msra.mxu0 %v1036
  %2893 = vmatpush.bf16.msra.mxu0 %v1032
  %2894 = vmatpush.bf16.msra.mxu0 %v1028
  %2895 = vmatpush.bf16.msra.mxu0 %v1024
  %2896 = vmatpush.bf16.msra.mxu0 %v1020
  %2897 = vmatpush.bf16.msra.mxu0 %v1016
  %2898 = vmatpush.bf16.msra.mxu0 %v1012
  %2899 = vmatmul.bf16.gmra.mxu0 %v2877
  %v2900 = vpop.f32.mrf.mxu0
  %v2901 = vadd.f32 %v2888, %v2900
  %v2902 = vpop.f32.mrf.mxu0
  %2903 = vdwg.mxu0
  %2904 = vmatpush.bf16.msra.mxu0 %v1009
  %2905 = vmatpush.bf16.msra.mxu0 %v1005
  %2906 = vmatpush.bf16.msra.mxu0 %v1001
  %2907 = vmatpush.bf16.msra.mxu0 %v997
  %2908 = vmatpush.bf16.msra.mxu0 %v993
  %2909 = vmatpush.bf16.msra.mxu0 %v989
  %2910 = vmatpush.bf16.msra.mxu0 %v985
  %2911 = vmatpush.bf16.msra.mxu0 %v981
  %2912 = vmatmul.bf16.gmra.mxu0 %v2876
  %v2913 = vpop.f32.mrf.mxu0
  %v2914 = vadd.f32 %v493, %v2913
  %v2915 = vpop.f32.mrf.mxu0
  %2916 = vdwg.mxu0
  %2917 = vmatpush.bf16.msra.mxu0 %v1041
  %2918 = vmatpush.bf16.msra.mxu0 %v1037
  %2919 = vmatpush.bf16.msra.mxu0 %v1033
  %2920 = vmatpush.bf16.msra.mxu0 %v1029
  %2921 = vmatpush.bf16.msra.mxu0 %v1025
  %2922 = vmatpush.bf16.msra.mxu0 %v1021
  %2923 = vmatpush.bf16.msra.mxu0 %v1017
  %2924 = vmatpush.bf16.msra.mxu0 %v1013
  %2925 = vmatmul.bf16.gmra.mxu0 %v2877
  %v2926 = vpop.f32.mrf.mxu0
  %v2927 = vadd.f32 %v2914, %v2926
  %v2928 = vpop.f32.mrf.mxu0
  %2929 = vdwg.mxu0
  %2930 = vmatpush.bf16.msra.mxu0 %v1010
  %2931 = vmatpush.bf16.msra.mxu0 %v1006
  %2932 = vmatpush.bf16.msra.mxu0 %v1002
  %2933 = vmatpush.bf16.msra.mxu0 %v998
  %2934 = vmatpush.bf16.msra.mxu0 %v994
  %2935 = vmatpush.bf16.msra.mxu0 %v990
  %2936 = vmatpush.bf16.msra.mxu0 %v986
  %2937 = vmatpush.bf16.msra.mxu0 %v982
  %2938 = vmatmul.bf16.gmra.mxu0 %v2876
  %v2939 = vpop.f32.mrf.mxu0
  %v2940 = vadd.f32 %v494, %v2939
  %v2941 = vpop.f32.mrf.mxu0
  %2942 = vdwg.mxu0
  %2943 = vmatpush.bf16.msra.mxu0 %v1042
  %2944 = vmatpush.bf16.msra.mxu0 %v1038
  %2945 = vmatpush.bf16.msra.mxu0 %v1034
  %2946 = vmatpush.bf16.msra.mxu0 %v1030
  %2947 = vmatpush.bf16.msra.mxu0 %v1026
  %2948 = vmatpush.bf16.msra.mxu0 %v1022
  %2949 = vmatpush.bf16.msra.mxu0 %v1018
  %2950 = vmatpush.bf16.msra.mxu0 %v1014
  %2951 = vmatmul.bf16.gmra.mxu0 %v2877
  %v2952 = vpop.f32.mrf.mxu0
  %v2953 = vadd.f32 %v2940, %v2952
  %v2954 = vpop.f32.mrf.mxu0
  %2955 = vdwg.mxu0
  %2956 = vmatpush.bf16.msra.mxu0 %v1011
  %2957 = vmatpush.bf16.msra.mxu0 %v1007
  %2958 = vmatpush.bf16.msra.mxu0 %v1003
  %2959 = vmatpush.bf16.msra.mxu0 %v999
  %2960 = vmatpush.bf16.msra.mxu0 %v995
  %2961 = vmatpush.bf16.msra.mxu0 %v991
  %2962 = vmatpush.bf16.msra.mxu0 %v987
  %2963 = vmatpush.bf16.msra.mxu0 %v983
  %2964 = vmatmul.bf16.gmra.mxu0 %v2876
  %v2965 = vpop.f32.mrf.mxu0
  %v2966 = vadd.f32 %v495, %v2965
  %v2967 = vpop.f32.mrf.mxu0
  %2968 = vdwg.mxu0
  %2969 = vmatpush.bf16.msra.mxu0 %v1043
  %2970 = vmatpush.bf16.msra.mxu0 %v1039
  %2971 = vmatpush.bf16.msra.mxu0 %v1035
  %2972 = vmatpush.bf16.msra.mxu0 %v1031
  %2973 = vmatpush.bf16.msra.mxu0 %v1027
  %2974 = vmatpush.bf16.msra.mxu0 %v1023
  %2975 = vmatpush.bf16.msra.mxu0 %v1019
  %2976 = vmatpush.bf16.msra.mxu0 %v1015
  %2977 = vmatmul.bf16.gmra.mxu0 %v2877
  %v2978 = vpop.f32.mrf.mxu0
  %v2979 = vadd.f32 %v2966, %v2978
  %v2980 = vpop.f32.mrf.mxu0
  %2981 = vdwg.mxu0
  %v2982 = vxor.u32 %v2901, 2147483648
  %v2983 = vmul.f32 %v2982, 1.442695
  %v2984 = vpow.pop %v2983
  %v2985 = vadd.f32 %v2984, 1.0
  %v2986 = vrcp.pop %v2985
  %v2987 = vmul.f32 %v2985, %v2986
  %v2988 = vsub.f32 1.0, %v2987
  %v2989 = vmul.f32 %v2986, %v2988
  %v2990 = vadd.f32 %v2986, %v2989
  %vm2991 = vweird.f32 %v2985
  %vm2992 = vweird.f32 %v2986
  %vm2993 = vmor %vm2991, %vm2992
  %v2994 = vsel %vm2993, %v2986, %v2990
  %v2995 = vand.u32 2147483647, %v2985
  %vm2996 = vcmp.eq.f32.partialorder %v2995, 8.507059e+37
  %v2997 = vand.u32 %v2985, 2147483648
  %v2998 = vor.u32 1.1754944e-38, %v2997
  %v2999 = vsel %vm2996, %v2998, %v2994
  %v3000 = vmul.f32 1.0, %v2999
  %v3001 = vxor.u32 %v2927, 2147483648
  %v3002 = vmul.f32 %v3001, 1.442695
  %v3003 = vpow.pop %v3002
  %v3004 = vadd.f32 %v3003, 1.0
  %v3005 = vrcp.pop %v3004
  %v3006 = vmul.f32 %v3004, %v3005
  %v3007 = vsub.f32 1.0, %v3006
  %v3008 = vmul.f32 %v3005, %v3007
  %v3009 = vadd.f32 %v3005, %v3008
  %vm3010 = vweird.f32 %v3004
  %vm3011 = vweird.f32 %v3005
  %vm3012 = vmor %vm3010, %vm3011
  %v3013 = vsel %vm3012, %v3005, %v3009
  %v3014 = vand.u32 2147483647, %v3004
  %vm3015 = vcmp.eq.f32.partialorder %v3014, 8.507059e+37
  %v3016 = vand.u32 %v3004, 2147483648
  %v3017 = vor.u32 1.1754944e-38, %v3016
  %v3018 = vsel %vm3015, %v3017, %v3013
  %v3019 = vmul.f32 1.0, %v3018
  %v3020 = vtanh.pop %v2953
  %v3021 = vxor.u32 %v2979, 2147483648
  %v3022 = vmul.f32 %v3021, 1.442695
  %v3023 = vpow.pop %v3022
  %v3024 = vadd.f32 %v3023, 1.0
  %v3025 = vrcp.pop %v3024
  %v3026 = vmul.f32 %v3024, %v3025
  %v3027 = vsub.f32 1.0, %v3026
  %v3028 = vmul.f32 %v3025, %v3027
  %v3029 = vadd.f32 %v3025, %v3028
  %vm3030 = vweird.f32 %v3024
  %vm3031 = vweird.f32 %v3025
  %vm3032 = vmor %vm3030, %vm3031
  %v3033 = vsel %vm3032, %v3025, %v3029
  %v3034 = vand.u32 2147483647, %v3024
  %vm3035 = vcmp.eq.f32.partialorder %v3034, 8.507059e+37
  %v3036 = vand.u32 %v3024, 2147483648
  %v3037 = vor.u32 1.1754944e-38, %v3036
  %v3038 = vsel %vm3035, %v3037, %v3033
  %v3039 = vmul.f32 1.0, %v3038
  %v3040 = vmul.f32 %v3019, %v2747
  %v3041 = vmul.f32 %v3000, %v3020
  %v3042 = vadd.f32 %v3040, %v3041
  %v3043 = vtanh.pop %v3042
  %v3044 = vmul.f32 %v3039, %v3043
  %s3045 = smul.u32 7, 4
  %s3046 = smul.addr %s3045, 8
  %s3047 = scalar_lea.vmem [#allocation2], %s3046
  %v3048 = vld [vmem:[%s3047] sm:$0xff]
  %v3049 = vld [vmem:[%s3047 + $0x8] sm:$0xff]
  %v3050 = vld [vmem:[%s3047 + $0x10] sm:$0xff]
  %v3051 = vld [vmem:[%s3047 + $0x18] sm:$0xff]
  %3052 = vmatpush.bf16.msra.mxu0 %v631
  %3053 = vmatpush.bf16.msra.mxu0 %v627
  %3054 = vmatpush.bf16.msra.mxu0 %v623
  %3055 = vmatpush.bf16.msra.mxu0 %v619
  %3056 = vmatpush.bf16.msra.mxu0 %v615
  %3057 = vmatpush.bf16.msra.mxu0 %v611
  %3058 = vmatpush.bf16.msra.mxu0 %v607
  %3059 = vmatpush.bf16.msra.mxu0 %v603
  %3060 = vmatmul.bf16.gmra.mxu0 %v2876
  %v3061 = vpop.f32.mrf.mxu0
  %v3062 = vadd.f32 0.0, %v3061
  %v3063 = vpop.f32.mrf.mxu0
  %3064 = vdwg.mxu0
  %3065 = vmatpush.bf16.msra.mxu0 %v632
  %3066 = vmatpush.bf16.msra.mxu0 %v628
  %3067 = vmatpush.bf16.msra.mxu0 %v624
  %3068 = vmatpush.bf16.msra.mxu0 %v620
  %3069 = vmatpush.bf16.msra.mxu0 %v616
  %3070 = vmatpush.bf16.msra.mxu0 %v612
  %3071 = vmatpush.bf16.msra.mxu0 %v608
  %3072 = vmatpush.bf16.msra.mxu0 %v604
  %3073 = vmatmul.bf16.gmra.mxu0 %v2876
  %v3074 = vpop.f32.mrf.mxu0
  %v3075 = vadd.f32 0.0, %v3074
  %v3076 = vpop.f32.mrf.mxu0
  %3077 = vdwg.mxu0
  %3078 = vmatpush.bf16.msra.mxu0 %v633
  %3079 = vmatpush.bf16.msra.mxu0 %v629
  %3080 = vmatpush.bf16.msra.mxu0 %v625
  %3081 = vmatpush.bf16.msra.mxu0 %v621
  %3082 = vmatpush.bf16.msra.mxu0 %v617
  %3083 = vmatpush.bf16.msra.mxu0 %v613
  %3084 = vmatpush.bf16.msra.mxu0 %v609
  %3085 = vmatpush.bf16.msra.mxu0 %v605
  %3086 = vmatmul.bf16.gmra.mxu0 %v2876
  %v3087 = vpop.f32.mrf.mxu0
  %v3088 = vadd.f32 0.0, %v3087
  %v3089 = vpop.f32.mrf.mxu0
  %3090 = vdwg.mxu0
  %3091 = vmatpush.bf16.msra.mxu0 %v634
  %3092 = vmatpush.bf16.msra.mxu0 %v630
  %3093 = vmatpush.bf16.msra.mxu0 %v626
  %3094 = vmatpush.bf16.msra.mxu0 %v622
  %3095 = vmatpush.bf16.msra.mxu0 %v618
  %3096 = vmatpush.bf16.msra.mxu0 %v614
  %3097 = vmatpush.bf16.msra.mxu0 %v610
  %3098 = vmatpush.bf16.msra.mxu0 %v606
  %3099 = vmatmul.bf16.gmra.mxu0 %v2876
  %v3100 = vpop.f32.mrf.mxu0
  %v3101 = vadd.f32 0.0, %v3100
  %v3102 = vpop.f32.mrf.mxu0
  %3103 = vdwg.mxu0
  %v3104 = vadd.f32 %v3048, %v3062
  %v3105 = vadd.f32 %v3049, %v3075
  %v3106 = vadd.f32 %v3050, %v3088
  %v3107 = vadd.f32 %v3051, %v3101
  %v3108 = vxor.u32 %v3104, 2147483648
  %v3109 = vmul.f32 %v3108, 1.442695
  %v3110 = vpow.pop %v3109
  %v3111 = vadd.f32 %v3110, 1.0
  %v3112 = vrcp.pop %v3111
  %v3113 = vmul.f32 %v3111, %v3112
  %v3114 = vsub.f32 1.0, %v3113
  %v3115 = vmul.f32 %v3112, %v3114
  %v3116 = vadd.f32 %v3112, %v3115
  %vm3117 = vweird.f32 %v3111
  %vm3118 = vweird.f32 %v3112
  %vm3119 = vmor %vm3117, %vm3118
  %v3120 = vsel %vm3119, %v3112, %v3116
  %v3121 = vand.u32 2147483647, %v3111
  %vm3122 = vcmp.eq.f32.partialorder %v3121, 8.507059e+37
  %v3123 = vand.u32 %v3111, 2147483648
  %v3124 = vor.u32 1.1754944e-38, %v3123
  %v3125 = vsel %vm3122, %v3124, %v3120
  %v3126 = vmul.f32 1.0, %v3125
  %v3127 = vxor.u32 %v3105, 2147483648
  %v3128 = vmul.f32 %v3127, 1.442695
  %v3129 = vpow.pop %v3128
  %v3130 = vadd.f32 %v3129, 1.0
  %v3131 = vrcp.pop %v3130
  %v3132 = vmul.f32 %v3130, %v3131
  %v3133 = vsub.f32 1.0, %v3132
  %v3134 = vmul.f32 %v3131, %v3133
  %v3135 = vadd.f32 %v3131, %v3134
  %vm3136 = vweird.f32 %v3130
  %vm3137 = vweird.f32 %v3131
  %vm3138 = vmor %vm3136, %vm3137
  %v3139 = vsel %vm3138, %v3131, %v3135
  %v3140 = vand.u32 2147483647, %v3130
  %vm3141 = vcmp.eq.f32.partialorder %v3140, 8.507059e+37
  %v3142 = vand.u32 %v3130, 2147483648
  %v3143 = vor.u32 1.1754944e-38, %v3142
  %v3144 = vsel %vm3141, %v3143, %v3139
  %v3145 = vmul.f32 1.0, %v3144
  %v3146 = vtanh.pop %v3106
  %v3147 = vxor.u32 %v3107, 2147483648
  %v3148 = vmul.f32 %v3147, 1.442695
  %v3149 = vpow.pop %v3148
  %v3150 = vadd.f32 %v3149, 1.0
  %v3151 = vrcp.pop %v3150
  %v3152 = vmul.f32 %v3150, %v3151
  %v3153 = vsub.f32 1.0, %v3152
  %v3154 = vmul.f32 %v3151, %v3153
  %v3155 = vadd.f32 %v3151, %v3154
  %vm3156 = vweird.f32 %v3150
  %vm3157 = vweird.f32 %v3151
  %vm3158 = vmor %vm3156, %vm3157
  %v3159 = vsel %vm3158, %v3151, %v3155
  %v3160 = vand.u32 2147483647, %v3150
  %vm3161 = vcmp.eq.f32.partialorder %v3160, 8.507059e+37
  %v3162 = vand.u32 %v3150, 2147483648
  %v3163 = vor.u32 1.1754944e-38, %v3162
  %v3164 = vsel %vm3161, %v3163, %v3159
  %v3165 = vmul.f32 1.0, %v3164
  %v3166 = vmul.f32 %v3145, %v2873
  %v3167 = vmul.f32 %v3126, %v3146
  %v3168 = vadd.f32 %v3166, %v3167
  %v3169 = vtanh.pop %v3168
  %v3170 = vmul.f32 %v3165, %v3169
  %v3171 = vpack.c.bf16 %v3170, %v3170
  %v3172 = vpack.c.bf16 %v3044, %v3044
  %3173 = vmatpush.bf16.msra.mxu0 %v1008
  %3174 = vmatpush.bf16.msra.mxu0 %v1004
  %3175 = vmatpush.bf16.msra.mxu0 %v1000
  %3176 = vmatpush.bf16.msra.mxu0 %v996
  %3177 = vmatpush.bf16.msra.mxu0 %v992
  %3178 = vmatpush.bf16.msra.mxu0 %v988
  %3179 = vmatpush.bf16.msra.mxu0 %v984
  %3180 = vmatpush.bf16.msra.mxu0 %v980
  %3181 = vmatmul.bf16.gmra.mxu0 %v3171
  %v3182 = vpop.f32.mrf.mxu0
  %v3183 = vadd.f32 %v492, %v3182
  %v3184 = vpop.f32.mrf.mxu0
  %3185 = vdwg.mxu0
  %3186 = vmatpush.bf16.msra.mxu0 %v1040
  %3187 = vmatpush.bf16.msra.mxu0 %v1036
  %3188 = vmatpush.bf16.msra.mxu0 %v1032
  %3189 = vmatpush.bf16.msra.mxu0 %v1028
  %3190 = vmatpush.bf16.msra.mxu0 %v1024
  %3191 = vmatpush.bf16.msra.mxu0 %v1020
  %3192 = vmatpush.bf16.msra.mxu0 %v1016
  %3193 = vmatpush.bf16.msra.mxu0 %v1012
  %3194 = vmatmul.bf16.gmra.mxu0 %v3172
  %v3195 = vpop.f32.mrf.mxu0
  %v3196 = vadd.f32 %v3183, %v3195
  %v3197 = vpop.f32.mrf.mxu0
  %3198 = vdwg.mxu0
  %3199 = vmatpush.bf16.msra.mxu0 %v1009
  %3200 = vmatpush.bf16.msra.mxu0 %v1005
  %3201 = vmatpush.bf16.msra.mxu0 %v1001
  %3202 = vmatpush.bf16.msra.mxu0 %v997
  %3203 = vmatpush.bf16.msra.mxu0 %v993
  %3204 = vmatpush.bf16.msra.mxu0 %v989
  %3205 = vmatpush.bf16.msra.mxu0 %v985
  %3206 = vmatpush.bf16.msra.mxu0 %v981
  %3207 = vmatmul.bf16.gmra.mxu0 %v3171
  %v3208 = vpop.f32.mrf.mxu0
  %v3209 = vadd.f32 %v493, %v3208
  %v3210 = vpop.f32.mrf.mxu0
  %3211 = vdwg.mxu0
  %3212 = vmatpush.bf16.msra.mxu0 %v1041
  %3213 = vmatpush.bf16.msra.mxu0 %v1037
  %3214 = vmatpush.bf16.msra.mxu0 %v1033
  %3215 = vmatpush.bf16.msra.mxu0 %v1029
  %3216 = vmatpush.bf16.msra.mxu0 %v1025
  %3217 = vmatpush.bf16.msra.mxu0 %v1021
  %3218 = vmatpush.bf16.msra.mxu0 %v1017
  %3219 = vmatpush.bf16.msra.mxu0 %v1013
  %3220 = vmatmul.bf16.gmra.mxu0 %v3172
  %v3221 = vpop.f32.mrf.mxu0
  %v3222 = vadd.f32 %v3209, %v3221
  %v3223 = vpop.f32.mrf.mxu0
  %3224 = vdwg.mxu0
  %3225 = vmatpush.bf16.msra.mxu0 %v1010
  %3226 = vmatpush.bf16.msra.mxu0 %v1006
  %3227 = vmatpush.bf16.msra.mxu0 %v1002
  %3228 = vmatpush.bf16.msra.mxu0 %v998
  %3229 = vmatpush.bf16.msra.mxu0 %v994
  %3230 = vmatpush.bf16.msra.mxu0 %v990
  %3231 = vmatpush.bf16.msra.mxu0 %v986
  %3232 = vmatpush.bf16.msra.mxu0 %v982
  %3233 = vmatmul.bf16.gmra.mxu0 %v3171
  %v3234 = vpop.f32.mrf.mxu0
  %v3235 = vadd.f32 %v494, %v3234
  %v3236 = vpop.f32.mrf.mxu0
  %3237 = vdwg.mxu0
  %3238 = vmatpush.bf16.msra.mxu0 %v1042
  %3239 = vmatpush.bf16.msra.mxu0 %v1038
  %3240 = vmatpush.bf16.msra.mxu0 %v1034
  %3241 = vmatpush.bf16.msra.mxu0 %v1030
  %3242 = vmatpush.bf16.msra.mxu0 %v1026
  %3243 = vmatpush.bf16.msra.mxu0 %v1022
  %3244 = vmatpush.bf16.msra.mxu0 %v1018
  %3245 = vmatpush.bf16.msra.mxu0 %v1014
  %3246 = vmatmul.bf16.gmra.mxu0 %v3172
  %v3247 = vpop.f32.mrf.mxu0
  %v3248 = vadd.f32 %v3235, %v3247
  %v3249 = vpop.f32.mrf.mxu0
  %3250 = vdwg.mxu0
  %3251 = vmatpush.bf16.msra.mxu0 %v1011
  %3252 = vmatpush.bf16.msra.mxu0 %v1007
  %3253 = vmatpush.bf16.msra.mxu0 %v1003
  %3254 = vmatpush.bf16.msra.mxu0 %v999
  %3255 = vmatpush.bf16.msra.mxu0 %v995
  %3256 = vmatpush.bf16.msra.mxu0 %v991
  %3257 = vmatpush.bf16.msra.mxu0 %v987
  %3258 = vmatpush.bf16.msra.mxu0 %v983
  %3259 = vmatmul.bf16.gmra.mxu0 %v3171
  %v3260 = vpop.f32.mrf.mxu0
  %v3261 = vadd.f32 %v495, %v3260
  %v3262 = vpop.f32.mrf.mxu0
  %3263 = vdwg.mxu0
  %3264 = vmatpush.bf16.msra.mxu0 %v1043
  %3265 = vmatpush.bf16.msra.mxu0 %v1039
  %3266 = vmatpush.bf16.msra.mxu0 %v1035
  %3267 = vmatpush.bf16.msra.mxu0 %v1031
  %3268 = vmatpush.bf16.msra.mxu0 %v1027
  %3269 = vmatpush.bf16.msra.mxu0 %v1023
  %3270 = vmatpush.bf16.msra.mxu0 %v1019
  %3271 = vmatpush.bf16.msra.mxu0 %v1015
  %3272 = vmatmul.bf16.gmra.mxu0 %v3172
  %v3273 = vpop.f32.mrf.mxu0
  %v3274 = vadd.f32 %v3261, %v3273
  %v3275 = vpop.f32.mrf.mxu0
  %3276 = vdwg.mxu0
  %v3277 = vxor.u32 %v3196, 2147483648
  %v3278 = vmul.f32 %v3277, 1.442695
  %v3279 = vpow.pop %v3278
  %v3280 = vadd.f32 %v3279, 1.0
  %v3281 = vrcp.pop %v3280
  %v3282 = vmul.f32 %v3280, %v3281
  %v3283 = vsub.f32 1.0, %v3282
  %v3284 = vmul.f32 %v3281, %v3283
  %v3285 = vadd.f32 %v3281, %v3284
  %vm3286 = vweird.f32 %v3280
  %vm3287 = vweird.f32 %v3281
  %vm3288 = vmor %vm3286, %vm3287
  %v3289 = vsel %vm3288, %v3281, %v3285
  %v3290 = vand.u32 2147483647, %v3280
  %vm3291 = vcmp.eq.f32.partialorder %v3290, 8.507059e+37
  %v3292 = vand.u32 %v3280, 2147483648
  %v3293 = vor.u32 1.1754944e-38, %v3292
  %v3294 = vsel %vm3291, %v3293, %v3289
  %v3295 = vmul.f32 1.0, %v3294
  %v3296 = vxor.u32 %v3222, 2147483648
  %v3297 = vmul.f32 %v3296, 1.442695
  %v3298 = vpow.pop %v3297
  %v3299 = vadd.f32 %v3298, 1.0
  %v3300 = vrcp.pop %v3299
  %v3301 = vmul.f32 %v3299, %v3300
  %v3302 = vsub.f32 1.0, %v3301
  %v3303 = vmul.f32 %v3300, %v3302
  %v3304 = vadd.f32 %v3300, %v3303
  %vm3305 = vweird.f32 %v3299
  %vm3306 = vweird.f32 %v3300
  %vm3307 = vmor %vm3305, %vm3306
  %v3308 = vsel %vm3307, %v3300, %v3304
  %v3309 = vand.u32 2147483647, %v3299
  %vm3310 = vcmp.eq.f32.partialorder %v3309, 8.507059e+37
  %v3311 = vand.u32 %v3299, 2147483648
  %v3312 = vor.u32 1.1754944e-38, %v3311
  %v3313 = vsel %vm3310, %v3312, %v3308
  %v3314 = vmul.f32 1.0, %v3313
  %v3315 = vtanh.pop %v3248
  %v3316 = vxor.u32 %v3274, 2147483648
  %v3317 = vmul.f32 %v3316, 1.442695
  %v3318 = vpow.pop %v3317
  %v3319 = vadd.f32 %v3318, 1.0
  %v3320 = vrcp.pop %v3319
  %v3321 = vmul.f32 %v3319, %v3320
  %v3322 = vsub.f32 1.0, %v3321
  %v3323 = vmul.f32 %v3320, %v3322
  %v3324 = vadd.f32 %v3320, %v3323
  %vm3325 = vweird.f32 %v3319
  %vm3326 = vweird.f32 %v3320
  %vm3327 = vmor %vm3325, %vm3326
  %v3328 = vsel %vm3327, %v3320, %v3324
  %v3329 = vand.u32 2147483647, %v3319
  %vm3330 = vcmp.eq.f32.partialorder %v3329, 8.507059e+37
  %v3331 = vand.u32 %v3319, 2147483648
  %v3332 = vor.u32 1.1754944e-38, %v3331
  %v3333 = vsel %vm3330, %v3332, %v3328
  %v3334 = vmul.f32 1.0, %v3333
  %v3335 = vmul.f32 %v3314, %v3042
  %v3336 = vmul.f32 %v3295, %v3315
  %v3337 = vadd.f32 %v3335, %v3336
  %v3338 = vtanh.pop %v3337
  %v3339 = vmul.f32 %v3334, %v3338
  %3340 = vst [vmem:[%s8] sm:$0xff] %v3339
  %v3341 = vld [vmem:[%s6] sm:$0xff]
  %v3342 = vld [vmem:[%s6 + $0x8] sm:$0xff]
  %v3343 = vld [vmem:[%s6 + $0x10] sm:$0xff]
  %v3344 = vld [vmem:[%s6 + $0x18] sm:$0xff]
  %v3345 = vld [vmem:[%s6 + $0x20] sm:$0xff]
  %v3346 = vld [vmem:[%s6 + $0x28] sm:$0xff]
  %v3347 = vld [vmem:[%s6 + $0x30] sm:$0xff]
  %v3348 = vld [vmem:[%s6 + $0x38] sm:$0xff]
  %v3349 = vld [vmem:[%s6 + $0x40] sm:$0xff]
  %v3350 = vld [vmem:[%s6 + $0x48] sm:$0xff]
  %v3351 = vld [vmem:[%s6 + $0x50] sm:$0xff]
  %v3352 = vld [vmem:[%s6 + $0x58] sm:$0xff]
  %v3353 = vld [vmem:[%s6 + $0x60] sm:$0xff]
  %v3354 = vld [vmem:[%s6 + $0x68] sm:$0xff]
  %v3355 = vld [vmem:[%s6 + $0x70] sm:$0xff]
  %v3356 = vld [vmem:[%s6 + $0x78] sm:$0xff]
  %v3357 = vld [vmem:[%s7] sm:$0x1]
  %v3359 = vperm.slane %v3357, 0
  %3361 = vmatpush.msra.mxu0 %v3356
  %3362 = vmatpush.msra.mxu0 %v3355
  %3363 = vmatpush.msra.mxu0 %v3354
  %3364 = vmatpush.msra.mxu0 %v3353
  %3365 = vmatpush.msra.mxu0 %v3352
  %3366 = vmatpush.msra.mxu0 %v3351
  %3367 = vmatpush.msra.mxu0 %v3350
  %3368 = vmatpush.msra.mxu0 %v3349
  %3369 = vmatpush.msra.mxu0 %v3348
  %3370 = vmatpush.msra.mxu0 %v3347
  %3371 = vmatpush.msra.mxu0 %v3346
  %3372 = vmatpush.msra.mxu0 %v3345
  %3373 = vmatpush.msra.mxu0 %v3344
  %3374 = vmatpush.msra.mxu0 %v3343
  %3375 = vmatpush.msra.mxu0 %v3342
  %3376 = vmatpush.msra.mxu0 %v3341
  %3377 = vmatmul.f32.gmra.mxu0 %v3339
  %v3378 = vpop.f32.mrf.mxu0
  %v3379 = vadd.f32 %v3359, %v3378
  %3380 = vdwg.mxu0
  %3381 = vst [vmem:[%s9] sm:$0xff] %v3379
  // Predicated region
  $region34: #{lstms_forward.1} parent=0 // pred_check
    _
  $region35: #{lstms_forward.1} parent=0 // pred_check_branch
    %3383 = sbr.rel (0) target = $region37
  $region36: #{lstms_forward.1} parent=0 // pred_region
    _
  $region37: #{lstms_forward.1} parent=0 // pred_fallthru
    _
  // Predicated region
  $region38: #{lstms_forward.1} parent=0 // pred_check
    _
  $region39: #{lstms_forward.1} parent=0 // pred_check_branch
    %3385 = sbr.rel (0) target = $region41
  $region40: #{lstms_forward.1} parent=0 // pred_region
    _
  $region41: #{lstms_forward.1} parent=0 // pred_fallthru
    _
  // Predicated region
  $region42: #{lstms_forward.1} parent=0 // pred_check
    _
  $region43: #{lstms_forward.1} parent=0 // pred_check_branch
    %3387 = sbr.rel (0) target = $region45
  $region44: #{lstms_forward.1} parent=0 // pred_region
    _
  $region45: #{lstms_forward.1} parent=0 // pred_fallthru
    _
  // Predicated region
  $region46: #{lstms_forward.1} parent=0 // pred_check
    _
  $region47: #{lstms_forward.1} parent=0 // pred_check_branch
    %3389 = sbr.rel (0) target = $region49
  $region48: #{lstms_forward.1} parent=0 // pred_region
    _
  $region49: #{lstms_forward.1} parent=0 // pred_fallthru
    _

</llo_original>
